<compile_context>
chip_gen: v5e
topology: v5e:2x2
jax: 0.10.0
libtpu: 0.0.40
codegen_flags: <defaults>
</compile_context>

<pallas_src>
import math
from functools import partial

import numpy as np

import jax
import jax.numpy as jnp
from jax import lax
from jax.experimental import pallas as pl
from jax.experimental.pallas import tpu as pltpu


BRANCH_KS = (3, 5, 9, 17, 33)   # kernel sizes of d1, d2, d4, d8, d16


# -----------------------------------------------------------------------------
# Small in-kernel helper
# -----------------------------------------------------------------------------
def _shift_lanes(x, delta):
    """y[:, p] = x[:, p + delta], zero-filled where p + delta is out of range.

    delta is a static Python int; implemented with static lane slices + concat
    (no data-dependent control flow, no roll-direction ambiguity).
    """
    rows, cols = x.shape
    if delta == 0:
        return x
    if abs(delta) >= cols:
        return jnp.zeros_like(x)
    fill = jnp.zeros((rows, abs(delta)), x.dtype)
    if delta > 0:
        return jnp.concatenate([x[:, delta:], fill], axis=1)
    return jnp.concatenate([fill, x[:, :cols + delta]], axis=1)


# -----------------------------------------------------------------------------
# Kernel B: per-channel attention scaling (+ optional residual)
# -----------------------------------------------------------------------------
def _scale_kernel(d_ref, a_ref, sel_ref, o_ref):
    # scale[c] = att0[branch(c)]   via the (nOut, 5) channel->branch selector.
    scale = jnp.dot(sel_ref[...], a_ref[...], preferred_element_type=jnp.float32)  # (nOut, 1)
    o_ref[...] = d_ref[...] * scale


def _scale_add_kernel(d_ref, a_ref, sel_ref, x_ref, o_ref):
    scale = jnp.dot(sel_ref[...], a_ref[...], preferred_element_type=jnp.float32)
    o_ref[...] = d_ref[...] * scale + x_ref[...]


# -----------------------------------------------------------------------------
# Parameter init (deterministic, synthetic) + packing into kernel layout
# -----------------------------------------------------------------------------
def _branch_widths(nOut):
    n = int(nOut / 5)
    n2 = int(7 * n / 5)
    n3 = int(5 * n / 5)
    n4 = int(3 * n / 5)
    n5 = int(1 * n / 5)
    n1 = nOut - n2 - n3 - n4 - n5
    return n, (n1, n2, n3, n4, n5)


def init_params(key, nIn, nOut):
    """Raw parameters in flat-HWIO form, shared by the Pallas path and the reference."""
    n, (n1, n2, n3, n4, n5) = _branch_widths(nOut)
    assert min(n1, n2, n3, n4, n5) >= 1, "choose nOut >= 25 so every branch is non-empty"
    specs = [
        ("c1", 1, nIn, n),
        ("d1", 3, n, n1), ("d2", 5, n, n2), ("d4", 9, n, n3),
        ("d8", 17, n, n4), ("d16", 33, n, n5),
        ("e1", 1, n1, 1), ("e2", 1, n2, 1), ("e4", 1, n3, 1),
        ("e8", 1, n4, 1), ("e16", 1, n5, 1),
    ]
    keys = jax.random.split(key, len(specs) + 2)
    params = {}
    for k_rng, (name, K, cin, cout) in zip(keys[: len(specs)], specs):
        fan_in = K * K * cin
        params[name] = (
            jax.random.normal(k_rng, (K * K, cin, cout), jnp.float32) / math.sqrt(fan_in)
        )
    # ChannelAttentionModule(5): 5 -> 2 -> 5 (1x1 convs, no bias) as matrices
    params["cam_w1"] = jax.random.normal(keys[-2], (5, 2), jnp.float32) / math.sqrt(5.0)
    params["cam_w2"] = jax.random.normal(keys[-1], (2, 5), jnp.float32) / math.sqrt(2.0)
    return params


def pack_params(params, nIn, nOut, H, W):
    """Repack weights into the lane-dense kernel layout (done once, outside the kernels)."""
    n, couts = _branch_widths(nOut)
    Ks = BRANCH_KS
    KMAX = max(Ks)
    PADMAX = (KMAX - 1) // 2
    CP = max(8, -(-n // 8) * 8)          # bottleneck width padded to a sublane multiple
    HW = H * W

    # 1x1 reduce conv -> (CP, nIn), rows >= n zeroed.
    wc1 = jnp.zeros((CP, nIn), jnp.float32).at[:n, :].set(params["c1"][0].T)

    # KxK branch convs -> (K*Cout, K*CP): row kh*Cout+co, col kw*CP+ci.
    wds = []
    for name, K, cout in zip(("d1", "d2", "d4", "d8", "d16"), Ks, couts):
        w = params[name].reshape(K, K, n, cout)            # (kh, kw, ci, co)
        w = jnp.transpose(w, (0, 3, 1, 2))                 # (kh, co, kw, ci)
        w = jnp.pad(w, ((0, 0), (0, 0), (0, 0), (0, CP - n)))
        wds.append(w.reshape(K * cout, K * CP))

    # 1x1 "e" convs -> one (5, nOut) matrix: row j only touches branch j's channels.
    we = np.zeros((5, nOut), np.float32)
    off = 0
    for j, (name, cout) in enumerate(zip(("e1", "e2", "e4", "e8", "e16"), couts)):
        we[j, off:off + cout] = np.asarray(params[name][0, :, 0])
        off += cout

    # CAM MLP weights in column form.
    w1t = params["cam_w1"].T                               # (2, 5)
    w2t = params["cam_w2"].T                               # (5, 2)

    # Lane masks for the kw (column) shifts: one (CP, HW) slab per dw.
    w_of_p = np.arange(HW) % W
    maskw = np.zeros((KMAX * CP, HW), np.float32)
    for j in range(KMAX):
        dw = j - PADMAX
        valid = ((w_of_p + dw >= 0) & (w_of_p + dw < W)).astype(np.float32)
        maskw[j * CP:(j + 1) * CP, :] = valid[None, :]

    # Channel -> branch selector (used for the attention scaling in kernel B).
    sel = np.zeros((nOut, 5), np.float32)
    off = 0
    for j, cout in enumerate(couts):
        sel[off:off + cout, j] = 1.0
        off += cout

    return {"c1": wc1, "d": wds, "e": jnp.asarray(we), "w1t": w1t, "w2t": w2t,
            "maskw": jnp.asarray(maskw), "sel": jnp.asarray(sel)}


# -----------------------------------------------------------------------------
# Forward pass (NCHW in / NCHW out, like the PyTorch module)
# -----------------------------------------------------------------------------
@partial(jax.jit, static_argnames=("add",))
def adaptive_receptive_field(x_nchw, packed, add=False):
    B, nIn, H, W = x_nchw.shape
    HW = H * W
    f32 = jnp.float32
    x_flat = x_nchw.reshape(B, nIn, HW).astype(f32)        # lane-dense NCHW-flat

    wc1, wds, we = packed["c1"], packed["d"], packed["e"]
    w1t, w2t = packed["w1t"], packed["w2t"]
    maskw, sel = packed["maskw"], packed["sel"]

    Ks = BRANCH_KS
    CP = wc1.shape[0]
    couts = tuple(w.shape[0] // k for w, k in zip(wds, Ks))
    nOut = sum(couts)
    KMAX = max(Ks)
    PADMAX = (KMAX - 1) // 2
    pads = tuple((k - 1) // 2 for k in Ks)
    j0s = tuple(PADMAX - p for p in pads)                  # first dw-block of each branch
    offs, o = [], 0
    for c in couts:
        offs.append(o)
        o += c
    offs = tuple(offs)

    # ---------------- kernel A: reduce conv + 5 branch convs + e-convs + CAM ---------
    def arf_kernel(x_ref, wc1_ref, wd0_ref, wd1_ref, wd2_ref, wd3_ref, wd4_ref,
                   we_ref, w1t_ref, w2t_ref, mask_ref,
                   dall_ref, att_ref, stack_ref):
        wd_refs = (wd0_ref, wd1_ref, wd2_ref, wd3_ref, wd4_ref)

        # 1x1 reduce conv: channels on sublanes, H*W on lanes.
        out1 = jnp.dot(wc1_ref[...], x_ref[...], preferred_element_type=f32)   # (CP, HW)

        # Column(kw)-shifted + masked copies of out1, shared by every branch.
        for j in range(KMAX):
            dw = j - PADMAX
            slab = _shift_lanes(out1, dw) * mask_ref[pl.ds(j * CP, CP), :]
            stack_ref[pl.ds(j * CP, CP), :] = slab

        accs = []
        for b in range(5):
            Kb, padb, coutb = Ks[b], pads[b], couts[b]
            # One matmul per branch: all (kh, kw, ci) taps in the contraction / M dims.
            rhs = stack_ref[pl.ds(j0s[b] * CP, Kb * CP), :]                    # (Kb*CP, HW)
            parts = jnp.dot(wd_refs[b][...], rhs,
                            preferred_element_type=f32)                        # (Kb*coutb, HW)
            acc = jnp.zeros((coutb, HW), f32)
            for kh in range(Kb):
                dh = kh - padb
                if abs(dh) >= H:        # whole tap row falls into the zero padding
                    continue
                acc = acc + _shift_lanes(parts[kh * coutb:(kh + 1) * coutb, :], dh * W)
            dall_ref[pl.ds(offs[b], coutb), :] = acc
            accs.append(acc)

        # e-convs + channel attention: only batch 0 is ever used downstream.
        @pl.when(pl.program_id(0) == 0)
        def _():
            we_all = we_ref[...]
            combine = jnp.zeros((5, HW), f32)
            for b in range(5):
                wcols = we_all[:, offs[b]:offs[b] + couts[b]]                  # (5, coutb)
                combine = combine + jnp.dot(wcols, accs[b], preferred_element_type=f32)
            avg = jnp.mean(combine, axis=1, keepdims=True)    # AdaptiveAvgPool2d(1) -> (5,1)
            mx = jnp.max(combine, axis=1, keepdims=True)      # AdaptiveMaxPool2d(1) -> (5,1)

            def mlp(v):
                h = jnp.maximum(jnp.dot(w1t_ref[...], v, preferred_element_type=f32), 0.0)
                return jnp.dot(w2t_ref[...], h, preferred_element_type=f32)

            att_ref[...] = jax.nn.sigmoid(mlp(avg) + mlp(mx))                  # (5,1)

    dall, att = pl.pallas_call(
        arf_kernel,
        out_shape=(jax.ShapeDtypeStruct((B, nOut, HW), f32),
                   jax.ShapeDtypeStruct((B, 5, 1), f32)),
        grid_spec=pltpu.PrefetchScalarGridSpec(
            num_scalar_prefetch=0,
            grid=(B,),
            in_specs=[
                pl.BlockSpec((None, nIn, HW), lambda b: (b, 0, 0)),
                pl.BlockSpec(wc1.shape, lambda b: (0, 0)),
                pl.BlockSpec(wds[0].shape, lambda b: (0, 0)),
                pl.BlockSpec(wds[1].shape, lambda b: (0, 0)),
                pl.BlockSpec(wds[2].shape, lambda b: (0, 0)),
                pl.BlockSpec(wds[3].shape, lambda b: (0, 0)),
                pl.BlockSpec(wds[4].shape, lambda b: (0, 0)),
                pl.BlockSpec(we.shape, lambda b: (0, 0)),
                pl.BlockSpec(w1t.shape, lambda b: (0, 0)),
                pl.BlockSpec(w2t.shape, lambda b: (0, 0)),
                pl.BlockSpec(maskw.shape, lambda b: (0, 0)),
            ],
            out_specs=[
                pl.BlockSpec((None, nOut, HW), lambda b: (b, 0, 0)),
                pl.BlockSpec((None, 5, 1), lambda b: (b, 0, 0)),
            ],
            scratch_shapes=[pltpu.VMEM((KMAX * CP, HW), f32)],
        ),
        compiler_params=pltpu.CompilerParams(dimension_semantics=("parallel",)),
    )(x_flat, wc1, *wds, we, w1t, w2t, maskw)

    # ---------------- kernel B: batch-0 attention scaling (+ optional residual) ------
    if add:
        if nIn != nOut:
            raise ValueError("residual add requires nIn == nOut")
        args = (dall, att, sel, x_flat)
        in_specs = [
            pl.BlockSpec((None, nOut, HW), lambda b: (b, 0, 0)),
            pl.BlockSpec((None, 5, 1), lambda b: (0, 0, 0)),   # always batch-0 attention
            pl.BlockSpec(sel.shape, lambda b: (0, 0)),
            pl.BlockSpec((None, nOut, HW), lambda b: (b, 0, 0)),
        ]
        kern = _scale_add_kernel
    else:
        args = (dall, att, sel)
        in_specs = [
            pl.BlockSpec((None, nOut, HW), lambda b: (b, 0, 0)),
            pl.BlockSpec((None, 5, 1), lambda b: (0, 0, 0)),   # always batch-0 attention
            pl.BlockSpec(sel.shape, lambda b: (0, 0)),
        ]
        kern = _scale_kernel

    out = pl.pallas_call(
        kern,
        out_shape=jax.ShapeDtypeStruct((B, nOut, HW), f32),
        grid_spec=pltpu.PrefetchScalarGridSpec(
            num_scalar_prefetch=0,
            grid=(B,),
            in_specs=in_specs,
            out_specs=pl.BlockSpec((None, nOut, HW), lambda b: (b, 0, 0)),
        ),
        compiler_params=pltpu.CompilerParams(dimension_semantics=("parallel",)),
    )(*args)

    return out.reshape(B, nOut, H, W)                     # already NCHW, no transpose


# -----------------------------------------------------------------------------
# Pure-JAX reference (for correctness check)
# -----------------------------------------------------------------------------
def ref_forward(x_nchw, params, add=False):
    x = jnp.transpose(x_nchw, (0, 2, 3, 1)).astype(jnp.float32)

    def conv(xx, w_flat, K):
        cin, cout = w_flat.shape[1], w_flat.shape[2]
        w = w_flat.reshape(K, K, cin, cout)
        pad = (K - 1) // 2
        return lax.conv_general_dilated(
            xx, w, (1, 1), ((pad, pad), (pad, pad)),
            dimension_numbers=("NHWC", "HWIO", "NHWC"),
            precision=lax.Precision.HIGHEST)

    out1 = conv(x, params["c1"], 1)
    d1 = conv(out1, params["d1"], 3)
    d2 = conv(out1, params["d2"], 5)
    d4 = conv(out1, params["d4"], 9)
    d8 = conv(out1, params["d8"], 17)
    d16 = conv(out1, params["d16"], 33)
    combine = jnp.concatenate(
        [conv(d1, params["e1"], 1), conv(d2, params["e2"], 1), conv(d4, params["e4"], 1),
         conv(d8, params["e8"], 1), conv(d16, params["e16"], 1)], axis=-1)

    avg = jnp.mean(combine, axis=(1, 2))
    mx = jnp.max(combine, axis=(1, 2))

    def mlp(v):
        return jnp.maximum(v @ params["cam_w1"], 0.0) @ params["cam_w2"]

    attent = jax.nn.sigmoid(mlp(avg) + mlp(mx))
    a0 = attent[0]
    out = jnp.concatenate(
        [d1 * a0[0], d2 * a0[1], d4 * a0[2], d8 * a0[3], d16 * a0[4]], axis=-1)
    if add:
        out = out + x
    return jnp.transpose(out, (0, 3, 1, 2))


# -----------------------------------------------------------------------------
if __name__ == "__main__":
    B, nIn, H, W = 2, 8, 16, 16
    nOut = 25   # branch widths (n1..n5) = (9, 7, 5, 3, 1), all non-empty

    key = jax.random.PRNGKey(0)
    kx, kp = jax.random.split(key)
    x = jax.random.normal(kx, (B, nIn, H, W), jnp.float32)
    params = init_params(kp, nIn, nOut)
    packed = pack_params(params, nIn, nOut, H, W)

    out = jax.block_until_ready(adaptive_receptive_field(x, packed, add=False))
    assert out.shape == (B, nOut, H, W), out.shape
    ref = jax.block_until_ready(ref_forward(x, params, add=False))
    np.testing.assert_allclose(np.asarray(out), np.asarray(ref), rtol=2e-3, atol=2e-3)

    # residual path (requires nIn == nOut)
    params_r = init_params(kp, nOut, nOut)
    packed_r = pack_params(params_r, nOut, nOut, H, W)
    x_r = jax.random.normal(kx, (B, nOut, H, W), jnp.float32)
    out_r = jax.block_until_ready(adaptive_receptive_field(x_r, packed_r, add=True))
    ref_r = jax.block_until_ready(ref_forward(x_r, params_r, add=True))
    np.testing.assert_allclose(np.asarray(out_r), np.asarray(ref_r), rtol=2e-3, atol=2e-3)

    print("KERNEL_OK")
</pallas_src>

<mosaic_0001>
module attributes {stable_mosaic.version = 11 : i64} {
  func.func @_scale_kernel(%arg0: i32, %arg1: memref<1x25x256xf32, #tpu.memory_space<vmem>>, %arg2: memref<1x5x1xf32, #tpu.memory_space<vmem>>, %arg3: memref<25x5xf32, #tpu.memory_space<vmem>>, %arg4: memref<1x25x256xf32, #tpu.memory_space<vmem>>) attributes {dimension_semantics = [#tpu.dimension_semantics<parallel>], iteration_bounds = array<i64: 2>, scalar_prefetch = 0 : i64, scratch_operands = 0 : i64, tpu.core_type = #tpu.core_type<tc>, window_params = [{transform_indices = @transform_0, window_bounds = array<i64: 1, 25, 256>}, {transform_indices = @transform_1, window_bounds = array<i64: 1, 5, 1>}, {pipeline_mode = #tpu.pipeline_mode<synchronous>, transform_indices = @transform_2, window_bounds = array<i64: 25, 5>}, {transform_indices = @transform_3, window_bounds = array<i64: 1, 25, 256>}]} {
    %c0 = arith.constant 0 : index
    %c0_0 = arith.constant 0 : index
    %0 = vector.load %arg3[%c0, %c0_0] : memref<25x5xf32, #tpu.memory_space<vmem>>, vector<25x5xf32>
    %c0_1 = arith.constant 0 : index
    %c0_2 = arith.constant 0 : index
    %c0_3 = arith.constant 0 : index
    %1 = vector.load %arg2[%c0_1, %c0_2, %c0_3] : memref<1x5x1xf32, #tpu.memory_space<vmem>>, vector<1x5x1xf32>
    %2 = vector.shape_cast %1 : vector<1x5x1xf32> to vector<5x1xf32>
    %cst = arith.constant dense<0.000000e+00> : vector<25x1xf32>
    %3 = tpu.matmul %0, %2, %cst {dimension_numbers = #tpu.dot_dimension_numbers<[1], [0], [0], [1], [0, 0, 1, 1], [], []>} : vector<25x5xf32>, vector<5x1xf32>, vector<25x1xf32> -> vector<25x1xf32>
    %c0_4 = arith.constant 0 : index
    %c0_5 = arith.constant 0 : index
    %c0_6 = arith.constant 0 : index
    %4 = vector.load %arg1[%c0_4, %c0_5, %c0_6] : memref<1x25x256xf32, #tpu.memory_space<vmem>>, vector<1x25x256xf32>
    %5 = vector.shape_cast %4 : vector<1x25x256xf32> to vector<25x256xf32>
    %6 = vector.broadcast %3 : vector<25x1xf32> to vector<25x256xf32>
    %7 = arith.mulf %5, %6 : vector<25x256xf32>
    %c0_7 = arith.constant 0 : index
    %c0_8 = arith.constant 0 : index
    %c0_9 = arith.constant 0 : index
    %8 = vector.load %arg4[%c0_7, %c0_8, %c0_9] : memref<1x25x256xf32, #tpu.memory_space<vmem>>, vector<1x25x256xf32>
    %9 = vector.shape_cast %8 : vector<1x25x256xf32> to vector<25x256xf32>
    %10 = vector.shape_cast %7 : vector<25x256xf32> to vector<1x25x256xf32>
    tpu.vector_store %arg4[%c0_7, %c0_8, %c0_9], %10 {strides = array<i32>} : memref<1x25x256xf32, #tpu.memory_space<vmem>>, vector<1x25x256xf32>,
    return
  }
  func.func @transform_0(%arg0: i32) -> (i32, i32, i32) {
    %c0_i32 = arith.constant 0 : i32
    %c0_i32_0 = arith.constant 0 : i32
    %c0_i32_1 = arith.constant 0 : i32
    return %arg0, %c0_i32, %c0_i32_0 : i32, i32, i32
  }
  func.func @transform_1(%arg0: i32) -> (i32, i32, i32) {
    %c0_i32 = arith.constant 0 : i32
    %c0_i32_0 = arith.constant 0 : i32
    %c0_i32_1 = arith.constant 0 : i32
    %c0_i32_2 = arith.constant 0 : i32
    return %c0_i32, %c0_i32_0, %c0_i32_1 : i32, i32, i32
  }
  func.func @transform_2(%arg0: i32) -> (i32, i32) {
    %c0_i32 = arith.constant 0 : i32
    %c0_i32_0 = arith.constant 0 : i32
    %c0_i32_1 = arith.constant 0 : i32
    return %c0_i32, %c0_i32_0 : i32, i32
  }
  func.func @transform_3(%arg0: i32) -> (i32, i32, i32) {
    %c0_i32 = arith.constant 0 : i32
    %c0_i32_0 = arith.constant 0 : i32
    %c0_i32_1 = arith.constant 0 : i32
    return %arg0, %c0_i32, %c0_i32_0 : i32, i32, i32
  }
}

module attributes {stable_mosaic.version = 11 : i64} {
  func.func @arf_kernel(%arg0: i32, %arg1: memref<1x8x256xf32, #tpu.memory_space<vmem>>, %arg2: memref<8x8xf32, #tpu.memory_space<vmem>>, %arg3: memref<27x24xf32, #tpu.memory_space<vmem>>, %arg4: memref<35x40xf32, #tpu.memory_space<vmem>>, %arg5: memref<45x72xf32, #tpu.memory_space<vmem>>, %arg6: memref<51x136xf32, #tpu.memory_space<vmem>>, %arg7: memref<33x264xf32, #tpu.memory_space<vmem>>, %arg8: memref<5x25xf32, #tpu.memory_space<vmem>>, %arg9: memref<2x5xf32, #tpu.memory_space<vmem>>, %arg10: memref<5x2xf32, #tpu.memory_space<vmem>>, %arg11: memref<264x256xf32, #tpu.memory_space<vmem>>, %arg12: memref<1x25x256xf32, #tpu.memory_space<vmem>>, %arg13: memref<1x5x1xf32, #tpu.memory_space<vmem>>, %arg14: memref<264x256xf32, #tpu.memory_space<vmem>>) attributes {dimension_semantics = [#tpu.dimension_semantics<parallel>], iteration_bounds = array<i64: 2>, scalar_prefetch = 0 : i64, scratch_operands = 1 : i64, tpu.core_type = #tpu.core_type<tc>, window_params = [{transform_indices = @transform_0, window_bounds = array<i64: 1, 8, 256>}, {pipeline_mode = #tpu.pipeline_mode<synchronous>, transform_indices = @transform_1, window_bounds = array<i64: 8, 8>}, {pipeline_mode = #tpu.pipeline_mode<synchronous>, transform_indices = @transform_2, window_bounds = array<i64: 27, 24>}, {pipeline_mode = #tpu.pipeline_mode<synchronous>, transform_indices = @transform_3, window_bounds = array<i64: 35, 40>}, {pipeline_mode = #tpu.pipeline_mode<synchronous>, transform_indices = @transform_4, window_bounds = array<i64: 45, 72>}, {pipeline_mode = #tpu.pipeline_mode<synchronous>, transform_indices = @transform_5, window_bounds = array<i64: 51, 136>}, {pipeline_mode = #tpu.pipeline_mode<synchronous>, transform_indices = @transform_6, window_bounds = array<i64: 33, 264>}, {pipeline_mode = #tpu.pipeline_mode<synchronous>, transform_indices = @transform_7, window_bounds = array<i64: 5, 25>}, {pipeline_mode = #tpu.pipeline_mode<synchronous>, transform_indices = @transform_8, window_bounds = array<i64: 2, 5>}, {pipeline_mode = #tpu.pipeline_mode<synchronous>, transform_indices = @transform_9, window_bounds = array<i64: 5, 2>}, {pipeline_mode = #tpu.pipeline_mode<synchronous>, transform_indices = @transform_10, window_bounds = array<i64: 264, 256>}, {transform_indices = @transform_11, window_bounds = array<i64: 1, 25, 256>}, {transform_indices = @transform_12, window_bounds = array<i64: 1, 5, 1>}]} {
    %c0 = arith.constant 0 : index
    %c0_0 = arith.constant 0 : index
    %0 = vector.load %arg2[%c0, %c0_0] : memref<8x8xf32, #tpu.memory_space<vmem>>, vector<8x8xf32>
    %c0_1 = arith.constant 0 : index
    %c0_2 = arith.constant 0 : index
    %c0_3 = arith.constant 0 : index
    %1 = vector.load %arg1[%c0_1, %c0_2, %c0_3] : memref<1x8x256xf32, #tpu.memory_space<vmem>>, vector<1x8x256xf32>
    %2 = vector.shape_cast %1 : vector<1x8x256xf32> to vector<8x256xf32>
    %cst = arith.constant dense<0.000000e+00> : vector<8x256xf32>
    %3 = tpu.matmul %0, %2, %cst {dimension_numbers = #tpu.dot_dimension_numbers<[1], [0], [0], [1], [0, 0, 1, 1], [], []>} : vector<8x8xf32>, vector<8x256xf32>, vector<8x256xf32> -> vector<8x256xf32>
    %cst_4 = arith.constant 0.000000e+00 : f32
    %4 = vector.broadcast %cst_4 : f32 to vector<8x16xf32>
    %5 = vector.extract_strided_slice %3 {offsets = [0, 0], sizes = [8, 240], strides = [1, 1]} : vector<8x256xf32> to vector<8x240xf32>
    %6 = tpu.concatenate %4, %5 in 1 : vector<8x16xf32>, vector<8x240xf32> -> vector<8x256xf32>
    %c0_5 = arith.constant 0 : index
    %c0_6 = arith.constant 0 : index
    %7 = vector.load %arg11[%c0_5, %c0_6] : memref<264x256xf32, #tpu.memory_space<vmem>>, vector<8x256xf32>
    %8 = arith.mulf %6, %7 : vector<8x256xf32>
    %c0_7 = arith.constant 0 : index
    %c0_8 = arith.constant 0 : index
    %9 = vector.load %arg14[%c0_7, %c0_8] : memref<264x256xf32, #tpu.memory_space<vmem>>, vector<8x256xf32>
    tpu.vector_store %arg14[%c0_7, %c0_8], %8 {strides = array<i32>} : memref<264x256xf32, #tpu.memory_space<vmem>>, vector<8x256xf32>,
    %cst_9 = arith.constant 0.000000e+00 : f32
    %10 = vector.broadcast %cst_9 : f32 to vector<8x15xf32>
    %11 = vector.extract_strided_slice %3 {offsets = [0, 0], sizes = [8, 241], strides = [1, 1]} : vector<8x256xf32> to vector<8x241xf32>
    %12 = tpu.concatenate %10, %11 in 1 : vector<8x15xf32>, vector<8x241xf32> -> vector<8x256xf32>
    %c8 = arith.constant 8 : index
    %c0_10 = arith.constant 0 : index
    %13 = vector.load %arg11[%c8, %c0_10] : memref<264x256xf32, #tpu.memory_space<vmem>>, vector<8x256xf32>
    %14 = arith.mulf %12, %13 : vector<8x256xf32>
    %c8_11 = arith.constant 8 : index
    %c0_12 = arith.constant 0 : index
    %15 = vector.load %arg14[%c8_11, %c0_12] : memref<264x256xf32, #tpu.memory_space<vmem>>, vector<8x256xf32>
    tpu.vector_store %arg14[%c8_11, %c0_12], %14 {strides = array<i32>} : memref<264x256xf32, #tpu.memory_space<vmem>>, vector<8x256xf32>,
    %cst_13 = arith.constant 0.000000e+00 : f32
    %16 = vector.broadcast %cst_13 : f32 to vector<8x14xf32>
    %17 = vector.extract_strided_slice %3 {offsets = [0, 0], sizes = [8, 242], strides = [1, 1]} : vector<8x256xf32> to vector<8x242xf32>
    %18 = tpu.concatenate %16, %17 in 1 : vector<8x14xf32>, vector<8x242xf32> -> vector<8x256xf32>
    %c16 = arith.constant 16 : index
    %c0_14 = arith.constant 0 : index
    %19 = vector.load %arg11[%c16, %c0_14] : memref<264x256xf32, #tpu.memory_space<vmem>>, vector<8x256xf32>
    %20 = arith.mulf %18, %19 : vector<8x256xf32>
    %c16_15 = arith.constant 16 : index
    %c0_16 = arith.constant 0 : index
    %21 = vector.load %arg14[%c16_15, %c0_16] : memref<264x256xf32, #tpu.memory_space<vmem>>, vector<8x256xf32>
    tpu.vector_store %arg14[%c16_15, %c0_16], %20 {strides = array<i32>} : memref<264x256xf32, #tpu.memory_space<vmem>>, vector<8x256xf32>,
    %cst_17 = arith.constant 0.000000e+00 : f32
    %22 = vector.broadcast %cst_17 : f32 to vector<8x13xf32>
    %23 = vector.extract_strided_slice %3 {offsets = [0, 0], sizes = [8, 243], strides = [1, 1]} : vector<8x256xf32> to vector<8x243xf32>
    %24 = tpu.concatenate %22, %23 in 1 : vector<8x13xf32>, vector<8x243xf32> -> vector<8x256xf32>
    %c24 = arith.constant 24 : index
    %c0_18 = arith.constant 0 : index
    %25 = vector.load %arg11[%c24, %c0_18] : memref<264x256xf32, #tpu.memory_space<vmem>>, vector<8x256xf32>
    %26 = arith.mulf %24, %25 : vector<8x256xf32>
    %c24_19 = arith.constant 24 : index
    %c0_20 = arith.constant 0 : index
    %27 = vector.load %arg14[%c24_19, %c0_20] : memref<264x256xf32, #tpu.memory_space<vmem>>, vector<8x256xf32>
    tpu.vector_store %arg14[%c24_19, %c0_20], %26 {strides = array<i32>} : memref<264x256xf32, #tpu.memory_space<vmem>>, vector<8x256xf32>,
    %cst_21 = arith.constant 0.000000e+00 : f32
    %28 = vector.broadcast %cst_21 : f32 to vector<8x12xf32>
    %29 = vector.extract_strided_slice %3 {offsets = [0, 0], sizes = [8, 244], strides = [1, 1]} : vector<8x256xf32> to vector<8x244xf32>
    %30 = tpu.concatenate %28, %29 in 1 : vector<8x12xf32>, vector<8x244xf32> -> vector<8x256xf32>
    %c32 = arith.constant 32 : index
    %c0_22 = arith.constant 0 : index
    %31 = vector.load %arg11[%c32, %c0_22] : memref<264x256xf32, #tpu.memory_space<vmem>>, vector<8x256xf32>
    %32 = arith.mulf %30, %31 : vector<8x256xf32>
    %c32_23 = arith.constant 32 : index
    %c0_24 = arith.constant 0 : index
    %33 = vector.load %arg14[%c32_23, %c0_24] : memref<264x256xf32, #tpu.memory_space<vmem>>, vector<8x256xf32>
    tpu.vector_store %arg14[%c32_23, %c0_24], %32 {strides = array<i32>} : memref<264x256xf32, #tpu.memory_space<vmem>>, vector<8x256xf32>,
    %cst_25 = arith.constant 0.000000e+00 : f32
    %34 = vector.broadcast %cst_25 : f32 to vector<8x11xf32>
    %35 = vector.extract_strided_slice %3 {offsets = [0, 0], sizes = [8, 245], strides = [1, 1]} : vector<8x256xf32> to vector<8x245xf32>
    %36 = tpu.concatenate %34, %35 in 1 : vector<8x11xf32>, vector<8x245xf32> -> vector<8x256xf32>
    %c40 = arith.constant 40 : index
    %c0_26 = arith.constant 0 : index
    %37 = vector.load %arg11[%c40, %c0_26] : memref<264x256xf32, #tpu.memory_space<vmem>>, vector<8x256xf32>
    %38 = arith.mulf %36, %37 : vector<8x256xf32>
    %c40_27 = arith.constant 40 : index
    %c0_28 = arith.constant 0 : index
    %39 = vector.load %arg14[%c40_27, %c0_28] : memref<264x256xf32, #tpu.memory_space<vmem>>, vector<8x256xf32>
    tpu.vector_store %arg14[%c40_27, %c0_28], %38 {strides = array<i32>} : memref<264x256xf32, #tpu.memory_space<vmem>>, vector<8x256xf32>,
    %cst_29 = arith.constant 0.000000e+00 : f32
    %40 = vector.broadcast %cst_29 : f32 to vector<8x10xf32>
    %41 = vector.extract_strided_slice %3 {offsets = [0, 0], sizes = [8, 246], strides = [1, 1]} : vector<8x256xf32> to vector<8x246xf32>
    %42 = tpu.concatenate %40, %41 in 1 : vector<8x10xf32>, vector<8x246xf32> -> vector<8x256xf32>
    %c48 = arith.constant 48 : index
    %c0_30 = arith.constant 0 : index
    %43 = vector.load %arg11[%c48, %c0_30] : memref<264x256xf32, #tpu.memory_space<vmem>>, vector<8x256xf32>
    %44 = arith.mulf %42, %43 : vector<8x256xf32>
    %c48_31 = arith.constant 48 : index
    %c0_32 = arith.constant 0 : index
    %45 = vector.load %arg14[%c48_31, %c0_32] : memref<264x256xf32, #tpu.memory_space<vmem>>, vector<8x256xf32>
    tpu.vector_store %arg14[%c48_31, %c0_32], %44 {strides = array<i32>} : memref<264x256xf32, #tpu.memory_space<vmem>>, vector<8x256xf32>,
    %cst_33 = arith.constant 0.000000e+00 : f32
    %46 = vector.broadcast %cst_33 : f32 to vector<8x9xf32>
    %47 = vector.extract_strided_slice %3 {offsets = [0, 0], sizes = [8, 247], strides = [1, 1]} : vector<8x256xf32> to vector<8x247xf32>
    %48 = tpu.concatenate %46, %47 in 1 : vector<8x9xf32>, vector<8x247xf32> -> vector<8x256xf32>
    %c56 = arith.constant 56 : index
    %c0_34 = arith.constant 0 : index
    %49 = vector.load %arg11[%c56, %c0_34] : memref<264x256xf32, #tpu.memory_space<vmem>>, vector<8x256xf32>
    %50 = arith.mulf %48, %49 : vector<8x256xf32>
    %c56_35 = arith.constant 56 : index
    %c0_36 = arith.constant 0 : index
    %51 = vector.load %arg14[%c56_35, %c0_36] : memref<264x256xf32, #tpu.memory_space<vmem>>, vector<8x256xf32>
    tpu.vector_store %arg14[%c56_35, %c0_36], %50 {strides = array<i32>} : memref<264x256xf32, #tpu.memory_space<vmem>>, vector<8x256xf32>,
    %cst_37 = arith.constant 0.000000e+00 : f32
    %52 = vector.broadcast %cst_37 : f32 to vector<8x8xf32>
    %53 = vector.extract_strided_slice %3 {offsets = [0, 0], sizes = [8, 248], strides = [1, 1]} : vector<8x256xf32> to vector<8x248xf32>
    %54 = tpu.concatenate %52, %53 in 1 : vector<8x8xf32>, vector<8x248xf32> -> vector<8x256xf32>
    %c64 = arith.constant 64 : index
    %c0_38 = arith.constant 0 : index
    %55 = vector.load %arg11[%c64, %c0_38] : memref<264x256xf32, #tpu.memory_space<vmem>>, vector<8x256xf32>
    %56 = arith.mulf %54, %55 : vector<8x256xf32>
    %c64_39 = arith.constant 64 : index
    %c0_40 = arith.constant 0 : index
    %57 = vector.load %arg14[%c64_39, %c0_40] : memref<264x256xf32, #tpu.memory_space<vmem>>, vector<8x256xf32>
    tpu.vector_store %arg14[%c64_39, %c0_40], %56 {strides = array<i32>} : memref<264x256xf32, #tpu.memory_space<vmem>>, vector<8x256xf32>,
    %cst_41 = arith.constant 0.000000e+00 : f32
    %58 = vector.broadcast %cst_41 : f32 to vector<8x7xf32>
    %59 = vector.extract_strided_slice %3 {offsets = [0, 0], sizes = [8, 249], strides = [1, 1]} : vector<8x256xf32> to vector<8x249xf32>
    %60 = tpu.concatenate %58, %59 in 1 : vector<8x7xf32>, vector<8x249xf32> -> vector<8x256xf32>
    %c72 = arith.constant 72 : index
    %c0_42 = arith.constant 0 : index
    %61 = vector.load %arg11[%c72, %c0_42] : memref<264x256xf32, #tpu.memory_space<vmem>>, vector<8x256xf32>
    %62 = arith.mulf %60, %61 : vector<8x256xf32>
    %c72_43 = arith.constant 72 : index
    %c0_44 = arith.constant 0 : index
    %63 = vector.load %arg14[%c72_43, %c0_44] : memref<264x256xf32, #tpu.memory_space<vmem>>, vector<8x256xf32>
    tpu.vector_store %arg14[%c72_43, %c0_44], %62 {strides = array<i32>} : memref<264x256xf32, #tpu.memory_space<vmem>>, vector<8x256xf32>,
    %cst_45 = arith.constant 0.000000e+00 : f32
    %64 = vector.broadcast %cst_45 : f32 to vector<8x6xf32>
    %65 = vector.extract_strided_slice %3 {offsets = [0, 0], sizes = [8, 250], strides = [1, 1]} : vector<8x256xf32> to vector<8x250xf32>
    %66 = tpu.concatenate %64, %65 in 1 : vector<8x6xf32>, vector<8x250xf32> -> vector<8x256xf32>
    %c80 = arith.constant 80 : index
    %c0_46 = arith.constant 0 : index
    %67 = vector.load %arg11[%c80, %c0_46] : memref<264x256xf32, #tpu.memory_space<vmem>>, vector<8x256xf32>
    %68 = arith.mulf %66, %67 : vector<8x256xf32>
    %c80_47 = arith.constant 80 : index
    %c0_48 = arith.constant 0 : index
    %69 = vector.load %arg14[%c80_47, %c0_48] : memref<264x256xf32, #tpu.memory_space<vmem>>, vector<8x256xf32>
    tpu.vector_store %arg14[%c80_47, %c0_48], %68 {strides = array<i32>} : memref<264x256xf32, #tpu.memory_space<vmem>>, vector<8x256xf32>,
    %cst_49 = arith.constant 0.000000e+00 : f32
    %70 = vector.broadcast %cst_49 : f32 to vector<8x5xf32>
    %71 = vector.extract_strided_slice %3 {offsets = [0, 0], sizes = [8, 251], strides = [1, 1]} : vector<8x256xf32> to vector<8x251xf32>
    %72 = tpu.concatenate %70, %71 in 1 : vector<8x5xf32>, vector<8x251xf32> -> vector<8x256xf32>
    %c88 = arith.constant 88 : index
    %c0_50 = arith.constant 0 : index
    %73 = vector.load %arg11[%c88, %c0_50] : memref<264x256xf32, #tpu.memory_space<vmem>>, vector<8x256xf32>
    %74 = arith.mulf %72, %73 : vector<8x256xf32>
    %c88_51 = arith.constant 88 : index
    %c0_52 = arith.constant 0 : index
    %75 = vector.load %arg14[%c88_51, %c0_52] : memref<264x256xf32, #tpu.memory_space<vmem>>, vector<8x256xf32>
    tpu.vector_store %arg14[%c88_51, %c0_52], %74 {strides = array<i32>} : memref<264x256xf32, #tpu.memory_space<vmem>>, vector<8x256xf32>,
    %cst_53 = arith.constant 0.000000e+00 : f32
    %76 = vector.broadcast %cst_53 : f32 to vector<8x4xf32>
    %77 = vector.extract_strided_slice %3 {offsets = [0, 0], sizes = [8, 252], strides = [1, 1]} : vector<8x256xf32> to vector<8x252xf32>
    %78 = tpu.concatenate %76, %77 in 1 : vector<8x4xf32>, vector<8x252xf32> -> vector<8x256xf32>
    %c96 = arith.constant 96 : index
    %c0_54 = arith.constant 0 : index
    %79 = vector.load %arg11[%c96, %c0_54] : memref<264x256xf32, #tpu.memory_space<vmem>>, vector<8x256xf32>
    %80 = arith.mulf %78, %79 : vector<8x256xf32>
    %c96_55 = arith.constant 96 : index
    %c0_56 = arith.constant 0 : index
    %81 = vector.load %arg14[%c96_55, %c0_56] : memref<264x256xf32, #tpu.memory_space<vmem>>, vector<8x256xf32>
    tpu.vector_store %arg14[%c96_55, %c0_56], %80 {strides = array<i32>} : memref<264x256xf32, #tpu.memory_space<vmem>>, vector<8x256xf32>,
    %cst_57 = arith.constant 0.000000e+00 : f32
    %82 = vector.broadcast %cst_57 : f32 to vector<8x3xf32>
    %83 = vector.extract_strided_slice %3 {offsets = [0, 0], sizes = [8, 253], strides = [1, 1]} : vector<8x256xf32> to vector<8x253xf32>
    %84 = tpu.concatenate %82, %83 in 1 : vector<8x3xf32>, vector<8x253xf32> -> vector<8x256xf32>
    %c104 = arith.constant 104 : index
    %c0_58 = arith.constant 0 : index
    %85 = vector.load %arg11[%c104, %c0_58] : memref<264x256xf32, #tpu.memory_space<vmem>>, vector<8x256xf32>
    %86 = arith.mulf %84, %85 : vector<8x256xf32>
    %c104_59 = arith.constant 104 : index
    %c0_60 = arith.constant 0 : index
    %87 = vector.load %arg14[%c104_59, %c0_60] : memref<264x256xf32, #tpu.memory_space<vmem>>, vector<8x256xf32>
    tpu.vector_store %arg14[%c104_59, %c0_60], %86 {strides = array<i32>} : memref<264x256xf32, #tpu.memory_space<vmem>>, vector<8x256xf32>,
    %cst_61 = arith.constant 0.000000e+00 : f32
    %88 = vector.broadcast %cst_61 : f32 to vector<8x2xf32>
    %89 = vector.extract_strided_slice %3 {offsets = [0, 0], sizes = [8, 254], strides = [1, 1]} : vector<8x256xf32> to vector<8x254xf32>
    %90 = tpu.concatenate %88, %89 in 1 : vector<8x2xf32>, vector<8x254xf32> -> vector<8x256xf32>
    %c112 = arith.constant 112 : index
    %c0_62 = arith.constant 0 : index
    %91 = vector.load %arg11[%c112, %c0_62] : memref<264x256xf32, #tpu.memory_space<vmem>>, vector<8x256xf32>
    %92 = arith.mulf %90, %91 : vector<8x256xf32>
    %c112_63 = arith.constant 112 : index
    %c0_64 = arith.constant 0 : index
    %93 = vector.load %arg14[%c112_63, %c0_64] : memref<264x256xf32, #tpu.memory_space<vmem>>, vector<8x256xf32>
    tpu.vector_store %arg14[%c112_63, %c0_64], %92 {strides = array<i32>} : memref<264x256xf32, #tpu.memory_space<vmem>>, vector<8x256xf32>,
    %cst_65 = arith.constant 0.000000e+00 : f32
    %94 = vector.broadcast %cst_65 : f32 to vector<8x1xf32>
    %95 = vector.extract_strided_slice %3 {offsets = [0, 0], sizes = [8, 255], strides = [1, 1]} : vector<8x256xf32> to vector<8x255xf32>
    %96 = tpu.concatenate %94, %95 in 1 : vector<8x1xf32>, vector<8x255xf32> -> vector<8x256xf32>
    %c120 = arith.constant 120 : index
    %c0_66 = arith.constant 0 : index
    %97 = vector.load %arg11[%c120, %c0_66] : memref<264x256xf32, #tpu.memory_space<vmem>>, vector<8x256xf32>
    %98 = arith.mulf %96, %97 : vector<8x256xf32>
    %c120_67 = arith.constant 120 : index
    %c0_68 = arith.constant 0 : index
    %99 = vector.load %arg14[%c120_67, %c0_68] : memref<264x256xf32, #tpu.memory_space<vmem>>, vector<8x256xf32>
    tpu.vector_store %arg14[%c120_67, %c0_68], %98 {strides = array<i32>} : memref<264x256xf32, #tpu.memory_space<vmem>>, vector<8x256xf32>,
    %c128 = arith.constant 128 : index
    %c0_69 = arith.constant 0 : index
    %100 = vector.load %arg11[%c128, %c0_69] : memref<264x256xf32, #tpu.memory_space<vmem>>, vector<8x256xf32>
    %101 = arith.mulf %3, %100 : vector<8x256xf32>
    %c128_70 = arith.constant 128 : index
    %c0_71 = arith.constant 0 : index
    %102 = vector.load %arg14[%c128_70, %c0_71] : memref<264x256xf32, #tpu.memory_space<vmem>>, vector<8x256xf32>
    tpu.vector_store %arg14[%c128_70, %c0_71], %101 {strides = array<i32>} : memref<264x256xf32, #tpu.memory_space<vmem>>, vector<8x256xf32>,
    %cst_72 = arith.constant 0.000000e+00 : f32
    %103 = vector.broadcast %cst_72 : f32 to vector<8x1xf32>
    %104 = vector.extract_strided_slice %3 {offsets = [0, 1], sizes = [8, 255], strides = [1, 1]} : vector<8x256xf32> to vector<8x255xf32>
    %105 = tpu.concatenate %104, %103 in 1 : vector<8x255xf32>, vector<8x1xf32> -> vector<8x256xf32>
    %c136 = arith.constant 136 : index
    %c0_73 = arith.constant 0 : index
    %106 = vector.load %arg11[%c136, %c0_73] : memref<264x256xf32, #tpu.memory_space<vmem>>, vector<8x256xf32>
    %107 = arith.mulf %105, %106 : vector<8x256xf32>
    %c136_74 = arith.constant 136 : index
    %c0_75 = arith.constant 0 : index
    %108 = vector.load %arg14[%c136_74, %c0_75] : memref<264x256xf32, #tpu.memory_space<vmem>>, vector<8x256xf32>
    tpu.vector_store %arg14[%c136_74, %c0_75], %107 {strides = array<i32>} : memref<264x256xf32, #tpu.memory_space<vmem>>, vector<8x256xf32>,
    %cst_76 = arith.constant 0.000000e+00 : f32
    %109 = vector.broadcast %cst_76 : f32 to vector<8x2xf32>
    %110 = vector.extract_strided_slice %3 {offsets = [0, 2], sizes = [8, 254], strides = [1, 1]} : vector<8x256xf32> to vector<8x254xf32>
    %111 = tpu.concatenate %110, %109 in 1 : vector<8x254xf32>, vector<8x2xf32> -> vector<8x256xf32>
    %c144 = arith.constant 144 : index
    %c0_77 = arith.constant 0 : index
    %112 = vector.load %arg11[%c144, %c0_77] : memref<264x256xf32, #tpu.memory_space<vmem>>, vector<8x256xf32>
    %113 = arith.mulf %111, %112 : vector<8x256xf32>
    %c144_78 = arith.constant 144 : index
    %c0_79 = arith.constant 0 : index
    %114 = vector.load %arg14[%c144_78, %c0_79] : memref<264x256xf32, #tpu.memory_space<vmem>>, vector<8x256xf32>
    tpu.vector_store %arg14[%c144_78, %c0_79], %113 {strides = array<i32>} : memref<264x256xf32, #tpu.memory_space<vmem>>, vector<8x256xf32>,
    %cst_80 = arith.constant 0.000000e+00 : f32
    %115 = vector.broadcast %cst_80 : f32 to vector<8x3xf32>
    %116 = vector.extract_strided_slice %3 {offsets = [0, 3], sizes = [8, 253], strides = [1, 1]} : vector<8x256xf32> to vector<8x253xf32>
    %117 = tpu.concatenate %116, %115 in 1 : vector<8x253xf32>, vector<8x3xf32> -> vector<8x256xf32>
    %c152 = arith.constant 152 : index
    %c0_81 = arith.constant 0 : index
    %118 = vector.load %arg11[%c152, %c0_81] : memref<264x256xf32, #tpu.memory_space<vmem>>, vector<8x256xf32>
    %119 = arith.mulf %117, %118 : vector<8x256xf32>
    %c152_82 = arith.constant 152 : index
    %c0_83 = arith.constant 0 : index
    %120 = vector.load %arg14[%c152_82, %c0_83] : memref<264x256xf32, #tpu.memory_space<vmem>>, vector<8x256xf32>
    tpu.vector_store %arg14[%c152_82, %c0_83], %119 {strides = array<i32>} : memref<264x256xf32, #tpu.memory_space<vmem>>, vector<8x256xf32>,
    %cst_84 = arith.constant 0.000000e+00 : f32
    %121 = vector.broadcast %cst_84 : f32 to vector<8x4xf32>
    %122 = vector.extract_strided_slice %3 {offsets = [0, 4], sizes = [8, 252], strides = [1, 1]} : vector<8x256xf32> to vector<8x252xf32>
    %123 = tpu.concatenate %122, %121 in 1 : vector<8x252xf32>, vector<8x4xf32> -> vector<8x256xf32>
    %c160 = arith.constant 160 : index
    %c0_85 = arith.constant 0 : index
    %124 = vector.load %arg11[%c160, %c0_85] : memref<264x256xf32, #tpu.memory_space<vmem>>, vector<8x256xf32>
    %125 = arith.mulf %123, %124 : vector<8x256xf32>
    %c160_86 = arith.constant 160 : index
    %c0_87 = arith.constant 0 : index
    %126 = vector.load %arg14[%c160_86, %c0_87] : memref<264x256xf32, #tpu.memory_space<vmem>>, vector<8x256xf32>
    tpu.vector_store %arg14[%c160_86, %c0_87], %125 {strides = array<i32>} : memref<264x256xf32, #tpu.memory_space<vmem>>, vector<8x256xf32>,
    %cst_88 = arith.constant 0.000000e+00 : f32
    %127 = vector.broadcast %cst_88 : f32 to vector<8x5xf32>
    %128 = vector.extract_strided_slice %3 {offsets = [0, 5], sizes = [8, 251], strides = [1, 1]} : vector<8x256xf32> to vector<8x251xf32>
    %129 = tpu.concatenate %128, %127 in 1 : vector<8x251xf32>, vector<8x5xf32> -> vector<8x256xf32>
    %c168 = arith.constant 168 : index
    %c0_89 = arith.constant 0 : index
    %130 = vector.load %arg11[%c168, %c0_89] : memref<264x256xf32, #tpu.memory_space<vmem>>, vector<8x256xf32>
    %131 = arith.mulf %129, %130 : vector<8x256xf32>
    %c168_90 = arith.constant 168 : index
    %c0_91 = arith.constant 0 : index
    %132 = vector.load %arg14[%c168_90, %c0_91] : memref<264x256xf32, #tpu.memory_space<vmem>>, vector<8x256xf32>
    tpu.vector_store %arg14[%c168_90, %c0_91], %131 {strides = array<i32>} : memref<264x256xf32, #tpu.memory_space<vmem>>, vector<8x256xf32>,
    %cst_92 = arith.constant 0.000000e+00 : f32
    %133 = vector.broadcast %cst_92 : f32 to vector<8x6xf32>
    %134 = vector.extract_strided_slice %3 {offsets = [0, 6], sizes = [8, 250], strides = [1, 1]} : vector<8x256xf32> to vector<8x250xf32>
    %135 = tpu.concatenate %134, %133 in 1 : vector<8x250xf32>, vector<8x6xf32> -> vector<8x256xf32>
    %c176 = arith.constant 176 : index
    %c0_93 = arith.constant 0 : index
    %136 = vector.load %arg11[%c176, %c0_93] : memref<264x256xf32, #tpu.memory_space<vmem>>, vector<8x256xf32>
    %137 = arith.mulf %135, %136 : vector<8x256xf32>
    %c176_94 = arith.constant 176 : index
    %c0_95 = arith.constant 0 : index
    %138 = vector.load %arg14[%c176_94, %c0_95] : memref<264x256xf32, #tpu.memory_space<vmem>>, vector<8x256xf32>
    tpu.vector_store %arg14[%c176_94, %c0_95], %137 {strides = array<i32>} : memref<264x256xf32, #tpu.memory_space<vmem>>, vector<8x256xf32>,
    %cst_96 = arith.constant 0.000000e+00 : f32
    %139 = vector.broadcast %cst_96 : f32 to vector<8x7xf32>
    %140 = vector.extract_strided_slice %3 {offsets = [0, 7], sizes = [8, 249], strides = [1, 1]} : vector<8x256xf32> to vector<8x249xf32>
    %141 = tpu.concatenate %140, %139 in 1 : vector<8x249xf32>, vector<8x7xf32> -> vector<8x256xf32>
    %c184 = arith.constant 184 : index
    %c0_97 = arith.constant 0 : index
    %142 = vector.load %arg11[%c184, %c0_97] : memref<264x256xf32, #tpu.memory_space<vmem>>, vector<8x256xf32>
    %143 = arith.mulf %141, %142 : vector<8x256xf32>
    %c184_98 = arith.constant 184 : index
    %c0_99 = arith.constant 0 : index
    %144 = vector.load %arg14[%c184_98, %c0_99] : memref<264x256xf32, #tpu.memory_space<vmem>>, vector<8x256xf32>
    tpu.vector_store %arg14[%c184_98, %c0_99], %143 {strides = array<i32>} : memref<264x256xf32, #tpu.memory_space<vmem>>, vector<8x256xf32>,
    %cst_100 = arith.constant 0.000000e+00 : f32
    %145 = vector.broadcast %cst_100 : f32 to vector<8x8xf32>
    %146 = vector.extract_strided_slice %3 {offsets = [0, 8], sizes = [8, 248], strides = [1, 1]} : vector<8x256xf32> to vector<8x248xf32>
    %147 = tpu.concatenate %146, %145 in 1 : vector<8x248xf32>, vector<8x8xf32> -> vector<8x256xf32>
    %c192 = arith.constant 192 : index
    %c0_101 = arith.constant 0 : index
    %148 = vector.load %arg11[%c192, %c0_101] : memref<264x256xf32, #tpu.memory_space<vmem>>, vector<8x256xf32>
    %149 = arith.mulf %147, %148 : vector<8x256xf32>
    %c192_102 = arith.constant 192 : index
    %c0_103 = arith.constant 0 : index
    %150 = vector.load %arg14[%c192_102, %c0_103] : memref<264x256xf32, #tpu.memory_space<vmem>>, vector<8x256xf32>
    tpu.vector_store %arg14[%c192_102, %c0_103], %149 {strides = array<i32>} : memref<264x256xf32, #tpu.memory_space<vmem>>, vector<8x256xf32>,
    %cst_104 = arith.constant 0.000000e+00 : f32
    %151 = vector.broadcast %cst_104 : f32 to vector<8x9xf32>
    %152 = vector.extract_strided_slice %3 {offsets = [0, 9], sizes = [8, 247], strides = [1, 1]} : vector<8x256xf32> to vector<8x247xf32>
    %153 = tpu.concatenate %152, %151 in 1 : vector<8x247xf32>, vector<8x9xf32> -> vector<8x256xf32>
    %c200 = arith.constant 200 : index
    %c0_105 = arith.constant 0 : index
    %154 = vector.load %arg11[%c200, %c0_105] : memref<264x256xf32, #tpu.memory_space<vmem>>, vector<8x256xf32>
    %155 = arith.mulf %153, %154 : vector<8x256xf32>
    %c200_106 = arith.constant 200 : index
    %c0_107 = arith.constant 0 : index
    %156 = vector.load %arg14[%c200_106, %c0_107] : memref<264x256xf32, #tpu.memory_space<vmem>>, vector<8x256xf32>
    tpu.vector_store %arg14[%c200_106, %c0_107], %155 {strides = array<i32>} : memref<264x256xf32, #tpu.memory_space<vmem>>, vector<8x256xf32>,
    %cst_108 = arith.constant 0.000000e+00 : f32
    %157 = vector.broadcast %cst_108 : f32 to vector<8x10xf32>
    %158 = vector.extract_strided_slice %3 {offsets = [0, 10], sizes = [8, 246], strides = [1, 1]} : vector<8x256xf32> to vector<8x246xf32>
    %159 = tpu.concatenate %158, %157 in 1 : vector<8x246xf32>, vector<8x10xf32> -> vector<8x256xf32>
    %c208 = arith.constant 208 : index
    %c0_109 = arith.constant 0 : index
    %160 = vector.load %arg11[%c208, %c0_109] : memref<264x256xf32, #tpu.memory_space<vmem>>, vector<8x256xf32>
    %161 = arith.mulf %159, %160 : vector<8x256xf32>
    %c208_110 = arith.constant 208 : index
    %c0_111 = arith.constant 0 : index
    %162 = vector.load %arg14[%c208_110, %c0_111] : memref<264x256xf32, #tpu.memory_space<vmem>>, vector<8x256xf32>
    tpu.vector_store %arg14[%c208_110, %c0_111], %161 {strides = array<i32>} : memref<264x256xf32, #tpu.memory_space<vmem>>, vector<8x256xf32>,
    %cst_112 = arith.constant 0.000000e+00 : f32
    %163 = vector.broadcast %cst_112 : f32 to vector<8x11xf32>
    %164 = vector.extract_strided_slice %3 {offsets = [0, 11], sizes = [8, 245], strides = [1, 1]} : vector<8x256xf32> to vector<8x245xf32>
    %165 = tpu.concatenate %164, %163 in 1 : vector<8x245xf32>, vector<8x11xf32> -> vector<8x256xf32>
    %c216 = arith.constant 216 : index
    %c0_113 = arith.constant 0 : index
    %166 = vector.load %arg11[%c216, %c0_113] : memref<264x256xf32, #tpu.memory_space<vmem>>, vector<8x256xf32>
    %167 = arith.mulf %165, %166 : vector<8x256xf32>
    %c216_114 = arith.constant 216 : index
    %c0_115 = arith.constant 0 : index
    %168 = vector.load %arg14[%c216_114, %c0_115] : memref<264x256xf32, #tpu.memory_space<vmem>>, vector<8x256xf32>
    tpu.vector_store %arg14[%c216_114, %c0_115], %167 {strides = array<i32>} : memref<264x256xf32, #tpu.memory_space<vmem>>, vector<8x256xf32>,
    %cst_116 = arith.constant 0.000000e+00 : f32
    %169 = vector.broadcast %cst_116 : f32 to vector<8x12xf32>
    %170 = vector.extract_strided_slice %3 {offsets = [0, 12], sizes = [8, 244], strides = [1, 1]} : vector<8x256xf32> to vector<8x244xf32>
    %171 = tpu.concatenate %170, %169 in 1 : vector<8x244xf32>, vector<8x12xf32> -> vector<8x256xf32>
    %c224 = arith.constant 224 : index
    %c0_117 = arith.constant 0 : index
    %172 = vector.load %arg11[%c224, %c0_117] : memref<264x256xf32, #tpu.memory_space<vmem>>, vector<8x256xf32>
    %173 = arith.mulf %171, %172 : vector<8x256xf32>
    %c224_118 = arith.constant 224 : index
    %c0_119 = arith.constant 0 : index
    %174 = vector.load %arg14[%c224_118, %c0_119] : memref<264x256xf32, #tpu.memory_space<vmem>>, vector<8x256xf32>
    tpu.vector_store %arg14[%c224_118, %c0_119], %173 {strides = array<i32>} : memref<264x256xf32, #tpu.memory_space<vmem>>, vector<8x256xf32>,
    %cst_120 = arith.constant 0.000000e+00 : f32
    %175 = vector.broadcast %cst_120 : f32 to vector<8x13xf32>
    %176 = vector.extract_strided_slice %3 {offsets = [0, 13], sizes = [8, 243], strides = [1, 1]} : vector<8x256xf32> to vector<8x243xf32>
    %177 = tpu.concatenate %176, %175 in 1 : vector<8x243xf32>, vector<8x13xf32> -> vector<8x256xf32>
    %c232 = arith.constant 232 : index
    %c0_121 = arith.constant 0 : index
    %178 = vector.load %arg11[%c232, %c0_121] : memref<264x256xf32, #tpu.memory_space<vmem>>, vector<8x256xf32>
    %179 = arith.mulf %177, %178 : vector<8x256xf32>
    %c232_122 = arith.constant 232 : index
    %c0_123 = arith.constant 0 : index
    %180 = vector.load %arg14[%c232_122, %c0_123] : memref<264x256xf32, #tpu.memory_space<vmem>>, vector<8x256xf32>
    tpu.vector_store %arg14[%c232_122, %c0_123], %179 {strides = array<i32>} : memref<264x256xf32, #tpu.memory_space<vmem>>, vector<8x256xf32>,
    %cst_124 = arith.constant 0.000000e+00 : f32
    %181 = vector.broadcast %cst_124 : f32 to vector<8x14xf32>
    %182 = vector.extract_strided_slice %3 {offsets = [0, 14], sizes = [8, 242], strides = [1, 1]} : vector<8x256xf32> to vector<8x242xf32>
    %183 = tpu.concatenate %182, %181 in 1 : vector<8x242xf32>, vector<8x14xf32> -> vector<8x256xf32>
    %c240 = arith.constant 240 : index
    %c0_125 = arith.constant 0 : index
    %184 = vector.load %arg11[%c240, %c0_125] : memref<264x256xf32, #tpu.memory_space<vmem>>, vector<8x256xf32>
    %185 = arith.mulf %183, %184 : vector<8x256xf32>
    %c240_126 = arith.constant 240 : index
    %c0_127 = arith.constant 0 : index
    %186 = vector.load %arg14[%c240_126, %c0_127] : memref<264x256xf32, #tpu.memory_space<vmem>>, vector<8x256xf32>
    tpu.vector_store %arg14[%c240_126, %c0_127], %185 {strides = array<i32>} : memref<264x256xf32, #tpu.memory_space<vmem>>, vector<8x256xf32>,
    %cst_128 = arith.constant 0.000000e+00 : f32
    %187 = vector.broadcast %cst_128 : f32 to vector<8x15xf32>
    %188 = vector.extract_strided_slice %3 {offsets = [0, 15], sizes = [8, 241], strides = [1, 1]} : vector<8x256xf32> to vector<8x241xf32>
    %189 = tpu.concatenate %188, %187 in 1 : vector<8x241xf32>, vector<8x15xf32> -> vector<8x256xf32>
    %c248 = arith.constant 248 : index
    %c0_129 = arith.constant 0 : index
    %190 = vector.load %arg11[%c248, %c0_129] : memref<264x256xf32, #tpu.memory_space<vmem>>, vector<8x256xf32>
    %191 = arith.mulf %189, %190 : vector<8x256xf32>
    %c248_130 = arith.constant 248 : index
    %c0_131 = arith.constant 0 : index
    %192 = vector.load %arg14[%c248_130, %c0_131] : memref<264x256xf32, #tpu.memory_space<vmem>>, vector<8x256xf32>
    tpu.vector_store %arg14[%c248_130, %c0_131], %191 {strides = array<i32>} : memref<264x256xf32, #tpu.memory_space<vmem>>, vector<8x256xf32>,
    %cst_132 = arith.constant 0.000000e+00 : f32
    %193 = vector.broadcast %cst_132 : f32 to vector<8x16xf32>
    %194 = vector.extract_strided_slice %3 {offsets = [0, 16], sizes = [8, 240], strides = [1, 1]} : vector<8x256xf32> to vector<8x240xf32>
    %195 = tpu.concatenate %194, %193 in 1 : vector<8x240xf32>, vector<8x16xf32> -> vector<8x256xf32>
    %c256 = arith.constant 256 : index
    %c0_133 = arith.constant 0 : index
    %196 = vector.load %arg11[%c256, %c0_133] : memref<264x256xf32, #tpu.memory_space<vmem>>, vector<8x256xf32>
    %197 = arith.mulf %195, %196 : vector<8x256xf32>
    %c256_134 = arith.constant 256 : index
    %c0_135 = arith.constant 0 : index
    %198 = vector.load %arg14[%c256_134, %c0_135] : memref<264x256xf32, #tpu.memory_space<vmem>>, vector<8x256xf32>
    tpu.vector_store %arg14[%c256_134, %c0_135], %197 {strides = array<i32>} : memref<264x256xf32, #tpu.memory_space<vmem>>, vector<8x256xf32>,
    %c120_136 = arith.constant 120 : index
    %c0_137 = arith.constant 0 : index
    %199 = vector.load %arg14[%c120_136, %c0_137] : memref<264x256xf32, #tpu.memory_space<vmem>>, vector<24x256xf32>
    %c0_138 = arith.constant 0 : index
    %c0_139 = arith.constant 0 : index
    %200 = vector.load %arg3[%c0_138, %c0_139] : memref<27x24xf32, #tpu.memory_space<vmem>>, vector<27x24xf32>
    %cst_140 = arith.constant dense<0.000000e+00> : vector<27x256xf32>
    %201 = tpu.matmul %200, %199, %cst_140 {dimension_numbers = #tpu.dot_dimension_numbers<[1], [0], [0], [1], [0, 0, 1, 1], [], []>} : vector<27x24xf32>, vector<24x256xf32>, vector<27x256xf32> -> vector<27x256xf32>
    %cst_141 = arith.constant 0.000000e+00 : f32
    %202 = vector.broadcast %cst_141 : f32 to vector<9x256xf32>
    %203 = vector.extract_strided_slice %201 {offsets = [0, 0], sizes = [9, 256], strides = [1, 1]} : vector<27x256xf32> to vector<9x256xf32>
    %cst_142 = arith.constant 0.000000e+00 : f32
    %204 = vector.broadcast %cst_142 : f32 to vector<9x16xf32>
    %205 = vector.extract_strided_slice %203 {offsets = [0, 0], sizes = [9, 240], strides = [1, 1]} : vector<9x256xf32> to vector<9x240xf32>
    %206 = tpu.concatenate %204, %205 in 1 : vector<9x16xf32>, vector<9x240xf32> -> vector<9x256xf32>
    %207 = arith.addf %202, %206 : vector<9x256xf32>
    %208 = vector.extract_strided_slice %201 {offsets = [9, 0], sizes = [9, 256], strides = [1, 1]} : vector<27x256xf32> to vector<9x256xf32>
    %209 = arith.addf %207, %208 : vector<9x256xf32>
    %210 = vector.extract_strided_slice %201 {offsets = [18, 0], sizes = [9, 256], strides = [1, 1]} : vector<27x256xf32> to vector<9x256xf32>
    %cst_143 = arith.constant 0.000000e+00 : f32
    %211 = vector.broadcast %cst_143 : f32 to vector<9x16xf32>
    %212 = vector.extract_strided_slice %210 {offsets = [0, 16], sizes = [9, 240], strides = [1, 1]} : vector<9x256xf32> to vector<9x240xf32>
    %213 = tpu.concatenate %212, %211 in 1 : vector<9x240xf32>, vector<9x16xf32> -> vector<9x256xf32>
    %214 = arith.addf %209, %213 : vector<9x256xf32>
    %c0_144 = arith.constant 0 : index
    %c0_145 = arith.constant 0 : index
    %c0_146 = arith.constant 0 : index
    %215 = vector.load %arg12[%c0_144, %c0_145, %c0_146] : memref<1x25x256xf32, #tpu.memory_space<vmem>>, vector<1x9x256xf32>
    %216 = vector.shape_cast %215 : vector<1x9x256xf32> to vector<9x256xf32>
    %217 = vector.shape_cast %214 : vector<9x256xf32> to vector<1x9x256xf32>
    tpu.vector_store %arg12[%c0_144, %c0_145, %c0_146], %217 {strides = array<i32>} : memref<1x25x256xf32, #tpu.memory_space<vmem>>, vector<1x9x256xf32>,
    %c112_147 = arith.constant 112 : index
    %c0_148 = arith.constant 0 : index
    %218 = vector.load %arg14[%c112_147, %c0_148] : memref<264x256xf32, #tpu.memory_space<vmem>>, vector<40x256xf32>
    %c0_149 = arith.constant 0 : index
    %c0_150 = arith.constant 0 : index
    %219 = vector.load %arg4[%c0_149, %c0_150] : memref<35x40xf32, #tpu.memory_space<vmem>>, vector<35x40xf32>
    %cst_151 = arith.constant dense<0.000000e+00> : vector<35x256xf32>
    %220 = tpu.matmul %219, %218, %cst_151 {dimension_numbers = #tpu.dot_dimension_numbers<[1], [0], [0], [1], [0, 0, 1, 1], [], []>} : vector<35x40xf32>, vector<40x256xf32>, vector<35x256xf32> -> vector<35x256xf32>
    %cst_152 = arith.constant 0.000000e+00 : f32
    %221 = vector.broadcast %cst_152 : f32 to vector<7x256xf32>
    %222 = vector.extract_strided_slice %220 {offsets = [0, 0], sizes = [7, 256], strides = [1, 1]} : vector<35x256xf32> to vector<7x256xf32>
    %cst_153 = arith.constant 0.000000e+00 : f32
    %223 = vector.broadcast %cst_153 : f32 to vector<7x32xf32>
    %224 = vector.extract_strided_slice %222 {offsets = [0, 0], sizes = [7, 224], strides = [1, 1]} : vector<7x256xf32> to vector<7x224xf32>
    %225 = tpu.concatenate %223, %224 in 1 : vector<7x32xf32>, vector<7x224xf32> -> vector<7x256xf32>
    %226 = arith.addf %221, %225 : vector<7x256xf32>
    %227 = vector.extract_strided_slice %220 {offsets = [7, 0], sizes = [7, 256], strides = [1, 1]} : vector<35x256xf32> to vector<7x256xf32>
    %cst_154 = arith.constant 0.000000e+00 : f32
    %228 = vector.broadcast %cst_154 : f32 to vector<7x16xf32>
    %229 = vector.extract_strided_slice %227 {offsets = [0, 0], sizes = [7, 240], strides = [1, 1]} : vector<7x256xf32> to vector<7x240xf32>
    %230 = tpu.concatenate %228, %229 in 1 : vector<7x16xf32>, vector<7x240xf32> -> vector<7x256xf32>
    %231 = arith.addf %226, %230 : vector<7x256xf32>
    %232 = vector.extract_strided_slice %220 {offsets = [14, 0], sizes = [7, 256], strides = [1, 1]} : vector<35x256xf32> to vector<7x256xf32>
    %233 = arith.addf %231, %232 : vector<7x256xf32>
    %234 = vector.extract_strided_slice %220 {offsets = [21, 0], sizes = [7, 256], strides = [1, 1]} : vector<35x256xf32> to vector<7x256xf32>
    %cst_155 = arith.constant 0.000000e+00 : f32
    %235 = vector.broadcast %cst_155 : f32 to vector<7x16xf32>
    %236 = vector.extract_strided_slice %234 {offsets = [0, 16], sizes = [7, 240], strides = [1, 1]} : vector<7x256xf32> to vector<7x240xf32>
    %237 = tpu.concatenate %236, %235 in 1 : vector<7x240xf32>, vector<7x16xf32> -> vector<7x256xf32>
    %238 = arith.addf %233, %237 : vector<7x256xf32>
    %239 = vector.extract_strided_slice %220 {offsets = [28, 0], sizes = [7, 256], strides = [1, 1]} : vector<35x256xf32> to vector<7x256xf32>
    %cst_156 = arith.constant 0.000000e+00 : f32
    %240 = vector.broadcast %cst_156 : f32 to vector<7x32xf32>
    %241 = vector.extract_strided_slice %239 {offsets = [0, 32], sizes = [7, 224], strides = [1, 1]} : vector<7x256xf32> to vector<7x224xf32>
    %242 = tpu.concatenate %241, %240 in 1 : vector<7x224xf32>, vector<7x32xf32> -> vector<7x256xf32>
    %243 = arith.addf %238, %242 : vector<7x256xf32>
    %c0_157 = arith.constant 0 : index
    %c9 = arith.constant 9 : index
    %c0_158 = arith.constant 0 : index
    %244 = vector.load %arg12[%c0_157, %c9, %c0_158] : memref<1x25x256xf32, #tpu.memory_space<vmem>>, vector<1x7x256xf32>
    %245 = vector.shape_cast %244 : vector<1x7x256xf32> to vector<7x256xf32>
    %246 = vector.shape_cast %243 : vector<7x256xf32> to vector<1x7x256xf32>
    tpu.vector_store %arg12[%c0_157, %c9, %c0_158], %246 {strides = array<i32>} : memref<1x25x256xf32, #tpu.memory_space<vmem>>, vector<1x7x256xf32>,
    %c96_159 = arith.constant 96 : index
    %c0_160 = arith.constant 0 : index
    %247 = vector.load %arg14[%c96_159, %c0_160] : memref<264x256xf32, #tpu.memory_space<vmem>>, vector<72x256xf32>
    %c0_161 = arith.constant 0 : index
    %c0_162 = arith.constant 0 : index
    %248 = vector.load %arg5[%c0_161, %c0_162] : memref<45x72xf32, #tpu.memory_space<vmem>>, vector<45x72xf32>
    %cst_163 = arith.constant dense<0.000000e+00> : vector<45x256xf32>
    %249 = tpu.matmul %248, %247, %cst_163 {dimension_numbers = #tpu.dot_dimension_numbers<[1], [0], [0], [1], [0, 0, 1, 1], [], []>} : vector<45x72xf32>, vector<72x256xf32>, vector<45x256xf32> -> vector<45x256xf32>
    %cst_164 = arith.constant 0.000000e+00 : f32
    %250 = vector.broadcast %cst_164 : f32 to vector<5x256xf32>
    %251 = vector.extract_strided_slice %249 {offsets = [0, 0], sizes = [5, 256], strides = [1, 1]} : vector<45x256xf32> to vector<5x256xf32>
    %cst_165 = arith.constant 0.000000e+00 : f32
    %252 = vector.broadcast %cst_165 : f32 to vector<5x64xf32>
    %253 = vector.extract_strided_slice %251 {offsets = [0, 0], sizes = [5, 192], strides = [1, 1]} : vector<5x256xf32> to vector<5x192xf32>
    %254 = tpu.concatenate %252, %253 in 1 : vector<5x64xf32>, vector<5x192xf32> -> vector<5x256xf32>
    %255 = arith.addf %250, %254 : vector<5x256xf32>
    %256 = vector.extract_strided_slice %249 {offsets = [5, 0], sizes = [5, 256], strides = [1, 1]} : vector<45x256xf32> to vector<5x256xf32>
    %cst_166 = arith.constant 0.000000e+00 : f32
    %257 = vector.broadcast %cst_166 : f32 to vector<5x48xf32>
    %258 = vector.extract_strided_slice %256 {offsets = [0, 0], sizes = [5, 208], strides = [1, 1]} : vector<5x256xf32> to vector<5x208xf32>
    %259 = tpu.concatenate %257, %258 in 1 : vector<5x48xf32>, vector<5x208xf32> -> vector<5x256xf32>
    %260 = arith.addf %255, %259 : vector<5x256xf32>
    %261 = vector.extract_strided_slice %249 {offsets = [10, 0], sizes = [5, 256], strides = [1, 1]} : vector<45x256xf32> to vector<5x256xf32>
    %cst_167 = arith.constant 0.000000e+00 : f32
    %262 = vector.broadcast %cst_167 : f32 to vector<5x32xf32>
    %263 = vector.extract_strided_slice %261 {offsets = [0, 0], sizes = [5, 224], strides = [1, 1]} : vector<5x256xf32> to vector<5x224xf32>
    %264 = tpu.concatenate %262, %263 in 1 : vector<5x32xf32>, vector<5x224xf32> -> vector<5x256xf32>
    %265 = arith.addf %260, %264 : vector<5x256xf32>
    %266 = vector.extract_strided_slice %249 {offsets = [15, 0], sizes = [5, 256], strides = [1, 1]} : vector<45x256xf32> to vector<5x256xf32>
    %cst_168 = arith.constant 0.000000e+00 : f32
    %267 = vector.broadcast %cst_168 : f32 to vector<5x16xf32>
    %268 = vector.extract_strided_slice %266 {offsets = [0, 0], sizes = [5, 240], strides = [1, 1]} : vector<5x256xf32> to vector<5x240xf32>
    %269 = tpu.concatenate %267, %268 in 1 : vector<5x16xf32>, vector<5x240xf32> -> vector<5x256xf32>
    %270 = arith.addf %265, %269 : vector<5x256xf32>
    %271 = vector.extract_strided_slice %249 {offsets = [20, 0], sizes = [5, 256], strides = [1, 1]} : vector<45x256xf32> to vector<5x256xf32>
    %272 = arith.addf %270, %271 : vector<5x256xf32>
    %273 = vector.extract_strided_slice %249 {offsets = [25, 0], sizes = [5, 256], strides = [1, 1]} : vector<45x256xf32> to vector<5x256xf32>
    %cst_169 = arith.constant 0.000000e+00 : f32
    %274 = vector.broadcast %cst_169 : f32 to vector<5x16xf32>
    %275 = vector.extract_strided_slice %273 {offsets = [0, 16], sizes = [5, 240], strides = [1, 1]} : vector<5x256xf32> to vector<5x240xf32>
    %276 = tpu.concatenate %275, %274 in 1 : vector<5x240xf32>, vector<5x16xf32> -> vector<5x256xf32>
    %277 = arith.addf %272, %276 : vector<5x256xf32>
    %278 = vector.extract_strided_slice %249 {offsets = [30, 0], sizes = [5, 256], strides = [1, 1]} : vector<45x256xf32> to vector<5x256xf32>
    %cst_170 = arith.constant 0.000000e+00 : f32
    %279 = vector.broadcast %cst_170 : f32 to vector<5x32xf32>
    %280 = vector.extract_strided_slice %278 {offsets = [0, 32], sizes = [5, 224], strides = [1, 1]} : vector<5x256xf32> to vector<5x224xf32>
    %281 = tpu.concatenate %280, %279 in 1 : vector<5x224xf32>, vector<5x32xf32> -> vector<5x256xf32>
    %282 = arith.addf %277, %281 : vector<5x256xf32>
    %283 = vector.extract_strided_slice %249 {offsets = [35, 0], sizes = [5, 256], strides = [1, 1]} : vector<45x256xf32> to vector<5x256xf32>
    %cst_171 = arith.constant 0.000000e+00 : f32
    %284 = vector.broadcast %cst_171 : f32 to vector<5x48xf32>
    %285 = vector.extract_strided_slice %283 {offsets = [0, 48], sizes = [5, 208], strides = [1, 1]} : vector<5x256xf32> to vector<5x208xf32>
    %286 = tpu.concatenate %285, %284 in 1 : vector<5x208xf32>, vector<5x48xf32> -> vector<5x256xf32>
    %287 = arith.addf %282, %286 : vector<5x256xf32>
    %288 = vector.extract_strided_slice %249 {offsets = [40, 0], sizes = [5, 256], strides = [1, 1]} : vector<45x256xf32> to vector<5x256xf32>
    %cst_172 = arith.constant 0.000000e+00 : f32
    %289 = vector.broadcast %cst_172 : f32 to vector<5x64xf32>
    %290 = vector.extract_strided_slice %288 {offsets = [0, 64], sizes = [5, 192], strides = [1, 1]} : vector<5x256xf32> to vector<5x192xf32>
    %291 = tpu.concatenate %290, %289 in 1 : vector<5x192xf32>, vector<5x64xf32> -> vector<5x256xf32>
    %292 = arith.addf %287, %291 : vector<5x256xf32>
    %c0_173 = arith.constant 0 : index
    %c16_174 = arith.constant 16 : index
    %c0_175 = arith.constant 0 : index
    %293 = vector.load %arg12[%c0_173, %c16_174, %c0_175] : memref<1x25x256xf32, #tpu.memory_space<vmem>>, vector<1x5x256xf32>
    %294 = vector.shape_cast %293 : vector<1x5x256xf32> to vector<5x256xf32>
    %295 = vector.shape_cast %292 : vector<5x256xf32> to vector<1x5x256xf32>
    tpu.vector_store %arg12[%c0_173, %c16_174, %c0_175], %295 {strides = array<i32>} : memref<1x25x256xf32, #tpu.memory_space<vmem>>, vector<1x5x256xf32>,
    %c64_176 = arith.constant 64 : index
    %c0_177 = arith.constant 0 : index
    %296 = vector.load %arg14[%c64_176, %c0_177] : memref<264x256xf32, #tpu.memory_space<vmem>>, vector<136x256xf32>
    %c0_178 = arith.constant 0 : index
    %c0_179 = arith.constant 0 : index
    %297 = vector.load %arg6[%c0_178, %c0_179] : memref<51x136xf32, #tpu.memory_space<vmem>>, vector<51x136xf32>
    %cst_180 = arith.constant dense<0.000000e+00> : vector<51x256xf32>
    %298 = tpu.matmul %297, %296, %cst_180 {dimension_numbers = #tpu.dot_dimension_numbers<[1], [0], [0], [1], [0, 0, 1, 1], [], []>} : vector<51x136xf32>, vector<136x256xf32>, vector<51x256xf32> -> vector<51x256xf32>
    %cst_181 = arith.constant 0.000000e+00 : f32
    %299 = vector.broadcast %cst_181 : f32 to vector<3x256xf32>
    %300 = vector.extract_strided_slice %298 {offsets = [0, 0], sizes = [3, 256], strides = [1, 1]} : vector<51x256xf32> to vector<3x256xf32>
    %cst_182 = arith.constant 0.000000e+00 : f32
    %301 = vector.broadcast %cst_182 : f32 to vector<3x128xf32>
    %302 = vector.extract_strided_slice %300 {offsets = [0, 0], sizes = [3, 128], strides = [1, 1]} : vector<3x256xf32> to vector<3x128xf32>
    %303 = tpu.concatenate %301, %302 in 1 : vector<3x128xf32>, vector<3x128xf32> -> vector<3x256xf32>
    %304 = arith.addf %299, %303 : vector<3x256xf32>
    %305 = vector.extract_strided_slice %298 {offsets = [3, 0], sizes = [3, 256], strides = [1, 1]} : vector<51x256xf32> to vector<3x256xf32>
    %cst_183 = arith.constant 0.000000e+00 : f32
    %306 = vector.broadcast %cst_183 : f32 to vector<3x112xf32>
    %307 = vector.extract_strided_slice %305 {offsets = [0, 0], sizes = [3, 144], strides = [1, 1]} : vector<3x256xf32> to vector<3x144xf32>
    %308 = tpu.concatenate %306, %307 in 1 : vector<3x112xf32>, vector<3x144xf32> -> vector<3x256xf32>
    %309 = arith.addf %304, %308 : vector<3x256xf32>
    %310 = vector.extract_strided_slice %298 {offsets = [6, 0], sizes = [3, 256], strides = [1, 1]} : vector<51x256xf32> to vector<3x256xf32>
    %cst_184 = arith.constant 0.000000e+00 : f32
    %311 = vector.broadcast %cst_184 : f32 to vector<3x96xf32>
    %312 = vector.extract_strided_slice %310 {offsets = [0, 0], sizes = [3, 160], strides = [1, 1]} : vector<3x256xf32> to vector<3x160xf32>
    %313 = tpu.concatenate %311, %312 in 1 : vector<3x96xf32>, vector<3x160xf32> -> vector<3x256xf32>
    %314 = arith.addf %309, %313 : vector<3x256xf32>
    %315 = vector.extract_strided_slice %298 {offsets = [9, 0], sizes = [3, 256], strides = [1, 1]} : vector<51x256xf32> to vector<3x256xf32>
    %cst_185 = arith.constant 0.000000e+00 : f32
    %316 = vector.broadcast %cst_185 : f32 to vector<3x80xf32>
    %317 = vector.extract_strided_slice %315 {offsets = [0, 0], sizes = [3, 176], strides = [1, 1]} : vector<3x256xf32> to vector<3x176xf32>
    %318 = tpu.concatenate %316, %317 in 1 : vector<3x80xf32>, vector<3x176xf32> -> vector<3x256xf32>
    %319 = arith.addf %314, %318 : vector<3x256xf32>
    %320 = vector.extract_strided_slice %298 {offsets = [12, 0], sizes = [3, 256], strides = [1, 1]} : vector<51x256xf32> to vector<3x256xf32>
    %cst_186 = arith.constant 0.000000e+00 : f32
    %321 = vector.broadcast %cst_186 : f32 to vector<3x64xf32>
    %322 = vector.extract_strided_slice %320 {offsets = [0, 0], sizes = [3, 192], strides = [1, 1]} : vector<3x256xf32> to vector<3x192xf32>
    %323 = tpu.concatenate %321, %322 in 1 : vector<3x64xf32>, vector<3x192xf32> -> vector<3x256xf32>
    %324 = arith.addf %319, %323 : vector<3x256xf32>
    %325 = vector.extract_strided_slice %298 {offsets = [15, 0], sizes = [3, 256], strides = [1, 1]} : vector<51x256xf32> to vector<3x256xf32>
    %cst_187 = arith.constant 0.000000e+00 : f32
    %326 = vector.broadcast %cst_187 : f32 to vector<3x48xf32>
    %327 = vector.extract_strided_slice %325 {offsets = [0, 0], sizes = [3, 208], strides = [1, 1]} : vector<3x256xf32> to vector<3x208xf32>
    %328 = tpu.concatenate %326, %327 in 1 : vector<3x48xf32>, vector<3x208xf32> -> vector<3x256xf32>
    %329 = arith.addf %324, %328 : vector<3x256xf32>
    %330 = vector.extract_strided_slice %298 {offsets = [18, 0], sizes = [3, 256], strides = [1, 1]} : vector<51x256xf32> to vector<3x256xf32>
    %cst_188 = arith.constant 0.000000e+00 : f32
    %331 = vector.broadcast %cst_188 : f32 to vector<3x32xf32>
    %332 = vector.extract_strided_slice %330 {offsets = [0, 0], sizes = [3, 224], strides = [1, 1]} : vector<3x256xf32> to vector<3x224xf32>
    %333 = tpu.concatenate %331, %332 in 1 : vector<3x32xf32>, vector<3x224xf32> -> vector<3x256xf32>
    %334 = arith.addf %329, %333 : vector<3x256xf32>
    %335 = vector.extract_strided_slice %298 {offsets = [21, 0], sizes = [3, 256], strides = [1, 1]} : vector<51x256xf32> to vector<3x256xf32>
    %cst_189 = arith.constant 0.000000e+00 : f32
    %336 = vector.broadcast %cst_189 : f32 to vector<3x16xf32>
    %337 = vector.extract_strided_slice %335 {offsets = [0, 0], sizes = [3, 240], strides = [1, 1]} : vector<3x256xf32> to vector<3x240xf32>
    %338 = tpu.concatenate %336, %337 in 1 : vector<3x16xf32>, vector<3x240xf32> -> vector<3x256xf32>
    %339 = arith.addf %334, %338 : vector<3x256xf32>
    %340 = vector.extract_strided_slice %298 {offsets = [24, 0], sizes = [3, 256], strides = [1, 1]} : vector<51x256xf32> to vector<3x256xf32>
    %341 = arith.addf %339, %340 : vector<3x256xf32>
    %342 = vector.extract_strided_slice %298 {offsets = [27, 0], sizes = [3, 256], strides = [1, 1]} : vector<51x256xf32> to vector<3x256xf32>
    %cst_190 = arith.constant 0.000000e+00 : f32
    %343 = vector.broadcast %cst_190 : f32 to vector<3x16xf32>
    %344 = vector.extract_strided_slice %342 {offsets = [0, 16], sizes = [3, 240], strides = [1, 1]} : vector<3x256xf32> to vector<3x240xf32>
    %345 = tpu.concatenate %344, %343 in 1 : vector<3x240xf32>, vector<3x16xf32> -> vector<3x256xf32>
    %346 = arith.addf %341, %345 : vector<3x256xf32>
    %347 = vector.extract_strided_slice %298 {offsets = [30, 0], sizes = [3, 256], strides = [1, 1]} : vector<51x256xf32> to vector<3x256xf32>
    %cst_191 = arith.constant 0.000000e+00 : f32
    %348 = vector.broadcast %cst_191 : f32 to vector<3x32xf32>
    %349 = vector.extract_strided_slice %347 {offsets = [0, 32], sizes = [3, 224], strides = [1, 1]} : vector<3x256xf32> to vector<3x224xf32>
    %350 = tpu.concatenate %349, %348 in 1 : vector<3x224xf32>, vector<3x32xf32> -> vector<3x256xf32>
    %351 = arith.addf %346, %350 : vector<3x256xf32>
    %352 = vector.extract_strided_slice %298 {offsets = [33, 0], sizes = [3, 256], strides = [1, 1]} : vector<51x256xf32> to vector<3x256xf32>
    %cst_192 = arith.constant 0.000000e+00 : f32
    %353 = vector.broadcast %cst_192 : f32 to vector<3x48xf32>
    %354 = vector.extract_strided_slice %352 {offsets = [0, 48], sizes = [3, 208], strides = [1, 1]} : vector<3x256xf32> to vector<3x208xf32>
    %355 = tpu.concatenate %354, %353 in 1 : vector<3x208xf32>, vector<3x48xf32> -> vector<3x256xf32>
    %356 = arith.addf %351, %355 : vector<3x256xf32>
    %357 = vector.extract_strided_slice %298 {offsets = [36, 0], sizes = [3, 256], strides = [1, 1]} : vector<51x256xf32> to vector<3x256xf32>
    %cst_193 = arith.constant 0.000000e+00 : f32
    %358 = vector.broadcast %cst_193 : f32 to vector<3x64xf32>
    %359 = vector.extract_strided_slice %357 {offsets = [0, 64], sizes = [3, 192], strides = [1, 1]} : vector<3x256xf32> to vector<3x192xf32>
    %360 = tpu.concatenate %359, %358 in 1 : vector<3x192xf32>, vector<3x64xf32> -> vector<3x256xf32>
    %361 = arith.addf %356, %360 : vector<3x256xf32>
    %362 = vector.extract_strided_slice %298 {offsets = [39, 0], sizes = [3, 256], strides = [1, 1]} : vector<51x256xf32> to vector<3x256xf32>
    %cst_194 = arith.constant 0.000000e+00 : f32
    %363 = vector.broadcast %cst_194 : f32 to vector<3x80xf32>
    %364 = vector.extract_strided_slice %362 {offsets = [0, 80], sizes = [3, 176], strides = [1, 1]} : vector<3x256xf32> to vector<3x176xf32>
    %365 = tpu.concatenate %364, %363 in 1 : vector<3x176xf32>, vector<3x80xf32> -> vector<3x256xf32>
    %366 = arith.addf %361, %365 : vector<3x256xf32>
    %367 = vector.extract_strided_slice %298 {offsets = [42, 0], sizes = [3, 256], strides = [1, 1]} : vector<51x256xf32> to vector<3x256xf32>
    %cst_195 = arith.constant 0.000000e+00 : f32
    %368 = vector.broadcast %cst_195 : f32 to vector<3x96xf32>
    %369 = vector.extract_strided_slice %367 {offsets = [0, 96], sizes = [3, 160], strides = [1, 1]} : vector<3x256xf32> to vector<3x160xf32>
    %370 = tpu.concatenate %369, %368 in 1 : vector<3x160xf32>, vector<3x96xf32> -> vector<3x256xf32>
    %371 = arith.addf %366, %370 : vector<3x256xf32>
    %372 = vector.extract_strided_slice %298 {offsets = [45, 0], sizes = [3, 256], strides = [1, 1]} : vector<51x256xf32> to vector<3x256xf32>
    %cst_196 = arith.constant 0.000000e+00 : f32
    %373 = vector.broadcast %cst_196 : f32 to vector<3x112xf32>
    %374 = vector.extract_strided_slice %372 {offsets = [0, 112], sizes = [3, 144], strides = [1, 1]} : vector<3x256xf32> to vector<3x144xf32>
    %375 = tpu.concatenate %374, %373 in 1 : vector<3x144xf32>, vector<3x112xf32> -> vector<3x256xf32>
    %376 = arith.addf %371, %375 : vector<3x256xf32>
    %377 = vector.extract_strided_slice %298 {offsets = [48, 0], sizes = [3, 256], strides = [1, 1]} : vector<51x256xf32> to vector<3x256xf32>
    %cst_197 = arith.constant 0.000000e+00 : f32
    %378 = vector.broadcast %cst_197 : f32 to vector<3x128xf32>
    %379 = vector.extract_strided_slice %377 {offsets = [0, 128], sizes = [3, 128], strides = [1, 1]} : vector<3x256xf32> to vector<3x128xf32>
    %380 = tpu.concatenate %379, %378 in 1 : vector<3x128xf32>, vector<3x128xf32> -> vector<3x256xf32>
    %381 = arith.addf %376, %380 : vector<3x256xf32>
    %c0_198 = arith.constant 0 : index
    %c21 = arith.constant 21 : index
    %c0_199 = arith.constant 0 : index
    %382 = vector.load %arg12[%c0_198, %c21, %c0_199] : memref<1x25x256xf32, #tpu.memory_space<vmem>>, vector<1x3x256xf32>
    %383 = vector.shape_cast %382 : vector<1x3x256xf32> to vector<3x256xf32>
    %384 = vector.shape_cast %381 : vector<3x256xf32> to vector<1x3x256xf32>
    tpu.vector_store %arg12[%c0_198, %c21, %c0_199], %384 {strides = array<i32>} : memref<1x25x256xf32, #tpu.memory_space<vmem>>, vector<1x3x256xf32>,
    %c0_200 = arith.constant 0 : index
    %c0_201 = arith.constant 0 : index
    %385 = vector.load %arg14[%c0_200, %c0_201] : memref<264x256xf32, #tpu.memory_space<vmem>>, vector<264x256xf32>
    %c0_202 = arith.constant 0 : index
    %c0_203 = arith.constant 0 : index
    %386 = vector.load %arg7[%c0_202, %c0_203] : memref<33x264xf32, #tpu.memory_space<vmem>>, vector<33x264xf32>
    %cst_204 = arith.constant dense<0.000000e+00> : vector<33x256xf32>
    %387 = tpu.matmul %386, %385, %cst_204 {dimension_numbers = #tpu.dot_dimension_numbers<[1], [0], [0], [1], [0, 0, 1, 1], [], []>} : vector<33x264xf32>, vector<264x256xf32>, vector<33x256xf32> -> vector<33x256xf32>
    %cst_205 = arith.constant 0.000000e+00 : f32
    %388 = vector.broadcast %cst_205 : f32 to vector<1x256xf32>
    %389 = vector.extract_strided_slice %387 {offsets = [1, 0], sizes = [1, 256], strides = [1, 1]} : vector<33x256xf32> to vector<1x256xf32>
    %cst_206 = arith.constant 0.000000e+00 : f32
    %390 = vector.broadcast %cst_206 : f32 to vector<1x240xf32>
    %391 = vector.extract_strided_slice %389 {offsets = [0, 0], sizes = [1, 16], strides = [1, 1]} : vector<1x256xf32> to vector<1x16xf32>
    %392 = tpu.concatenate %390, %391 in 1 : vector<1x240xf32>, vector<1x16xf32> -> vector<1x256xf32>
    %393 = arith.addf %388, %392 : vector<1x256xf32>
    %394 = vector.extract_strided_slice %387 {offsets = [2, 0], sizes = [1, 256], strides = [1, 1]} : vector<33x256xf32> to vector<1x256xf32>
    %cst_207 = arith.constant 0.000000e+00 : f32
    %395 = vector.broadcast %cst_207 : f32 to vector<1x224xf32>
    %396 = vector.extract_strided_slice %394 {offsets = [0, 0], sizes = [1, 32], strides = [1, 1]} : vector<1x256xf32> to vector<1x32xf32>
    %397 = tpu.concatenate %395, %396 in 1 : vector<1x224xf32>, vector<1x32xf32> -> vector<1x256xf32>
    %398 = arith.addf %393, %397 : vector<1x256xf32>
    %399 = vector.extract_strided_slice %387 {offsets = [3, 0], sizes = [1, 256], strides = [1, 1]} : vector<33x256xf32> to vector<1x256xf32>
    %cst_208 = arith.constant 0.000000e+00 : f32
    %400 = vector.broadcast %cst_208 : f32 to vector<1x208xf32>
    %401 = vector.extract_strided_slice %399 {offsets = [0, 0], sizes = [1, 48], strides = [1, 1]} : vector<1x256xf32> to vector<1x48xf32>
    %402 = tpu.concatenate %400, %401 in 1 : vector<1x208xf32>, vector<1x48xf32> -> vector<1x256xf32>
    %403 = arith.addf %398, %402 : vector<1x256xf32>
    %404 = vector.extract_strided_slice %387 {offsets = [4, 0], sizes = [1, 256], strides = [1, 1]} : vector<33x256xf32> to vector<1x256xf32>
    %cst_209 = arith.constant 0.000000e+00 : f32
    %405 = vector.broadcast %cst_209 : f32 to vector<1x192xf32>
    %406 = vector.extract_strided_slice %404 {offsets = [0, 0], sizes = [1, 64], strides = [1, 1]} : vector<1x256xf32> to vector<1x64xf32>
    %407 = tpu.concatenate %405, %406 in 1 : vector<1x192xf32>, vector<1x64xf32> -> vector<1x256xf32>
    %408 = arith.addf %403, %407 : vector<1x256xf32>
    %409 = vector.extract_strided_slice %387 {offsets = [5, 0], sizes = [1, 256], strides = [1, 1]} : vector<33x256xf32> to vector<1x256xf32>
    %cst_210 = arith.constant 0.000000e+00 : f32
    %410 = vector.broadcast %cst_210 : f32 to vector<1x176xf32>
    %411 = vector.extract_strided_slice %409 {offsets = [0, 0], sizes = [1, 80], strides = [1, 1]} : vector<1x256xf32> to vector<1x80xf32>
    %412 = tpu.concatenate %410, %411 in 1 : vector<1x176xf32>, vector<1x80xf32> -> vector<1x256xf32>
    %413 = arith.addf %408, %412 : vector<1x256xf32>
    %414 = vector.extract_strided_slice %387 {offsets = [6, 0], sizes = [1, 256], strides = [1, 1]} : vector<33x256xf32> to vector<1x256xf32>
    %cst_211 = arith.constant 0.000000e+00 : f32
    %415 = vector.broadcast %cst_211 : f32 to vector<1x160xf32>
    %416 = vector.extract_strided_slice %414 {offsets = [0, 0], sizes = [1, 96], strides = [1, 1]} : vector<1x256xf32> to vector<1x96xf32>
    %417 = tpu.concatenate %415, %416 in 1 : vector<1x160xf32>, vector<1x96xf32> -> vector<1x256xf32>
    %418 = arith.addf %413, %417 : vector<1x256xf32>
    %419 = vector.extract_strided_slice %387 {offsets = [7, 0], sizes = [1, 256], strides = [1, 1]} : vector<33x256xf32> to vector<1x256xf32>
    %cst_212 = arith.constant 0.000000e+00 : f32
    %420 = vector.broadcast %cst_212 : f32 to vector<1x144xf32>
    %421 = vector.extract_strided_slice %419 {offsets = [0, 0], sizes = [1, 112], strides = [1, 1]} : vector<1x256xf32> to vector<1x112xf32>
    %422 = tpu.concatenate %420, %421 in 1 : vector<1x144xf32>, vector<1x112xf32> -> vector<1x256xf32>
    %423 = arith.addf %418, %422 : vector<1x256xf32>
    %424 = vector.extract_strided_slice %387 {offsets = [8, 0], sizes = [1, 256], strides = [1, 1]} : vector<33x256xf32> to vector<1x256xf32>
    %cst_213 = arith.constant 0.000000e+00 : f32
    %425 = vector.broadcast %cst_213 : f32 to vector<1x128xf32>
    %426 = vector.extract_strided_slice %424 {offsets = [0, 0], sizes = [1, 128], strides = [1, 1]} : vector<1x256xf32> to vector<1x128xf32>
    %427 = tpu.concatenate %425, %426 in 1 : vector<1x128xf32>, vector<1x128xf32> -> vector<1x256xf32>
    %428 = arith.addf %423, %427 : vector<1x256xf32>
    %429 = vector.extract_strided_slice %387 {offsets = [9, 0], sizes = [1, 256], strides = [1, 1]} : vector<33x256xf32> to vector<1x256xf32>
    %cst_214 = arith.constant 0.000000e+00 : f32
    %430 = vector.broadcast %cst_214 : f32 to vector<1x112xf32>
    %431 = vector.extract_strided_slice %429 {offsets = [0, 0], sizes = [1, 144], strides = [1, 1]} : vector<1x256xf32> to vector<1x144xf32>
    %432 = tpu.concatenate %430, %431 in 1 : vector<1x112xf32>, vector<1x144xf32> -> vector<1x256xf32>
    %433 = arith.addf %428, %432 : vector<1x256xf32>
    %434 = vector.extract_strided_slice %387 {offsets = [10, 0], sizes = [1, 256], strides = [1, 1]} : vector<33x256xf32> to vector<1x256xf32>
    %cst_215 = arith.constant 0.000000e+00 : f32
    %435 = vector.broadcast %cst_215 : f32 to vector<1x96xf32>
    %436 = vector.extract_strided_slice %434 {offsets = [0, 0], sizes = [1, 160], strides = [1, 1]} : vector<1x256xf32> to vector<1x160xf32>
    %437 = tpu.concatenate %435, %436 in 1 : vector<1x96xf32>, vector<1x160xf32> -> vector<1x256xf32>
    %438 = arith.addf %433, %437 : vector<1x256xf32>
    %439 = vector.extract_strided_slice %387 {offsets = [11, 0], sizes = [1, 256], strides = [1, 1]} : vector<33x256xf32> to vector<1x256xf32>
    %cst_216 = arith.constant 0.000000e+00 : f32
    %440 = vector.broadcast %cst_216 : f32 to vector<1x80xf32>
    %441 = vector.extract_strided_slice %439 {offsets = [0, 0], sizes = [1, 176], strides = [1, 1]} : vector<1x256xf32> to vector<1x176xf32>
    %442 = tpu.concatenate %440, %441 in 1 : vector<1x80xf32>, vector<1x176xf32> -> vector<1x256xf32>
    %443 = arith.addf %438, %442 : vector<1x256xf32>
    %444 = vector.extract_strided_slice %387 {offsets = [12, 0], sizes = [1, 256], strides = [1, 1]} : vector<33x256xf32> to vector<1x256xf32>
    %cst_217 = arith.constant 0.000000e+00 : f32
    %445 = vector.broadcast %cst_217 : f32 to vector<1x64xf32>
    %446 = vector.extract_strided_slice %444 {offsets = [0, 0], sizes = [1, 192], strides = [1, 1]} : vector<1x256xf32> to vector<1x192xf32>
    %447 = tpu.concatenate %445, %446 in 1 : vector<1x64xf32>, vector<1x192xf32> -> vector<1x256xf32>
    %448 = arith.addf %443, %447 : vector<1x256xf32>
    %449 = vector.extract_strided_slice %387 {offsets = [13, 0], sizes = [1, 256], strides = [1, 1]} : vector<33x256xf32> to vector<1x256xf32>
    %cst_218 = arith.constant 0.000000e+00 : f32
    %450 = vector.broadcast %cst_218 : f32 to vector<1x48xf32>
    %451 = vector.extract_strided_slice %449 {offsets = [0, 0], sizes = [1, 208], strides = [1, 1]} : vector<1x256xf32> to vector<1x208xf32>
    %452 = tpu.concatenate %450, %451 in 1 : vector<1x48xf32>, vector<1x208xf32> -> vector<1x256xf32>
    %453 = arith.addf %448, %452 : vector<1x256xf32>
    %454 = vector.extract_strided_slice %387 {offsets = [14, 0], sizes = [1, 256], strides = [1, 1]} : vector<33x256xf32> to vector<1x256xf32>
    %cst_219 = arith.constant 0.000000e+00 : f32
    %455 = vector.broadcast %cst_219 : f32 to vector<1x32xf32>
    %456 = vector.extract_strided_slice %454 {offsets = [0, 0], sizes = [1, 224], strides = [1, 1]} : vector<1x256xf32> to vector<1x224xf32>
    %457 = tpu.concatenate %455, %456 in 1 : vector<1x32xf32>, vector<1x224xf32> -> vector<1x256xf32>
    %458 = arith.addf %453, %457 : vector<1x256xf32>
    %459 = vector.extract_strided_slice %387 {offsets = [15, 0], sizes = [1, 256], strides = [1, 1]} : vector<33x256xf32> to vector<1x256xf32>
    %cst_220 = arith.constant 0.000000e+00 : f32
    %460 = vector.broadcast %cst_220 : f32 to vector<1x16xf32>
    %461 = vector.extract_strided_slice %459 {offsets = [0, 0], sizes = [1, 240], strides = [1, 1]} : vector<1x256xf32> to vector<1x240xf32>
    %462 = tpu.concatenate %460, %461 in 1 : vector<1x16xf32>, vector<1x240xf32> -> vector<1x256xf32>
    %463 = arith.addf %458, %462 : vector<1x256xf32>
    %464 = vector.extract_strided_slice %387 {offsets = [16, 0], sizes = [1, 256], strides = [1, 1]} : vector<33x256xf32> to vector<1x256xf32>
    %465 = arith.addf %463, %464 : vector<1x256xf32>
    %466 = vector.extract_strided_slice %387 {offsets = [17, 0], sizes = [1, 256], strides = [1, 1]} : vector<33x256xf32> to vector<1x256xf32>
    %cst_221 = arith.constant 0.000000e+00 : f32
    %467 = vector.broadcast %cst_221 : f32 to vector<1x16xf32>
    %468 = vector.extract_strided_slice %466 {offsets = [0, 16], sizes = [1, 240], strides = [1, 1]} : vector<1x256xf32> to vector<1x240xf32>
    %469 = tpu.concatenate %468, %467 in 1 : vector<1x240xf32>, vector<1x16xf32> -> vector<1x256xf32>
    %470 = arith.addf %465, %469 : vector<1x256xf32>
    %471 = vector.extract_strided_slice %387 {offsets = [18, 0], sizes = [1, 256], strides = [1, 1]} : vector<33x256xf32> to vector<1x256xf32>
    %cst_222 = arith.constant 0.000000e+00 : f32
    %472 = vector.broadcast %cst_222 : f32 to vector<1x32xf32>
    %473 = vector.extract_strided_slice %471 {offsets = [0, 32], sizes = [1, 224], strides = [1, 1]} : vector<1x256xf32> to vector<1x224xf32>
    %474 = tpu.concatenate %473, %472 in 1 : vector<1x224xf32>, vector<1x32xf32> -> vector<1x256xf32>
    %475 = arith.addf %470, %474 : vector<1x256xf32>
    %476 = vector.extract_strided_slice %387 {offsets = [19, 0], sizes = [1, 256], strides = [1, 1]} : vector<33x256xf32> to vector<1x256xf32>
    %cst_223 = arith.constant 0.000000e+00 : f32
    %477 = vector.broadcast %cst_223 : f32 to vector<1x48xf32>
    %478 = vector.extract_strided_slice %476 {offsets = [0, 48], sizes = [1, 208], strides = [1, 1]} : vector<1x256xf32> to vector<1x208xf32>
    %479 = tpu.concatenate %478, %477 in 1 : vector<1x208xf32>, vector<1x48xf32> -> vector<1x256xf32>
    %480 = arith.addf %475, %479 : vector<1x256xf32>
    %481 = vector.extract_strided_slice %387 {offsets = [20, 0], sizes = [1, 256], strides = [1, 1]} : vector<33x256xf32> to vector<1x256xf32>
    %cst_224 = arith.constant 0.000000e+00 : f32
    %482 = vector.broadcast %cst_224 : f32 to vector<1x64xf32>
    %483 = vector.extract_strided_slice %481 {offsets = [0, 64], sizes = [1, 192], strides = [1, 1]} : vector<1x256xf32> to vector<1x192xf32>
    %484 = tpu.concatenate %483, %482 in 1 : vector<1x192xf32>, vector<1x64xf32> -> vector<1x256xf32>
    %485 = arith.addf %480, %484 : vector<1x256xf32>
    %486 = vector.extract_strided_slice %387 {offsets = [21, 0], sizes = [1, 256], strides = [1, 1]} : vector<33x256xf32> to vector<1x256xf32>
    %cst_225 = arith.constant 0.000000e+00 : f32
    %487 = vector.broadcast %cst_225 : f32 to vector<1x80xf32>
    %488 = vector.extract_strided_slice %486 {offsets = [0, 80], sizes = [1, 176], strides = [1, 1]} : vector<1x256xf32> to vector<1x176xf32>
    %489 = tpu.concatenate %488, %487 in 1 : vector<1x176xf32>, vector<1x80xf32> -> vector<1x256xf32>
    %490 = arith.addf %485, %489 : vector<1x256xf32>
    %491 = vector.extract_strided_slice %387 {offsets = [22, 0], sizes = [1, 256], strides = [1, 1]} : vector<33x256xf32> to vector<1x256xf32>
    %cst_226 = arith.constant 0.000000e+00 : f32
    %492 = vector.broadcast %cst_226 : f32 to vector<1x96xf32>
    %493 = vector.extract_strided_slice %491 {offsets = [0, 96], sizes = [1, 160], strides = [1, 1]} : vector<1x256xf32> to vector<1x160xf32>
    %494 = tpu.concatenate %493, %492 in 1 : vector<1x160xf32>, vector<1x96xf32> -> vector<1x256xf32>
    %495 = arith.addf %490, %494 : vector<1x256xf32>
    %496 = vector.extract_strided_slice %387 {offsets = [23, 0], sizes = [1, 256], strides = [1, 1]} : vector<33x256xf32> to vector<1x256xf32>
    %cst_227 = arith.constant 0.000000e+00 : f32
    %497 = vector.broadcast %cst_227 : f32 to vector<1x112xf32>
    %498 = vector.extract_strided_slice %496 {offsets = [0, 112], sizes = [1, 144], strides = [1, 1]} : vector<1x256xf32> to vector<1x144xf32>
    %499 = tpu.concatenate %498, %497 in 1 : vector<1x144xf32>, vector<1x112xf32> -> vector<1x256xf32>
    %500 = arith.addf %495, %499 : vector<1x256xf32>
    %501 = vector.extract_strided_slice %387 {offsets = [24, 0], sizes = [1, 256], strides = [1, 1]} : vector<33x256xf32> to vector<1x256xf32>
    %cst_228 = arith.constant 0.000000e+00 : f32
    %502 = vector.broadcast %cst_228 : f32 to vector<1x128xf32>
    %503 = vector.extract_strided_slice %501 {offsets = [0, 128], sizes = [1, 128], strides = [1, 1]} : vector<1x256xf32> to vector<1x128xf32>
    %504 = tpu.concatenate %503, %502 in 1 : vector<1x128xf32>, vector<1x128xf32> -> vector<1x256xf32>
    %505 = arith.addf %500, %504 : vector<1x256xf32>
    %506 = vector.extract_strided_slice %387 {offsets = [25, 0], sizes = [1, 256], strides = [1, 1]} : vector<33x256xf32> to vector<1x256xf32>
    %cst_229 = arith.constant 0.000000e+00 : f32
    %507 = vector.broadcast %cst_229 : f32 to vector<1x144xf32>
    %508 = vector.extract_strided_slice %506 {offsets = [0, 144], sizes = [1, 112], strides = [1, 1]} : vector<1x256xf32> to vector<1x112xf32>
    %509 = tpu.concatenate %508, %507 in 1 : vector<1x112xf32>, vector<1x144xf32> -> vector<1x256xf32>
    %510 = arith.addf %505, %509 : vector<1x256xf32>
    %511 = vector.extract_strided_slice %387 {offsets = [26, 0], sizes = [1, 256], strides = [1, 1]} : vector<33x256xf32> to vector<1x256xf32>
    %cst_230 = arith.constant 0.000000e+00 : f32
    %512 = vector.broadcast %cst_230 : f32 to vector<1x160xf32>
    %513 = vector.extract_strided_slice %511 {offsets = [0, 160], sizes = [1, 96], strides = [1, 1]} : vector<1x256xf32> to vector<1x96xf32>
    %514 = tpu.concatenate %513, %512 in 1 : vector<1x96xf32>, vector<1x160xf32> -> vector<1x256xf32>
    %515 = arith.addf %510, %514 : vector<1x256xf32>
    %516 = vector.extract_strided_slice %387 {offsets = [27, 0], sizes = [1, 256], strides = [1, 1]} : vector<33x256xf32> to vector<1x256xf32>
    %cst_231 = arith.constant 0.000000e+00 : f32
    %517 = vector.broadcast %cst_231 : f32 to vector<1x176xf32>
    %518 = vector.extract_strided_slice %516 {offsets = [0, 176], sizes = [1, 80], strides = [1, 1]} : vector<1x256xf32> to vector<1x80xf32>
    %519 = tpu.concatenate %518, %517 in 1 : vector<1x80xf32>, vector<1x176xf32> -> vector<1x256xf32>
    %520 = arith.addf %515, %519 : vector<1x256xf32>
    %521 = vector.extract_strided_slice %387 {offsets = [28, 0], sizes = [1, 256], strides = [1, 1]} : vector<33x256xf32> to vector<1x256xf32>
    %cst_232 = arith.constant 0.000000e+00 : f32
    %522 = vector.broadcast %cst_232 : f32 to vector<1x192xf32>
    %523 = vector.extract_strided_slice %521 {offsets = [0, 192], sizes = [1, 64], strides = [1, 1]} : vector<1x256xf32> to vector<1x64xf32>
    %524 = tpu.concatenate %523, %522 in 1 : vector<1x64xf32>, vector<1x192xf32> -> vector<1x256xf32>
    %525 = arith.addf %520, %524 : vector<1x256xf32>
    %526 = vector.extract_strided_slice %387 {offsets = [29, 0], sizes = [1, 256], strides = [1, 1]} : vector<33x256xf32> to vector<1x256xf32>
    %cst_233 = arith.constant 0.000000e+00 : f32
    %527 = vector.broadcast %cst_233 : f32 to vector<1x208xf32>
    %528 = vector.extract_strided_slice %526 {offsets = [0, 208], sizes = [1, 48], strides = [1, 1]} : vector<1x256xf32> to vector<1x48xf32>
    %529 = tpu.concatenate %528, %527 in 1 : vector<1x48xf32>, vector<1x208xf32> -> vector<1x256xf32>
    %530 = arith.addf %525, %529 : vector<1x256xf32>
    %531 = vector.extract_strided_slice %387 {offsets = [30, 0], sizes = [1, 256], strides = [1, 1]} : vector<33x256xf32> to vector<1x256xf32>
    %cst_234 = arith.constant 0.000000e+00 : f32
    %532 = vector.broadcast %cst_234 : f32 to vector<1x224xf32>
    %533 = vector.extract_strided_slice %531 {offsets = [0, 224], sizes = [1, 32], strides = [1, 1]} : vector<1x256xf32> to vector<1x32xf32>
    %534 = tpu.concatenate %533, %532 in 1 : vector<1x32xf32>, vector<1x224xf32> -> vector<1x256xf32>
    %535 = arith.addf %530, %534 : vector<1x256xf32>
    %536 = vector.extract_strided_slice %387 {offsets = [31, 0], sizes = [1, 256], strides = [1, 1]} : vector<33x256xf32> to vector<1x256xf32>
    %cst_235 = arith.constant 0.000000e+00 : f32
    %537 = vector.broadcast %cst_235 : f32 to vector<1x240xf32>
    %538 = vector.extract_strided_slice %536 {offsets = [0, 240], sizes = [1, 16], strides = [1, 1]} : vector<1x256xf32> to vector<1x16xf32>
    %539 = tpu.concatenate %538, %537 in 1 : vector<1x16xf32>, vector<1x240xf32> -> vector<1x256xf32>
    %540 = arith.addf %535, %539 : vector<1x256xf32>
    %c0_236 = arith.constant 0 : index
    %c24_237 = arith.constant 24 : index
    %c0_238 = arith.constant 0 : index
    %541 = vector.load %arg12[%c0_236, %c24_237, %c0_238] : memref<1x25x256xf32, #tpu.memory_space<vmem>>, vector<1x1x256xf32>
    %542 = vector.shape_cast %541 : vector<1x1x256xf32> to vector<1x256xf32>
    %543 = vector.shape_cast %540 : vector<1x256xf32> to vector<1x1x256xf32>
    tpu.vector_store %arg12[%c0_236, %c24_237, %c0_238], %543 {strides = array<i32>} : memref<1x25x256xf32, #tpu.memory_space<vmem>>, vector<1x1x256xf32>,
    %c0_i32 = arith.constant 0 : i32
    %544 = arith.cmpi eq, %arg0, %c0_i32 : i32
    %545 = arith.extui %544 : i1 to i32
    %c0_i32_239 = arith.constant 0 : i32
    %546 = arith.cmpi ne, %545, %c0_i32_239 : i32
    scf.if %546 {
      %c0_240 = arith.constant 0 : index
      %c0_241 = arith.constant 0 : index
      %547 = vector.load %arg8[%c0_240, %c0_241] : memref<5x25xf32, #tpu.memory_space<vmem>>, vector<5x25xf32>
      %cst_242 = arith.constant 0.000000e+00 : f32
      %548 = vector.broadcast %cst_242 : f32 to vector<5x256xf32>
      %549 = vector.extract_strided_slice %547 {offsets = [0, 0], sizes = [5, 9], strides = [1, 1]} : vector<5x25xf32> to vector<5x9xf32>
      %cst_243 = arith.constant dense<0.000000e+00> : vector<5x256xf32>
      %550 = tpu.matmul %549, %214, %cst_243 {dimension_numbers = #tpu.dot_dimension_numbers<[1], [0], [0], [1], [0, 0, 1, 1], [], []>} : vector<5x9xf32>, vector<9x256xf32>, vector<5x256xf32> -> vector<5x256xf32>
      %551 = arith.addf %548, %550 : vector<5x256xf32>
      %552 = vector.extract_strided_slice %547 {offsets = [0, 9], sizes = [5, 7], strides = [1, 1]} : vector<5x25xf32> to vector<5x7xf32>
      %cst_244 = arith.constant dense<0.000000e+00> : vector<5x256xf32>
      %553 = tpu.matmul %552, %243, %cst_244 {dimension_numbers = #tpu.dot_dimension_numbers<[1], [0], [0], [1], [0, 0, 1, 1], [], []>} : vector<5x7xf32>, vector<7x256xf32>, vector<5x256xf32> -> vector<5x256xf32>
      %554 = arith.addf %551, %553 : vector<5x256xf32>
      %555 = vector.extract_strided_slice %547 {offsets = [0, 16], sizes = [5, 5], strides = [1, 1]} : vector<5x25xf32> to vector<5x5xf32>
      %cst_245 = arith.constant dense<0.000000e+00> : vector<5x256xf32>
      %556 = tpu.matmul %555, %292, %cst_245 {dimension_numbers = #tpu.dot_dimension_numbers<[1], [0], [0], [1], [0, 0, 1, 1], [], []>} : vector<5x5xf32>, vector<5x256xf32>, vector<5x256xf32> -> vector<5x256xf32>
      %557 = arith.addf %554, %556 : vector<5x256xf32>
      %558 = vector.extract_strided_slice %547 {offsets = [0, 21], sizes = [5, 3], strides = [1, 1]} : vector<5x25xf32> to vector<5x3xf32>
      %cst_246 = arith.constant dense<0.000000e+00> : vector<5x256xf32>
      %559 = tpu.matmul %558, %381, %cst_246 {dimension_numbers = #tpu.dot_dimension_numbers<[1], [0], [0], [1], [0, 0, 1, 1], [], []>} : vector<5x3xf32>, vector<3x256xf32>, vector<5x256xf32> -> vector<5x256xf32>
      %560 = arith.addf %557, %559 : vector<5x256xf32>
      %561 = vector.extract_strided_slice %547 {offsets = [0, 24], sizes = [5, 1], strides = [1, 1]} : vector<5x25xf32> to vector<5x1xf32>
      %cst_247 = arith.constant dense<0.000000e+00> : vector<5x256xf32>
      %562 = tpu.matmul %561, %540, %cst_247 {dimension_numbers = #tpu.dot_dimension_numbers<[1], [0], [0], [1], [0, 0, 1, 1], [], []>} : vector<5x1xf32>, vector<1x256xf32>, vector<5x256xf32> -> vector<5x256xf32>
      %563 = arith.addf %560, %562 : vector<5x256xf32>
      %cst_248 = arith.constant dense<0.000000e+00> : vector<5xf32>
      %564 = vector.multi_reduction <add>, %563, %cst_248 [1] : vector<5x256xf32> to vector<5xf32>
      %565 = vector.shape_cast %564 : vector<5xf32> to vector<5x1xf32>
      %cst_249 = arith.constant 2.560000e+02 : f32
      %566 = vector.broadcast %cst_249 : f32 to vector<5x1xf32>
      %567 = arith.divf %565, %566 : vector<5x1xf32>
      %cst_250 = arith.constant dense<0xFF800000> : vector<5xf32>
      %568 = vector.multi_reduction <maximumf>, %563, %cst_250 [1] : vector<5x256xf32> to vector<5xf32>
      %569 = vector.shape_cast %568 : vector<5xf32> to vector<5x1xf32>
      %c0_251 = arith.constant 0 : index
      %c0_252 = arith.constant 0 : index
      %570 = vector.load %arg9[%c0_251, %c0_252] : memref<2x5xf32, #tpu.memory_space<vmem>>, vector<2x5xf32>
      %cst_253 = arith.constant dense<0.000000e+00> : vector<2x1xf32>
      %571 = tpu.matmul %570, %567, %cst_253 {dimension_numbers = #tpu.dot_dimension_numbers<[1], [0], [0], [1], [0, 0, 1, 1], [], []>} : vector<2x5xf32>, vector<5x1xf32>, vector<2x1xf32> -> vector<2x1xf32>
      %cst_254 = arith.constant 0.000000e+00 : f32
      %572 = vector.broadcast %cst_254 : f32 to vector<2x1xf32>
      %573 = arith.maximumf %571, %572 : vector<2x1xf32>
      %c0_255 = arith.constant 0 : index
      %c0_256 = arith.constant 0 : index
      %574 = vector.load %arg10[%c0_255, %c0_256] : memref<5x2xf32, #tpu.memory_space<vmem>>, vector<5x2xf32>
      %cst_257 = arith.constant dense<0.000000e+00> : vector<5x1xf32>
      %575 = tpu.matmul %574, %573, %cst_257 {dimension_numbers = #tpu.dot_dimension_numbers<[1], [0], [0], [1], [0, 0, 1, 1], [], []>} : vector<5x2xf32>, vector<2x1xf32>, vector<5x1xf32> -> vector<5x1xf32>
      %c0_258 = arith.constant 0 : index
      %c0_259 = arith.constant 0 : index
      %576 = vector.load %arg9[%c0_258, %c0_259] : memref<2x5xf32, #tpu.memory_space<vmem>>, vector<2x5xf32>
      %cst_260 = arith.constant dense<0.000000e+00> : vector<2x1xf32>
      %577 = tpu.matmul %576, %569, %cst_260 {dimension_numbers = #tpu.dot_dimension_numbers<[1], [0], [0], [1], [0, 0, 1, 1], [], []>} : vector<2x5xf32>, vector<5x1xf32>, vector<2x1xf32> -> vector<2x1xf32>
      %cst_261 = arith.constant 0.000000e+00 : f32
      %578 = vector.broadcast %cst_261 : f32 to vector<2x1xf32>
      %579 = arith.maximumf %577, %578 : vector<2x1xf32>
      %c0_262 = arith.constant 0 : index
      %c0_263 = arith.constant 0 : index
      %580 = vector.load %arg10[%c0_262, %c0_263] : memref<5x2xf32, #tpu.memory_space<vmem>>, vector<5x2xf32>
      %cst_264 = arith.constant dense<0.000000e+00> : vector<5x1xf32>
      %581 = tpu.matmul %580, %579, %cst_264 {dimension_numbers = #tpu.dot_dimension_numbers<[1], [0], [0], [1], [0, 0, 1, 1], [], []>} : vector<5x2xf32>, vector<2x1xf32>, vector<5x1xf32> -> vector<5x1xf32>
      %582 = arith.addf %575, %581 : vector<5x1xf32>
      %583 = arith.negf %582 : vector<5x1xf32>
      %584 = math.exp %583 : vector<5x1xf32>
      %cst_265 = arith.constant 1.000000e+00 : f32
      %585 = vector.broadcast %cst_265 : f32 to vector<5x1xf32>
      %586 = arith.addf %585, %584 : vector<5x1xf32>
      %587 = arith.divf %585, %586 : vector<5x1xf32>
      %c0_266 = arith.constant 0 : index
      %c0_267 = arith.constant 0 : index
      %c0_268 = arith.constant 0 : index
      %588 = vector.load %arg13[%c0_266, %c0_267, %c0_268] : memref<1x5x1xf32, #tpu.memory_space<vmem>>, vector<1x5x1xf32>
      %589 = vector.shape_cast %588 : vector<1x5x1xf32> to vector<5x1xf32>
      %590 = vector.shape_cast %587 : vector<5x1xf32> to vector<1x5x1xf32>
      tpu.vector_store %arg13[%c0_266, %c0_267, %c0_268], %590 {strides = array<i32>} : memref<1x5x1xf32, #tpu.memory_space<vmem>>, vector<1x5x1xf32>,
    } else {
    }
    return
  }
  func.func @transform_0(%arg0: i32) -> (i32, i32, i32) {
    %c0_i32 = arith.constant 0 : i32
    %c0_i32_0 = arith.constant 0 : i32
    %c0_i32_1 = arith.constant 0 : i32
    return %arg0, %c0_i32, %c0_i32_0 : i32, i32, i32
  }
  func.func @transform_1(%arg0: i32) -> (i32, i32) {
    %c0_i32 = arith.constant 0 : i32
    %c0_i32_0 = arith.constant 0 : i32
    %c0_i32_1 = arith.constant 0 : i32
    return %c0_i32, %c0_i32_0 : i32, i32
  }
  func.func @transform_2(%arg0: i32) -> (i32, i32) {
    %c0_i32 = arith.constant 0 : i32
    %c0_i32_0 = arith.constant 0 : i32
    %c0_i32_1 = arith.constant 0 : i32
    return %c0_i32, %c0_i32_0 : i32, i32
  }
  func.func @transform_3(%arg0: i32) -> (i32, i32) {
    %c0_i32 = arith.constant 0 : i32
    %c0_i32_0 = arith.constant 0 : i32
    %c0_i32_1 = arith.constant 0 : i32
    return %c0_i32, %c0_i32_0 : i32, i32
  }
  func.func @transform_4(%arg0: i32) -> (i32, i32) {
    %c0_i32 = arith.constant 0 : i32
    %c0_i32_0 = arith.constant 0 : i32
    %c0_i32_1 = arith.constant 0 : i32
    return %c0_i32, %c0_i32_0 : i32, i32
  }
  func.func @transform_5(%arg0: i32) -> (i32, i32) {
    %c0_i32 = arith.constant 0 : i32
    %c0_i32_0 = arith.constant 0 : i32
    %c0_i32_1 = arith.constant 0 : i32
    return %c0_i32, %c0_i32_0 : i32, i32
  }
  func.func @transform_6(%arg0: i32) -> (i32, i32) {
    %c0_i32 = arith.constant 0 : i32
    %c0_i32_0 = arith.constant 0 : i32
    %c0_i32_1 = arith.constant 0 : i32
    return %c0_i32, %c0_i32_0 : i32, i32
  }
  func.func @transform_7(%arg0: i32) -> (i32, i32) {
    %c0_i32 = arith.constant 0 : i32
    %c0_i32_0 = arith.constant 0 : i32
    %c0_i32_1 = arith.constant 0 : i32
    return %c0_i32, %c0_i32_0 : i32, i32
  }
  func.func @transform_8(%arg0: i32) -> (i32, i32) {
    %c0_i32 = arith.constant 0 : i32
    %c0_i32_0 = arith.constant 0 : i32
    %c0_i32_1 = arith.constant 0 : i32
    return %c0_i32, %c0_i32_0 : i32, i32
  }
  func.func @transform_9(%arg0: i32) -> (i32, i32) {
    %c0_i32 = arith.constant 0 : i32
    %c0_i32_0 = arith.constant 0 : i32
    %c0_i32_1 = arith.constant 0 : i32
    return %c0_i32, %c0_i32_0 : i32, i32
  }
  func.func @transform_10(%arg0: i32) -> (i32, i32) {
    %c0_i32 = arith.constant 0 : i32
    %c0_i32_0 = arith.constant 0 : i32
    %c0_i32_1 = arith.constant 0 : i32
    return %c0_i32, %c0_i32_0 : i32, i32
  }
  func.func @transform_11(%arg0: i32) -> (i32, i32, i32) {
    %c0_i32 = arith.constant 0 : i32
    %c0_i32_0 = arith.constant 0 : i32
    %c0_i32_1 = arith.constant 0 : i32
    return %arg0, %c0_i32, %c0_i32_0 : i32, i32, i32
  }
  func.func @transform_12(%arg0: i32) -> (i32, i32, i32) {
    %c0_i32 = arith.constant 0 : i32
    %c0_i32_0 = arith.constant 0 : i32
    %c0_i32_1 = arith.constant 0 : i32
    return %arg0, %c0_i32, %c0_i32_0 : i32, i32, i32
  }
}

</mosaic_0001>

<llo_original>
// kernel: adaptive_receptive_field.3
$region0: #{adaptive_receptive_field.3}
  #allocation0 [shape = 'u32[]', space=smem, size = 0x4, offset = 0x4, fixed_abs, tag = 'smem constant byte address 0x4 - core index']
  #allocation1 [shape = 'u32[72,128]{1,0:T(1,128)}', space=vmem, size = 0x9000, scoped, tag = 'internal scratch']
  %s0 = inlined_call_operand.vmem [shape: f32[2,25,256], index: 0, kind: input, shape index: {}]
  %s1 = inlined_call_operand.vmem [shape: f32[2,5,1], index: 1, kind: input, shape index: {}]
  %s2 = inlined_call_operand.vmem [shape: f32[25,5], index: 2, kind: input, shape index: {}]
  %s3 = inlined_call_operand.vmem [shape: f32[2,25,256], index: 3, kind: output, shape index: {}]
  %s4 = sld [smem:[#allocation0]]
  $region45: #{adaptive_receptive_field.3} parent=0
    _
  %s6 = ssub.s32 1, %s4
  %s7 = scalar_select 0, %s6, %s4
  loop: start=0, step=1, limit=4
  $region2: #{adaptive_receptive_field.3} parent=0 // loop_pre_header
    _
  $region3: #{adaptive_receptive_field.3} parent=0 // loop_header
    %s9 = sphi 0, %s13
    %p10 = scmp.ge.s32.totalorder %s9, 4
    %s19 = sphi 0, %s21
    %s22 = sphi 0, %s19
    %s23 = sphi 0, %s22
    %s39 = sphi 0, %s23
    %s43 = sphi 0, %s43
    %s45 = sphi 0, %s43
    %s46 = sphi 0, %s45
    %s60 = sphi 0, %s46
    %s64 = sphi 0, %s64
    %s66 = sphi 0, %s64
    %s67 = sphi 0, %s66
    %s81 = sphi 0, %s67
    %s87 = sphi 0, %s89
    %s90 = sphi 0, %s87
    %s91 = sphi 0, %s90
    %s107 = sphi 0, %s91
  $region4: #{adaptive_receptive_field.3} parent=0 // loop_header_branch
    %12 = sbr.rel (%p10) target = $region8
  $region5: #{adaptive_receptive_field.3} parent=0 // loop_body
    %s14 = ssub.s32 %s9, 1
    %s15 = ssub.s32 %s9, 2
    %s16 = sadd.s32 %s9, 1
    %s17 = ssub.s32 %s9, %s16
    %p18 = scmp.eq.s32.totalorder %s17, 0
    %s20 = sadd.s32 %s19, 1
    %s21 = scalar_select %p18, %s19, %s20
    %p24 = pneg %p18
    %p25 = scmp.eq.s32.totalorder %s9, 1
    %p26 = por %p24, %p25
    %p27 = scmp.ne.s32.totalorder %s19, %s22
    %p28 = scmp.eq.s32.totalorder %s9, 0
    %p29 = por %p27, %p28
    %p30 = scmp.ne.s32.totalorder %s19, %s22
    %p31 = scmp.eq.s32.totalorder %s14, 1
    %p32 = por %p30, %p31
    %p33 = scmp.ne.s32.totalorder %s22, %s23
    %p34 = scmp.eq.s32.totalorder %s14, 0
    %p35 = por %p33, %p34
    %p36 = scmp.ne.s32.totalorder %s22, %s23
    %p37 = scmp.eq.s32.totalorder %s15, 1
    %p38 = por %p36, %p37
    %p40 = scmp.ne.s32.totalorder %s23, %s39
    %p41 = scmp.eq.s32.totalorder %s15, 0
    %p42 = por %p40, %p41
    %s44 = sadd.s32 %s43, 1
    %p47 = scmp.eq.s32.totalorder %s9, 1
    %p48 = scmp.ne.s32.totalorder %s43, %s45
    %p49 = scmp.eq.s32.totalorder %s9, 0
    %p50 = por %p48, %p49
    %p51 = scmp.ne.s32.totalorder %s43, %s45
    %p52 = scmp.eq.s32.totalorder %s14, 1
    %p53 = por %p51, %p52
    %p54 = scmp.ne.s32.totalorder %s45, %s46
    %p55 = scmp.eq.s32.totalorder %s14, 0
    %p56 = por %p54, %p55
    %p57 = scmp.ne.s32.totalorder %s45, %s46
    %p58 = scmp.eq.s32.totalorder %s15, 1
    %p59 = por %p57, %p58
    %p61 = scmp.ne.s32.totalorder %s46, %s60
    %p62 = scmp.eq.s32.totalorder %s15, 0
    %p63 = por %p61, %p62
    %s65 = sadd.s32 %s64, 1
    %p68 = scmp.eq.s32.totalorder %s9, 1
    %p69 = scmp.ne.s32.totalorder %s64, %s66
    %p70 = scmp.eq.s32.totalorder %s9, 0
    %p71 = por %p69, %p70
    %p72 = scmp.ne.s32.totalorder %s64, %s66
    %p73 = scmp.eq.s32.totalorder %s14, 1
    %p74 = por %p72, %p73
    %p75 = scmp.ne.s32.totalorder %s66, %s67
    %p76 = scmp.eq.s32.totalorder %s14, 0
    %p77 = por %p75, %p76
    %p78 = scmp.ne.s32.totalorder %s66, %s67
    %p79 = scmp.eq.s32.totalorder %s15, 1
    %p80 = por %p78, %p79
    %p82 = scmp.ne.s32.totalorder %s67, %s81
    %p83 = scmp.eq.s32.totalorder %s15, 0
    %p84 = por %p82, %p83
    %s85 = ssub.s32 %s9, %s16
    %p86 = scmp.eq.s32.totalorder %s85, 0
    %s88 = sadd.s32 %s87, 1
    %s89 = scalar_select %p86, %s87, %s88
    %p92 = pneg %p86
    %p93 = scmp.eq.s32.totalorder %s9, 1
    %p94 = por %p92, %p93
    %p95 = scmp.ne.s32.totalorder %s87, %s90
    %p96 = scmp.eq.s32.totalorder %s9, 0
    %p97 = por %p95, %p96
    %p98 = scmp.ne.s32.totalorder %s87, %s90
    %p99 = scmp.eq.s32.totalorder %s14, 1
    %p100 = por %p98, %p99
    %p101 = scmp.ne.s32.totalorder %s90, %s91
    %p102 = scmp.eq.s32.totalorder %s14, 0
    %p103 = por %p101, %p102
    %p104 = scmp.ne.s32.totalorder %s90, %s91
    %p105 = scmp.eq.s32.totalorder %s15, 1
    %p106 = por %p104, %p105
    %p108 = scmp.ne.s32.totalorder %s91, %s107
    %p109 = scmp.eq.s32.totalorder %s15, 0
    %p110 = por %p108, %p109
    %p111 = scmp.le.s32.totalorder 1, %s9
    %p112 = scmp.lt.s32.totalorder %s9, 3
    %p113 = pnand %p111, %p112
    %p114 = pneg %p113
    // Predicated region
    $region9: #{adaptive_receptive_field.3} parent=5 // pred_check
      _
    $region10: #{adaptive_receptive_field.3} parent=5 // pred_check_branch
      %116 = sbr.rel (%p113) target = $region12
    $region11: #{adaptive_receptive_field.3} parent=5 // pred_region
      %s117 = ssub.s32 %s9, 1
      // Predicated region
      $region13: #{adaptive_receptive_field.3} parent=11 // pred_check
        %p118 = pneg %p56
      $region14: #{adaptive_receptive_field.3} parent=11 // pred_check_branch
        %120 = sbr.rel (%p118) target = $region16
      $region15: #{adaptive_receptive_field.3} parent=11 // pred_region
        _
      $region16: #{adaptive_receptive_field.3} parent=11 // pred_fallthru
        _
      // Predicated region
      $region17: #{adaptive_receptive_field.3} parent=11 // pred_check
        %p121 = pneg %p77
      $region18: #{adaptive_receptive_field.3} parent=11 // pred_check_branch
        %123 = sbr.rel (%p121) target = $region20
      $region19: #{adaptive_receptive_field.3} parent=11 // pred_region
        _
      $region20: #{adaptive_receptive_field.3} parent=11 // pred_fallthru
        _
    $region12: #{adaptive_receptive_field.3} parent=5 // pred_fallthru
      _
    %p124 = scmp.lt.s32.totalorder %s9, 2
    // Predicated region
    $region21: #{adaptive_receptive_field.3} parent=5 // pred_check
      %p125 = pneg %p124
    $region22: #{adaptive_receptive_field.3} parent=5 // pred_check_branch
      %127 = sbr.rel (%p125) target = $region24
    $region23: #{adaptive_receptive_field.3} parent=5 // pred_region
      // Predicated region
      $region25: #{adaptive_receptive_field.3} parent=23 // pred_check
        %p128 = pneg %p29
      $region26: #{adaptive_receptive_field.3} parent=23 // pred_check_branch
        %130 = sbr.rel (%p128) target = $region28
      $region27: #{adaptive_receptive_field.3} parent=23 // pred_region
        %p131 = scmp.lt.s32.totalorder %s9, 1
        %s132 = scalar_select %p131, %s9, 1
        %s133 = smul.addr %s132, 8
        %s134 = smul.addr %s133, 8
        %s135 = scalar_lea.vmem %s0, %s134
      $region28: #{adaptive_receptive_field.3} parent=23 // pred_fallthru
        _
    $region24: #{adaptive_receptive_field.3} parent=5 // pred_fallthru
      _
    %p136 = scmp.le.s32.totalorder 1, %s9
    %p137 = scmp.lt.s32.totalorder %s9, 3
    %p138 = pnand %p136, %p137
    %p139 = pneg %p138
    // Predicated region
    $region29: #{adaptive_receptive_field.3} parent=5 // pred_check
      _
    $region30: #{adaptive_receptive_field.3} parent=5 // pred_check_branch
      %141 = sbr.rel (%p138) target = $region32
    $region31: #{adaptive_receptive_field.3} parent=5 // pred_region
      %s142 = ssub.s32 %s9, 1
      %p143 = scmp.lt.s32.totalorder %s14, 1
      %s144 = scalar_select %p143, %s14, 1
      %s145 = smul.addr %s144, 8
      %s146 = smul.addr %s145, 8
      %s147 = scalar_lea.vmem %s0, %s146
      %p148 = pneg %p35
      %p149 = pneg %p32
      %p150 = pneg %p56
      %p151 = pneg %p53
      %p152 = pneg %p77
      %p153 = pneg %p74
      %p154 = pneg %p103
      %p155 = pneg %p100
      %p156 = scmp.lt.s32.totalorder %s14, 1
      %s157 = scalar_select %p156, %s14, 1
      %s158 = smul.addr %s157, 8
      %s159 = smul.addr %s158, 8
      %s160 = scalar_lea.vmem %s3, %s159
      %p161 = scmp.lt.s32.totalorder %s14, 1
      %s162 = scalar_select %p161, %s14, 1
      %s163 = smul.addr %s162, 8
      %s164 = smul.addr %s163, 8
      %s165 = scalar_lea.vmem %s0, %s164
      %p166 = scmp.lt.s32.totalorder %s14, 1
      %s167 = scalar_select %p166, %s14, 1
      %s168 = smul.addr %s167, 8
      %s169 = smul.addr %s168, 8
      %s170 = scalar_lea.vmem %s3, %s169
      %v171 = vld [vmem:[%s2] sm:$0xff]
      %v172 = vld [vmem:[%s2 + $0x8] sm:$0xff]
      %v173 = vld [vmem:[%s2 + $0x10] sm:$0xff]
      %v174 = vld [vmem:[%s2 + $0x18] sm:$0x1]
      %v175 = vld [vmem:[%s1] sm:$0x1f]
      %vm176 = vcmask 39936
      %v178 = vsel %vm176, %v171, 0
      %v181 = vsel %vm176, %v172, 0
      %v184 = vsel %vm176, %v173, 0
      %v187 = vsel %vm176, %v174, 0
      %vm189 = vcmask 1044480
      %v191 = vsel %vm189, %v175, 0
      %193 = vmatpush.msra.mxu0 0.0
      %194 = vmatpush.msra.mxu0 0.0
      %195 = vmatpush.msra.mxu0 0.0
      %196 = vmatpush.msra.mxu0 0.0
      %197 = vmatpush.msra.mxu0 0.0
      %198 = vmatpush.msra.mxu0 0.0
      %199 = vmatpush.msra.mxu0 0.0
      %200 = vmatpush.msra.mxu0 0.0
      %201 = vmatpush.msra.mxu0 0.0
      %202 = vmatpush.msra.mxu0 0.0
      %203 = vmatpush.msra.mxu0 0.0
      %204 = vmatpush.msra.mxu0 0.0
      %205 = vmatpush.msra.mxu0 0.0
      %206 = vmatpush.msra.mxu0 0.0
      %207 = vmatpush.msra.mxu0 0.0
      %208 = vmatpush.msra.mxu0 %v191
      %209 = vmatmul.f32.gmra.mxu0 %v178
      %v210 = vpop.f32.mrf.mxu0
      %v211 = vadd.f32 0.0, %v210
      %212 = vmatmul.f32.gmra.mxu0 %v181
      %v213 = vpop.f32.mrf.mxu0
      %v214 = vadd.f32 0.0, %v213
      %215 = vmatmul.f32.gmra.mxu0 %v184
      %v216 = vpop.f32.mrf.mxu0
      %v217 = vadd.f32 0.0, %v216
      %218 = vmatmul.f32.gmra.mxu0 %v187
      %v219 = vpop.f32.mrf.mxu0
      %v220 = vadd.f32 0.0, %v219
      %221 = vdwg.mxu0
      %v222 = vld [vmem:[%s165] sm:$0xff]
      %v223 = vld [vmem:[%s165 + $0x8] sm:$0xff]
      %v224 = vld [vmem:[%s165 + $0x10] sm:$0xff]
      %v225 = vld [vmem:[%s165 + $0x18] sm:$0xff]
      %v226 = vld [vmem:[%s165 + $0x20] sm:$0xff]
      %v227 = vld [vmem:[%s165 + $0x28] sm:$0xff]
      %v228 = vld [vmem:[%s165 + $0x30] sm:$0x1]
      %v229 = vld [vmem:[%s165 + $0x38] sm:$0x1]
      %231 = vset.pattern.permute.xlu0 0
      %232 = vperm.xlu0 %231, %v211
      %v233 = vpop.permute.xlu0 %232
      %236 = vset.pattern.permute.xlu0 0
      %237 = vperm.xlu0 %236, %v214
      %v238 = vpop.permute.xlu0 %237
      %241 = vset.pattern.permute.xlu0 0
      %242 = vperm.xlu0 %241, %v217
      %v243 = vpop.permute.xlu0 %242
      %246 = vset.pattern.permute.xlu0 0
      %247 = vperm.xlu0 %246, %v220
      %v248 = vpop.permute.xlu0 %247
      %v250 = vmul.f32 %v222, %v233
      %v251 = vmul.f32 %v223, %v233
      %v252 = vmul.f32 %v224, %v238
      %v253 = vmul.f32 %v225, %v238
      %v254 = vmul.f32 %v226, %v243
      %v255 = vmul.f32 %v227, %v243
      %v256 = vmul.f32 %v228, %v248
      %v257 = vmul.f32 %v229, %v248
      %258 = vst [vmem:[%s170] sm:$0xff] %v250
      %259 = vst [vmem:[%s170 + $0x8] sm:$0xff] %v251
      %260 = vst [vmem:[%s170 + $0x10] sm:$0xff] %v252
      %261 = vst [vmem:[%s170 + $0x18] sm:$0xff] %v253
      %262 = vst [vmem:[%s170 + $0x20] sm:$0xff] %v254
      %263 = vst [vmem:[%s170 + $0x28] sm:$0xff] %v255
      %264 = vst [vmem:[%s170 + $0x30] sm:$0x1] %v256
      %265 = vst [vmem:[%s170 + $0x38] sm:$0x1] %v257
      %p266 = scmp.lt.s32.totalorder %s14, 1
      %s267 = scalar_select %p266, %s14, 1
      %s268 = smul.addr %s267, 8
      %s269 = smul.addr %s268, 8
      %s270 = scalar_lea.vmem %s3, %s269
      // Predicated region
      $region33: #{adaptive_receptive_field.3} parent=31 // pred_check
        %p271 = pneg %p100
      $region34: #{adaptive_receptive_field.3} parent=31 // pred_check_branch
        %273 = sbr.rel (%p271) target = $region36
      $region35: #{adaptive_receptive_field.3} parent=31 // pred_region
        _
      $region36: #{adaptive_receptive_field.3} parent=31 // pred_fallthru
        _
    $region32: #{adaptive_receptive_field.3} parent=5 // pred_fallthru
      _
    %p274 = scmp.le.s32.totalorder 2, %s9
    // Predicated region
    $region37: #{adaptive_receptive_field.3} parent=5 // pred_check
      %p275 = pneg %p274
    $region38: #{adaptive_receptive_field.3} parent=5 // pred_check_branch
      %277 = sbr.rel (%p275) target = $region40
    $region39: #{adaptive_receptive_field.3} parent=5 // pred_region
      %s278 = ssub.s32 %s9, 2
      // Predicated region
      $region41: #{adaptive_receptive_field.3} parent=39 // pred_check
        %p279 = pneg %p106
      $region42: #{adaptive_receptive_field.3} parent=39 // pred_check_branch
        %281 = sbr.rel (%p279) target = $region44
      $region43: #{adaptive_receptive_field.3} parent=39 // pred_region
        %p282 = scmp.lt.s32.totalorder %s15, 1
        %s283 = scalar_select %p282, %s15, 1
        %s284 = smul.addr %s283, 8
        %s285 = smul.addr %s284, 8
        %s286 = scalar_lea.vmem %s3, %s285
      $region44: #{adaptive_receptive_field.3} parent=39 // pred_fallthru
        _
    $region40: #{adaptive_receptive_field.3} parent=5 // pred_fallthru
      _
  $region6: #{adaptive_receptive_field.3} parent=0 // loop_footer
    %s13 = sadd.s32 1, %s9
  $region7: #{adaptive_receptive_field.3} parent=0 // loop_footer_branch
    %8 = sbr.rel target = $region3
  $region8: #{adaptive_receptive_field.3} parent=0 // loop_exit
    _

// kernel: adaptive_receptive_field.2
$region0: #{adaptive_receptive_field.2}
  #allocation0 [shape = 'u32[]', space=smem, size = 0x4, offset = 0x4, fixed_abs, tag = 'smem constant byte address 0x4 - core index']
  #allocation1 [shape = 'u32[72,128]{1,0:T(1,128)}', space=vmem, size = 0x9000, scoped, tag = 'internal scratch']
  #allocation2 [shape = 'f32[264,256]{1,0:T(8,128)}', space=vmem, size = 0x42000, scoped, tag = 'scratch operand']
  %s0 = inlined_call_operand.vmem [shape: f32[2,8,256], index: 0, kind: input, shape index: {}]
  %s1 = inlined_call_operand.vmem [shape: f32[8,8], index: 1, kind: input, shape index: {}]
  %s2 = inlined_call_operand.vmem [shape: f32[27,24], index: 2, kind: input, shape index: {}]
  %s3 = inlined_call_operand.vmem [shape: f32[35,40], index: 3, kind: input, shape index: {}]
  %s4 = inlined_call_operand.vmem [shape: f32[45,72], index: 4, kind: input, shape index: {}]
  %s5 = inlined_call_operand.vmem [shape: f32[51,136], index: 5, kind: input, shape index: {}]
  %s6 = inlined_call_operand.vmem [shape: f32[33,264], index: 6, kind: input, shape index: {}]
  %s7 = inlined_call_operand.vmem [shape: f32[5,25], index: 7, kind: input, shape index: {}]
  %s8 = inlined_call_operand.vmem [shape: f32[2,5], index: 8, kind: input, shape index: {}]
  %s9 = inlined_call_operand.vmem [shape: f32[5,2], index: 9, kind: input, shape index: {}]
  %s10 = inlined_call_operand.hbm [shape: f32[264,256], index: 10, kind: input, shape index: {}]
  %s11 = inlined_call_operand.vmem [shape: f32[2,25,256], index: 11, kind: output, shape index: {0}]
  %s12 = inlined_call_operand.vmem [shape: f32[2,5,1], index: 12, kind: output, shape index: {1}]
  %13 = xla_tuple %s11, %s12
  %s14 = sld [smem:[#allocation0]]
  $region93: #{adaptive_receptive_field.2} parent=0
    _
  %s16 = ssub.s32 1, %s14
  %s17 = scalar_select 0, %s16, %s14
  $region1: #{adaptive_receptive_field.2} parent=0
    #allocation3 [shape = 'u8[270336]{0}', space=vmem, size = 0x42000, scoped, tag = 'input window, operand 10, single buffered']
    #allocation4 [shape = 's32[2]{0}', space=sflag, size = 0x8, scoped, tag = 'scoped memory for adaptive_receptive_field.2']
    %18 = vsyncpa [#allocation4], 0
    loop: start=0, step=1, limit=4
    $region2: #{adaptive_receptive_field.2} parent=1 // loop_pre_header
      _
    $region3: #{adaptive_receptive_field.2} parent=1 // loop_header
      %s20 = sphi 0, %s24
      %p21 = scmp.ge.s32.totalorder %s20, 4
      %s30 = sphi 0, %s32
      %s33 = sphi 0, %s30
      %s34 = sphi 0, %s33
      %s50 = sphi 0, %s34
      %s54 = sphi 0, %s54
      %s56 = sphi 0, %s54
      %s57 = sphi 0, %s56
      %s71 = sphi 0, %s57
      %s75 = sphi 0, %s75
      %s77 = sphi 0, %s75
      %s78 = sphi 0, %s77
      %s92 = sphi 0, %s78
      %s96 = sphi 0, %s96
      %s98 = sphi 0, %s96
      %s99 = sphi 0, %s98
      %s113 = sphi 0, %s99
      %s117 = sphi 0, %s117
      %s119 = sphi 0, %s117
      %s120 = sphi 0, %s119
      %s134 = sphi 0, %s120
      %s138 = sphi 0, %s138
      %s140 = sphi 0, %s138
      %s141 = sphi 0, %s140
      %s155 = sphi 0, %s141
      %s159 = sphi 0, %s159
      %s161 = sphi 0, %s159
      %s162 = sphi 0, %s161
      %s176 = sphi 0, %s162
      %s180 = sphi 0, %s180
      %s182 = sphi 0, %s180
      %s183 = sphi 0, %s182
      %s197 = sphi 0, %s183
      %s201 = sphi 0, %s201
      %s203 = sphi 0, %s201
      %s204 = sphi 0, %s203
      %s218 = sphi 0, %s204
      %s222 = sphi 0, %s222
      %s224 = sphi 0, %s222
      %s225 = sphi 0, %s224
      %s239 = sphi 0, %s225
      %s243 = sphi 0, %s243
      %s245 = sphi 0, %s243
      %s246 = sphi 0, %s245
      %s260 = sphi 0, %s246
      %s266 = sphi 0, %s268
      %s269 = sphi 0, %s266
      %s270 = sphi 0, %s269
      %s286 = sphi 0, %s270
      %s292 = sphi 0, %s294
      %s295 = sphi 0, %s292
      %s296 = sphi 0, %s295
      %s312 = sphi 0, %s296
    $region4: #{adaptive_receptive_field.2} parent=1 // loop_header_branch
      %23 = sbr.rel (%p21) target = $region8
    $region5: #{adaptive_receptive_field.2} parent=1 // loop_body
      %s25 = ssub.s32 %s20, 1
      %s26 = ssub.s32 %s20, 2
      %s27 = sadd.s32 %s20, 1
      %s28 = ssub.s32 %s20, %s27
      %p29 = scmp.eq.s32.totalorder %s28, 0
      %s31 = sadd.s32 %s30, 1
      %s32 = scalar_select %p29, %s30, %s31
      %p35 = pneg %p29
      %p36 = scmp.eq.s32.totalorder %s20, 1
      %p37 = por %p35, %p36
      %p38 = scmp.ne.s32.totalorder %s30, %s33
      %p39 = scmp.eq.s32.totalorder %s20, 0
      %p40 = por %p38, %p39
      %p41 = scmp.ne.s32.totalorder %s30, %s33
      %p42 = scmp.eq.s32.totalorder %s25, 1
      %p43 = por %p41, %p42
      %p44 = scmp.ne.s32.totalorder %s33, %s34
      %p45 = scmp.eq.s32.totalorder %s25, 0
      %p46 = por %p44, %p45
      %p47 = scmp.ne.s32.totalorder %s33, %s34
      %p48 = scmp.eq.s32.totalorder %s26, 1
      %p49 = por %p47, %p48
      %p51 = scmp.ne.s32.totalorder %s34, %s50
      %p52 = scmp.eq.s32.totalorder %s26, 0
      %p53 = por %p51, %p52
      %s55 = sadd.s32 %s54, 1
      %p58 = scmp.eq.s32.totalorder %s20, 1
      %p59 = scmp.ne.s32.totalorder %s54, %s56
      %p60 = scmp.eq.s32.totalorder %s20, 0
      %p61 = por %p59, %p60
      %p62 = scmp.ne.s32.totalorder %s54, %s56
      %p63 = scmp.eq.s32.totalorder %s25, 1
      %p64 = por %p62, %p63
      %p65 = scmp.ne.s32.totalorder %s56, %s57
      %p66 = scmp.eq.s32.totalorder %s25, 0
      %p67 = por %p65, %p66
      %p68 = scmp.ne.s32.totalorder %s56, %s57
      %p69 = scmp.eq.s32.totalorder %s26, 1
      %p70 = por %p68, %p69
      %p72 = scmp.ne.s32.totalorder %s57, %s71
      %p73 = scmp.eq.s32.totalorder %s26, 0
      %p74 = por %p72, %p73
      %s76 = sadd.s32 %s75, 1
      %p79 = scmp.eq.s32.totalorder %s20, 1
      %p80 = scmp.ne.s32.totalorder %s75, %s77
      %p81 = scmp.eq.s32.totalorder %s20, 0
      %p82 = por %p80, %p81
      %p83 = scmp.ne.s32.totalorder %s75, %s77
      %p84 = scmp.eq.s32.totalorder %s25, 1
      %p85 = por %p83, %p84
      %p86 = scmp.ne.s32.totalorder %s77, %s78
      %p87 = scmp.eq.s32.totalorder %s25, 0
      %p88 = por %p86, %p87
      %p89 = scmp.ne.s32.totalorder %s77, %s78
      %p90 = scmp.eq.s32.totalorder %s26, 1
      %p91 = por %p89, %p90
      %p93 = scmp.ne.s32.totalorder %s78, %s92
      %p94 = scmp.eq.s32.totalorder %s26, 0
      %p95 = por %p93, %p94
      %s97 = sadd.s32 %s96, 1
      %p100 = scmp.eq.s32.totalorder %s20, 1
      %p101 = scmp.ne.s32.totalorder %s96, %s98
      %p102 = scmp.eq.s32.totalorder %s20, 0
      %p103 = por %p101, %p102
      %p104 = scmp.ne.s32.totalorder %s96, %s98
      %p105 = scmp.eq.s32.totalorder %s25, 1
      %p106 = por %p104, %p105
      %p107 = scmp.ne.s32.totalorder %s98, %s99
      %p108 = scmp.eq.s32.totalorder %s25, 0
      %p109 = por %p107, %p108
      %p110 = scmp.ne.s32.totalorder %s98, %s99
      %p111 = scmp.eq.s32.totalorder %s26, 1
      %p112 = por %p110, %p111
      %p114 = scmp.ne.s32.totalorder %s99, %s113
      %p115 = scmp.eq.s32.totalorder %s26, 0
      %p116 = por %p114, %p115
      %s118 = sadd.s32 %s117, 1
      %p121 = scmp.eq.s32.totalorder %s20, 1
      %p122 = scmp.ne.s32.totalorder %s117, %s119
      %p123 = scmp.eq.s32.totalorder %s20, 0
      %p124 = por %p122, %p123
      %p125 = scmp.ne.s32.totalorder %s117, %s119
      %p126 = scmp.eq.s32.totalorder %s25, 1
      %p127 = por %p125, %p126
      %p128 = scmp.ne.s32.totalorder %s119, %s120
      %p129 = scmp.eq.s32.totalorder %s25, 0
      %p130 = por %p128, %p129
      %p131 = scmp.ne.s32.totalorder %s119, %s120
      %p132 = scmp.eq.s32.totalorder %s26, 1
      %p133 = por %p131, %p132
      %p135 = scmp.ne.s32.totalorder %s120, %s134
      %p136 = scmp.eq.s32.totalorder %s26, 0
      %p137 = por %p135, %p136
      %s139 = sadd.s32 %s138, 1
      %p142 = scmp.eq.s32.totalorder %s20, 1
      %p143 = scmp.ne.s32.totalorder %s138, %s140
      %p144 = scmp.eq.s32.totalorder %s20, 0
      %p145 = por %p143, %p144
      %p146 = scmp.ne.s32.totalorder %s138, %s140
      %p147 = scmp.eq.s32.totalorder %s25, 1
      %p148 = por %p146, %p147
      %p149 = scmp.ne.s32.totalorder %s140, %s141
      %p150 = scmp.eq.s32.totalorder %s25, 0
      %p151 = por %p149, %p150
      %p152 = scmp.ne.s32.totalorder %s140, %s141
      %p153 = scmp.eq.s32.totalorder %s26, 1
      %p154 = por %p152, %p153
      %p156 = scmp.ne.s32.totalorder %s141, %s155
      %p157 = scmp.eq.s32.totalorder %s26, 0
      %p158 = por %p156, %p157
      %s160 = sadd.s32 %s159, 1
      %p163 = scmp.eq.s32.totalorder %s20, 1
      %p164 = scmp.ne.s32.totalorder %s159, %s161
      %p165 = scmp.eq.s32.totalorder %s20, 0
      %p166 = por %p164, %p165
      %p167 = scmp.ne.s32.totalorder %s159, %s161
      %p168 = scmp.eq.s32.totalorder %s25, 1
      %p169 = por %p167, %p168
      %p170 = scmp.ne.s32.totalorder %s161, %s162
      %p171 = scmp.eq.s32.totalorder %s25, 0
      %p172 = por %p170, %p171
      %p173 = scmp.ne.s32.totalorder %s161, %s162
      %p174 = scmp.eq.s32.totalorder %s26, 1
      %p175 = por %p173, %p174
      %p177 = scmp.ne.s32.totalorder %s162, %s176
      %p178 = scmp.eq.s32.totalorder %s26, 0
      %p179 = por %p177, %p178
      %s181 = sadd.s32 %s180, 1
      %p184 = scmp.eq.s32.totalorder %s20, 1
      %p185 = scmp.ne.s32.totalorder %s180, %s182
      %p186 = scmp.eq.s32.totalorder %s20, 0
      %p187 = por %p185, %p186
      %p188 = scmp.ne.s32.totalorder %s180, %s182
      %p189 = scmp.eq.s32.totalorder %s25, 1
      %p190 = por %p188, %p189
      %p191 = scmp.ne.s32.totalorder %s182, %s183
      %p192 = scmp.eq.s32.totalorder %s25, 0
      %p193 = por %p191, %p192
      %p194 = scmp.ne.s32.totalorder %s182, %s183
      %p195 = scmp.eq.s32.totalorder %s26, 1
      %p196 = por %p194, %p195
      %p198 = scmp.ne.s32.totalorder %s183, %s197
      %p199 = scmp.eq.s32.totalorder %s26, 0
      %p200 = por %p198, %p199
      %s202 = sadd.s32 %s201, 1
      %p205 = scmp.eq.s32.totalorder %s20, 1
      %p206 = scmp.ne.s32.totalorder %s201, %s203
      %p207 = scmp.eq.s32.totalorder %s20, 0
      %p208 = por %p206, %p207
      %p209 = scmp.ne.s32.totalorder %s201, %s203
      %p210 = scmp.eq.s32.totalorder %s25, 1
      %p211 = por %p209, %p210
      %p212 = scmp.ne.s32.totalorder %s203, %s204
      %p213 = scmp.eq.s32.totalorder %s25, 0
      %p214 = por %p212, %p213
      %p215 = scmp.ne.s32.totalorder %s203, %s204
      %p216 = scmp.eq.s32.totalorder %s26, 1
      %p217 = por %p215, %p216
      %p219 = scmp.ne.s32.totalorder %s204, %s218
      %p220 = scmp.eq.s32.totalorder %s26, 0
      %p221 = por %p219, %p220
      %s223 = sadd.s32 %s222, 1
      %p226 = scmp.eq.s32.totalorder %s20, 1
      %p227 = scmp.ne.s32.totalorder %s222, %s224
      %p228 = scmp.eq.s32.totalorder %s20, 0
      %p229 = por %p227, %p228
      %p230 = scmp.ne.s32.totalorder %s222, %s224
      %p231 = scmp.eq.s32.totalorder %s25, 1
      %p232 = por %p230, %p231
      %p233 = scmp.ne.s32.totalorder %s224, %s225
      %p234 = scmp.eq.s32.totalorder %s25, 0
      %p235 = por %p233, %p234
      %p236 = scmp.ne.s32.totalorder %s224, %s225
      %p237 = scmp.eq.s32.totalorder %s26, 1
      %p238 = por %p236, %p237
      %p240 = scmp.ne.s32.totalorder %s225, %s239
      %p241 = scmp.eq.s32.totalorder %s26, 0
      %p242 = por %p240, %p241
      %s244 = sadd.s32 %s243, 1
      %p247 = scmp.eq.s32.totalorder %s20, 1
      %p248 = scmp.ne.s32.totalorder %s243, %s245
      %p249 = scmp.eq.s32.totalorder %s20, 0
      %p250 = por %p248, %p249
      %p251 = scmp.ne.s32.totalorder %s243, %s245
      %p252 = scmp.eq.s32.totalorder %s25, 1
      %p253 = por %p251, %p252
      %p254 = scmp.ne.s32.totalorder %s245, %s246
      %p255 = scmp.eq.s32.totalorder %s25, 0
      %p256 = por %p254, %p255
      %p257 = scmp.ne.s32.totalorder %s245, %s246
      %p258 = scmp.eq.s32.totalorder %s26, 1
      %p259 = por %p257, %p258
      %p261 = scmp.ne.s32.totalorder %s246, %s260
      %p262 = scmp.eq.s32.totalorder %s26, 0
      %p263 = por %p261, %p262
      %s264 = ssub.s32 %s20, %s27
      %p265 = scmp.eq.s32.totalorder %s264, 0
      %s267 = sadd.s32 %s266, 1
      %s268 = scalar_select %p265, %s266, %s267
      %p271 = pneg %p265
      %p272 = scmp.eq.s32.totalorder %s20, 1
      %p273 = por %p271, %p272
      %p274 = scmp.ne.s32.totalorder %s266, %s269
      %p275 = scmp.eq.s32.totalorder %s20, 0
      %p276 = por %p274, %p275
      %p277 = scmp.ne.s32.totalorder %s266, %s269
      %p278 = scmp.eq.s32.totalorder %s25, 1
      %p279 = por %p277, %p278
      %p280 = scmp.ne.s32.totalorder %s269, %s270
      %p281 = scmp.eq.s32.totalorder %s25, 0
      %p282 = por %p280, %p281
      %p283 = scmp.ne.s32.totalorder %s269, %s270
      %p284 = scmp.eq.s32.totalorder %s26, 1
      %p285 = por %p283, %p284
      %p287 = scmp.ne.s32.totalorder %s270, %s286
      %p288 = scmp.eq.s32.totalorder %s26, 0
      %p289 = por %p287, %p288
      %s290 = ssub.s32 %s20, %s27
      %p291 = scmp.eq.s32.totalorder %s290, 0
      %s293 = sadd.s32 %s292, 1
      %s294 = scalar_select %p291, %s292, %s293
      %p297 = pneg %p291
      %p298 = scmp.eq.s32.totalorder %s20, 1
      %p299 = por %p297, %p298
      %p300 = scmp.ne.s32.totalorder %s292, %s295
      %p301 = scmp.eq.s32.totalorder %s20, 0
      %p302 = por %p300, %p301
      %p303 = scmp.ne.s32.totalorder %s292, %s295
      %p304 = scmp.eq.s32.totalorder %s25, 1
      %p305 = por %p303, %p304
      %p306 = scmp.ne.s32.totalorder %s295, %s296
      %p307 = scmp.eq.s32.totalorder %s25, 0
      %p308 = por %p306, %p307
      %p309 = scmp.ne.s32.totalorder %s295, %s296
      %p310 = scmp.eq.s32.totalorder %s26, 1
      %p311 = por %p309, %p310
      %p313 = scmp.ne.s32.totalorder %s296, %s312
      %p314 = scmp.eq.s32.totalorder %s26, 0
      %p315 = por %p313, %p314
      %p316 = scmp.le.s32.totalorder 1, %s20
      %p317 = scmp.lt.s32.totalorder %s20, 3
      %p318 = pnand %p316, %p317
      %p319 = pneg %p318
      // Predicated region
      $region9: #{adaptive_receptive_field.2} parent=5 // pred_check
        _
      $region10: #{adaptive_receptive_field.2} parent=5 // pred_check_branch
        %321 = sbr.rel (%p318) target = $region12
      $region11: #{adaptive_receptive_field.2} parent=5 // pred_region
        %s322 = ssub.s32 %s20, 1
        // Predicated region
        $region13: #{adaptive_receptive_field.2} parent=11 // pred_check
          %p323 = pneg %p67
        $region14: #{adaptive_receptive_field.2} parent=11 // pred_check_branch
          %325 = sbr.rel (%p323) target = $region16
        $region15: #{adaptive_receptive_field.2} parent=11 // pred_region
          _
        $region16: #{adaptive_receptive_field.2} parent=11 // pred_fallthru
          _
        // Predicated region
        $region17: #{adaptive_receptive_field.2} parent=11 // pred_check
          %p326 = pneg %p88
        $region18: #{adaptive_receptive_field.2} parent=11 // pred_check_branch
          %328 = sbr.rel (%p326) target = $region20
        $region19: #{adaptive_receptive_field.2} parent=11 // pred_region
          _
        $region20: #{adaptive_receptive_field.2} parent=11 // pred_fallthru
          _
        // Predicated region
        $region21: #{adaptive_receptive_field.2} parent=11 // pred_check
          %p329 = pneg %p109
        $region22: #{adaptive_receptive_field.2} parent=11 // pred_check_branch
          %331 = sbr.rel (%p329) target = $region24
        $region23: #{adaptive_receptive_field.2} parent=11 // pred_region
          _
        $region24: #{adaptive_receptive_field.2} parent=11 // pred_fallthru
          _
        // Predicated region
        $region25: #{adaptive_receptive_field.2} parent=11 // pred_check
          %p332 = pneg %p130
        $region26: #{adaptive_receptive_field.2} parent=11 // pred_check_branch
          %334 = sbr.rel (%p332) target = $region28
        $region27: #{adaptive_receptive_field.2} parent=11 // pred_region
          _
        $region28: #{adaptive_receptive_field.2} parent=11 // pred_fallthru
          _
        // Predicated region
        $region29: #{adaptive_receptive_field.2} parent=11 // pred_check
          %p335 = pneg %p151
        $region30: #{adaptive_receptive_field.2} parent=11 // pred_check_branch
          %337 = sbr.rel (%p335) target = $region32
        $region31: #{adaptive_receptive_field.2} parent=11 // pred_region
          _
        $region32: #{adaptive_receptive_field.2} parent=11 // pred_fallthru
          _
        // Predicated region
        $region33: #{adaptive_receptive_field.2} parent=11 // pred_check
          %p338 = pneg %p172
        $region34: #{adaptive_receptive_field.2} parent=11 // pred_check_branch
          %340 = sbr.rel (%p338) target = $region36
        $region35: #{adaptive_receptive_field.2} parent=11 // pred_region
          _
        $region36: #{adaptive_receptive_field.2} parent=11 // pred_fallthru
          _
        // Predicated region
        $region37: #{adaptive_receptive_field.2} parent=11 // pred_check
          %p341 = pneg %p193
        $region38: #{adaptive_receptive_field.2} parent=11 // pred_check_branch
          %343 = sbr.rel (%p341) target = $region40
        $region39: #{adaptive_receptive_field.2} parent=11 // pred_region
          _
        $region40: #{adaptive_receptive_field.2} parent=11 // pred_fallthru
          _
        // Predicated region
        $region41: #{adaptive_receptive_field.2} parent=11 // pred_check
          %p344 = pneg %p214
        $region42: #{adaptive_receptive_field.2} parent=11 // pred_check_branch
          %346 = sbr.rel (%p344) target = $region44
        $region43: #{adaptive_receptive_field.2} parent=11 // pred_region
          _
        $region44: #{adaptive_receptive_field.2} parent=11 // pred_fallthru
          _
        // Predicated region
        $region45: #{adaptive_receptive_field.2} parent=11 // pred_check
          %p347 = pneg %p235
        $region46: #{adaptive_receptive_field.2} parent=11 // pred_check_branch
          %349 = sbr.rel (%p347) target = $region48
        $region47: #{adaptive_receptive_field.2} parent=11 // pred_region
          _
        $region48: #{adaptive_receptive_field.2} parent=11 // pred_fallthru
          _
        // Predicated region
        $region49: #{adaptive_receptive_field.2} parent=11 // pred_check
          %p350 = pneg %p256
        $region50: #{adaptive_receptive_field.2} parent=11 // pred_check_branch
          %352 = sbr.rel (%p350) target = $region52
        $region51: #{adaptive_receptive_field.2} parent=11 // pred_region
          %354 = vsyncadd [#allocation4], 0
          %s355 = sshll.u32 %s10, 4
          %s356 = int_to_ptr.hbm [resolvable:$true] %s355
          %s357 = sshll.u32 [#allocation3], 4
          %s358 = int_to_ptr.vmem [resolvable:$true] %s357
          %363 = dma.hbm_to_vmem [thread:$0]  %s356, 8448, %s358, [#allocation4], 256, 256, 16
        $region52: #{adaptive_receptive_field.2} parent=11 // pred_fallthru
          _
      $region12: #{adaptive_receptive_field.2} parent=5 // pred_fallthru
        _
      %p364 = scmp.lt.s32.totalorder %s20, 2
      // Predicated region
      $region53: #{adaptive_receptive_field.2} parent=5 // pred_check
        %p365 = pneg %p364
      $region54: #{adaptive_receptive_field.2} parent=5 // pred_check_branch
        %367 = sbr.rel (%p365) target = $region56
      $region55: #{adaptive_receptive_field.2} parent=5 // pred_region
        // Predicated region
        $region57: #{adaptive_receptive_field.2} parent=55 // pred_check
          %p368 = pneg %p40
        $region58: #{adaptive_receptive_field.2} parent=55 // pred_check_branch
          %370 = sbr.rel (%p368) target = $region60
        $region59: #{adaptive_receptive_field.2} parent=55 // pred_region
          %p371 = scmp.lt.s32.totalorder %s20, 1
          %s372 = scalar_select %p371, %s20, 1
          %s373 = smul.addr %s372, 2
          %s374 = smul.addr %s373, 8
          %s375 = scalar_lea.vmem %s0, %s374
        $region60: #{adaptive_receptive_field.2} parent=55 // pred_fallthru
          _
      $region56: #{adaptive_receptive_field.2} parent=5 // pred_fallthru
        _
      %p376 = scmp.le.s32.totalorder 1, %s20
      %p377 = scmp.lt.s32.totalorder %s20, 3
      %p378 = pnand %p376, %p377
      %p379 = pneg %p378
      // Predicated region
      $region61: #{adaptive_receptive_field.2} parent=5 // pred_check
        _
      $region62: #{adaptive_receptive_field.2} parent=5 // pred_check_branch
        %381 = sbr.rel (%p378) target = $region64
      $region63: #{adaptive_receptive_field.2} parent=5 // pred_region
        %s382 = ssub.s32 %s20, 1
        // Predicated region
        $region65: #{adaptive_receptive_field.2} parent=63 // pred_check
          %p383 = pneg %p256
        $region66: #{adaptive_receptive_field.2} parent=63 // pred_check_branch
          %385 = sbr.rel (%p383) target = $region68
        $region67: #{adaptive_receptive_field.2} parent=63 // pred_region
          %387 = dma.done [#allocation4], 8448
        $region68: #{adaptive_receptive_field.2} parent=63 // pred_fallthru
          _
        %p388 = scmp.lt.s32.totalorder %s25, 1
        %s389 = scalar_select %p388, %s25, 1
        %s390 = smul.addr %s389, 2
        %s391 = smul.addr %s390, 8
        %s392 = scalar_lea.vmem %s0, %s391
        %p393 = pneg %p46
        %p394 = pneg %p43
        %p395 = pneg %p67
        %p396 = pneg %p64
        %p397 = pneg %p88
        %p398 = pneg %p85
        %p399 = pneg %p109
        %p400 = pneg %p106
        %p401 = pneg %p130
        %p402 = pneg %p127
        %p403 = pneg %p151
        %p404 = pneg %p148
        %p405 = pneg %p172
        %p406 = pneg %p169
        %p407 = pneg %p193
        %p408 = pneg %p190
        %p409 = pneg %p214
        %p410 = pneg %p211
        %p411 = pneg %p235
        %p412 = pneg %p232
        %p413 = pneg %p256
        %p414 = pneg %p253
        %p415 = pneg %p282
        %p416 = pneg %p279
        %p417 = scmp.lt.s32.totalorder %s25, 1
        %s418 = scalar_select %p417, %s25, 1
        %s419 = smul.addr %s418, 8
        %s420 = smul.addr %s419, 8
        %s421 = scalar_lea.vmem %s11, %s420
        %p422 = pneg %p308
        %p423 = pneg %p305
        %p424 = scmp.lt.s32.totalorder %s25, 1
        %s425 = scalar_select %p424, %s25, 1
        %s426 = smul.addr %s425, 8
        %s427 = scalar_lea.vmem %s12, %s426
        %p428 = scmp.lt.s32.totalorder %s25, 1
        %s429 = scalar_select %p428, %s25, 1
        %s430 = smul.addr %s429, 2
        %s431 = smul.addr %s430, 8
        %s432 = scalar_lea.vmem %s0, %s431
        %p433 = scmp.lt.s32.totalorder %s25, 1
        %s434 = scalar_select %p433, %s25, 1
        %s435 = smul.addr %s434, 8
        %s436 = smul.addr %s435, 8
        %s437 = scalar_lea.vmem %s11, %s436
        %p438 = scmp.lt.s32.totalorder %s25, 1
        %s439 = scalar_select %p438, %s25, 1
        %s440 = smul.addr %s439, 8
        %s441 = scalar_lea.vmem %s12, %s440
        %v442 = vld [vmem:[%s1] sm:$0xff]
        %v443 = vld [vmem:[%s432] sm:$0xff]
        %v444 = vld [vmem:[%s432 + $0x8] sm:$0xff]
        %vm445 = vcmask 64512
        %v447 = vsel %vm445, %v442, 0
        %449 = vmatpush.msra.mxu0 0.0
        %450 = vmatpush.msra.mxu0 0.0
        %451 = vmatpush.msra.mxu0 0.0
        %452 = vmatpush.msra.mxu0 0.0
        %453 = vmatpush.msra.mxu0 0.0
        %454 = vmatpush.msra.mxu0 0.0
        %455 = vmatpush.msra.mxu0 0.0
        %456 = vmatpush.msra.mxu0 0.0
        %457 = vmatpush.msra.mxu0 0.0
        %458 = vmatpush.msra.mxu0 0.0
        %459 = vmatpush.msra.mxu0 0.0
        %460 = vmatpush.msra.mxu0 0.0
        %461 = vmatpush.msra.mxu0 0.0
        %462 = vmatpush.msra.mxu0 0.0
        %463 = vmatpush.msra.mxu0 0.0
        %464 = vmatpush.msra.mxu0 %v443
        %465 = vmatmul.f32.gmra.mxu0 %v447
        %v466 = vpop.f32.mrf.mxu0
        %v467 = vadd.f32 0.0, %v466
        %468 = vdwg.mxu0
        %469 = vmatpush.msra.mxu0 0.0
        %470 = vmatpush.msra.mxu0 0.0
        %471 = vmatpush.msra.mxu0 0.0
        %472 = vmatpush.msra.mxu0 0.0
        %473 = vmatpush.msra.mxu0 0.0
        %474 = vmatpush.msra.mxu0 0.0
        %475 = vmatpush.msra.mxu0 0.0
        %476 = vmatpush.msra.mxu0 0.0
        %477 = vmatpush.msra.mxu0 0.0
        %478 = vmatpush.msra.mxu0 0.0
        %479 = vmatpush.msra.mxu0 0.0
        %480 = vmatpush.msra.mxu0 0.0
        %481 = vmatpush.msra.mxu0 0.0
        %482 = vmatpush.msra.mxu0 0.0
        %483 = vmatpush.msra.mxu0 0.0
        %484 = vmatpush.msra.mxu0 %v444
        %485 = vmatmul.f32.gmra.mxu0 %v447
        %v486 = vpop.f32.mrf.mxu0
        %v487 = vadd.f32 0.0, %v486
        %488 = vdwg.mxu0
        %491 = vrot.lane.b32.xlu0 %v467, 16
        %v492 = vpop.permute.xlu0 %491
        %493 = vrot.lane.b32.xlu0 %v487, 16
        %v494 = vpop.permute.xlu0 %493
        %vm495 = vcmask 130048
        %v496 = vsel %vm495, %v492, %v494
        %v499 = vsel %vm495, 0.0, %v492
        %v500 = vld [vmem:[#allocation3] sm:$0xff]
        %v501 = vld [vmem:[#allocation3 + $0x8] sm:$0xff]
        %v502 = vmul.f32 %v499, %v500
        %v503 = vmul.f32 %v496, %v501
        %504 = vst [vmem:[#allocation2] sm:$0xff] %v502
        %505 = vst [vmem:[#allocation2 + $0x8] sm:$0xff] %v503
        %506 = vrot.lane.b32.xlu0 %v467, 15
        %v507 = vpop.permute.xlu0 %506
        %508 = vrot.lane.b32.xlu0 %v487, 15
        %v509 = vpop.permute.xlu0 %508
        %vm510 = vcmask 121856
        %v511 = vsel %vm510, %v507, %v509
        %v514 = vsel %vm510, 0.0, %v507
        %v515 = vld [vmem:[#allocation3 + $0x10] sm:$0xff]
        %v516 = vld [vmem:[#allocation3 + $0x18] sm:$0xff]
        %v517 = vmul.f32 %v514, %v515
        %v518 = vmul.f32 %v511, %v516
        %519 = vst [vmem:[#allocation2 + $0x10] sm:$0xff] %v517
        %520 = vst [vmem:[#allocation2 + $0x18] sm:$0xff] %v518
        %521 = vrot.lane.b32.xlu0 %v467, 14
        %v522 = vpop.permute.xlu0 %521
        %523 = vrot.lane.b32.xlu0 %v487, 14
        %v524 = vpop.permute.xlu0 %523
        %vm525 = vcmask 113664
        %v526 = vsel %vm525, %v522, %v524
        %v529 = vsel %vm525, 0.0, %v522
        %v530 = vld [vmem:[#allocation3 + $0x20] sm:$0xff]
        %v531 = vld [vmem:[#allocation3 + $0x28] sm:$0xff]
        %v532 = vmul.f32 %v529, %v530
        %v533 = vmul.f32 %v526, %v531
        %534 = vst [vmem:[#allocation2 + $0x20] sm:$0xff] %v532
        %535 = vst [vmem:[#allocation2 + $0x28] sm:$0xff] %v533
        %536 = vrot.lane.b32.xlu0 %v467, 13
        %v537 = vpop.permute.xlu0 %536
        %538 = vrot.lane.b32.xlu0 %v487, 13
        %v539 = vpop.permute.xlu0 %538
        %vm540 = vcmask 105472
        %v541 = vsel %vm540, %v537, %v539
        %v544 = vsel %vm540, 0.0, %v537
        %v545 = vld [vmem:[#allocation3 + $0x30] sm:$0xff]
        %v546 = vld [vmem:[#allocation3 + $0x38] sm:$0xff]
        %v547 = vmul.f32 %v544, %v545
        %v548 = vmul.f32 %v541, %v546
        %549 = vst [vmem:[#allocation2 + $0x30] sm:$0xff] %v547
        %550 = vst [vmem:[#allocation2 + $0x38] sm:$0xff] %v548
        %551 = vrot.lane.b32.xlu0 %v467, 12
        %v552 = vpop.permute.xlu0 %551
        %553 = vrot.lane.b32.xlu0 %v487, 12
        %v554 = vpop.permute.xlu0 %553
        %vm555 = vcmask 97280
        %v556 = vsel %vm555, %v552, %v554
        %v559 = vsel %vm555, 0.0, %v552
        %v560 = vld [vmem:[#allocation3 + $0x40] sm:$0xff]
        %v561 = vld [vmem:[#allocation3 + $0x48] sm:$0xff]
        %v562 = vmul.f32 %v559, %v560
        %v563 = vmul.f32 %v556, %v561
        %564 = vst [vmem:[#allocation2 + $0x40] sm:$0xff] %v562
        %565 = vst [vmem:[#allocation2 + $0x48] sm:$0xff] %v563
        %566 = vrot.lane.b32.xlu0 %v467, 11
        %v567 = vpop.permute.xlu0 %566
        %568 = vrot.lane.b32.xlu0 %v487, 11
        %v569 = vpop.permute.xlu0 %568
        %vm570 = vcmask 89088
        %v571 = vsel %vm570, %v567, %v569
        %v574 = vsel %vm570, 0.0, %v567
        %v575 = vld [vmem:[#allocation3 + $0x50] sm:$0xff]
        %v576 = vld [vmem:[#allocation3 + $0x58] sm:$0xff]
        %v577 = vmul.f32 %v574, %v575
        %v578 = vmul.f32 %v571, %v576
        %579 = vst [vmem:[#allocation2 + $0x50] sm:$0xff] %v577
        %580 = vst [vmem:[#allocation2 + $0x58] sm:$0xff] %v578
        %581 = vrot.lane.b32.xlu0 %v467, 10
        %v582 = vpop.permute.xlu0 %581
        %583 = vrot.lane.b32.xlu0 %v487, 10
        %v584 = vpop.permute.xlu0 %583
        %vm585 = vcmask 80896
        %v586 = vsel %vm585, %v582, %v584
        %v589 = vsel %vm585, 0.0, %v582
        %v590 = vld [vmem:[#allocation3 + $0x60] sm:$0xff]
        %v591 = vld [vmem:[#allocation3 + $0x68] sm:$0xff]
        %v592 = vmul.f32 %v589, %v590
        %v593 = vmul.f32 %v586, %v591
        %594 = vst [vmem:[#allocation2 + $0x60] sm:$0xff] %v592
        %595 = vst [vmem:[#allocation2 + $0x68] sm:$0xff] %v593
        %596 = vrot.lane.b32.xlu0 %v467, 9
        %v597 = vpop.permute.xlu0 %596
        %598 = vrot.lane.b32.xlu0 %v487, 9
        %v599 = vpop.permute.xlu0 %598
        %vm600 = vcmask 72704
        %v601 = vsel %vm600, %v597, %v599
        %v604 = vsel %vm600, 0.0, %v597
        %v605 = vld [vmem:[#allocation3 + $0x70] sm:$0xff]
        %v606 = vld [vmem:[#allocation3 + $0x78] sm:$0xff]
        %v607 = vmul.f32 %v604, %v605
        %v608 = vmul.f32 %v601, %v606
        %609 = vst [vmem:[#allocation2 + $0x70] sm:$0xff] %v607
        %610 = vst [vmem:[#allocation2 + $0x78] sm:$0xff] %v608
        %611 = vrot.lane.b32.xlu0 %v467, 8
        %v612 = vpop.permute.xlu0 %611
        %613 = vrot.lane.b32.xlu0 %v487, 8
        %v614 = vpop.permute.xlu0 %613
        %v615 = vsel %vm445, %v612, %v614
        %v618 = vsel %vm445, 0.0, %v612
        %v619 = vld [vmem:[#allocation3 + $0x80] sm:$0xff]
        %v620 = vld [vmem:[#allocation3 + $0x88] sm:$0xff]
        %v621 = vmul.f32 %v618, %v619
        %v622 = vmul.f32 %v615, %v620
        %623 = vst [vmem:[#allocation2 + $0x80] sm:$0xff] %v621
        %624 = vst [vmem:[#allocation2 + $0x88] sm:$0xff] %v622
        %625 = vrot.lane.b32.xlu0 %v467, 7
        %v626 = vpop.permute.xlu0 %625
        %627 = vrot.lane.b32.xlu0 %v487, 7
        %v628 = vpop.permute.xlu0 %627
        %vm629 = vcmask 56320
        %v630 = vsel %vm629, %v626, %v628
        %v633 = vsel %vm629, 0.0, %v626
        %v634 = vld [vmem:[#allocation3 + $0x90] sm:$0xff]
        %v635 = vld [vmem:[#allocation3 + $0x98] sm:$0xff]
        %v636 = vmul.f32 %v633, %v634
        %v637 = vmul.f32 %v630, %v635
        %638 = vst [vmem:[#allocation2 + $0x90] sm:$0xff] %v636
        %639 = vst [vmem:[#allocation2 + $0x98] sm:$0xff] %v637
        %640 = vrot.lane.b32.xlu0 %v467, 6
        %v641 = vpop.permute.xlu0 %640
        %642 = vrot.lane.b32.xlu0 %v487, 6
        %v643 = vpop.permute.xlu0 %642
        %vm644 = vcmask 48128
        %v645 = vsel %vm644, %v641, %v643
        %v648 = vsel %vm644, 0.0, %v641
        %v649 = vld [vmem:[#allocation3 + $0xa0] sm:$0xff]
        %v650 = vld [vmem:[#allocation3 + $0xa8] sm:$0xff]
        %v651 = vmul.f32 %v648, %v649
        %v652 = vmul.f32 %v645, %v650
        %653 = vst [vmem:[#allocation2 + $0xa0] sm:$0xff] %v651
        %654 = vst [vmem:[#allocation2 + $0xa8] sm:$0xff] %v652
        %655 = vrot.lane.b32.xlu0 %v467, 5
        %v656 = vpop.permute.xlu0 %655
        %657 = vrot.lane.b32.xlu0 %v487, 5
        %v658 = vpop.permute.xlu0 %657
        %vm659 = vcmask 39936
        %v660 = vsel %vm659, %v656, %v658
        %v663 = vsel %vm659, 0.0, %v656
        %v664 = vld [vmem:[#allocation3 + $0xb0] sm:$0xff]
        %v665 = vld [vmem:[#allocation3 + $0xb8] sm:$0xff]
        %v666 = vmul.f32 %v663, %v664
        %v667 = vmul.f32 %v660, %v665
        %668 = vst [vmem:[#allocation2 + $0xb0] sm:$0xff] %v666
        %669 = vst [vmem:[#allocation2 + $0xb8] sm:$0xff] %v667
        %670 = vrot.lane.b32.xlu0 %v467, 4
        %v671 = vpop.permute.xlu0 %670
        %672 = vrot.lane.b32.xlu0 %v487, 4
        %v673 = vpop.permute.xlu0 %672
        %vm674 = vcmask 31744
        %v675 = vsel %vm674, %v671, %v673
        %v678 = vsel %vm674, 0.0, %v671
        %v679 = vld [vmem:[#allocation3 + $0xc0] sm:$0xff]
        %v680 = vld [vmem:[#allocation3 + $0xc8] sm:$0xff]
        %v681 = vmul.f32 %v678, %v679
        %v682 = vmul.f32 %v675, %v680
        %683 = vst [vmem:[#allocation2 + $0xc0] sm:$0xff] %v681
        %684 = vst [vmem:[#allocation2 + $0xc8] sm:$0xff] %v682
        %685 = vrot.lane.b32.xlu0 %v467, 3
        %v686 = vpop.permute.xlu0 %685
        %687 = vrot.lane.b32.xlu0 %v487, 3
        %v688 = vpop.permute.xlu0 %687
        %vm689 = vcmask 23552
        %v690 = vsel %vm689, %v686, %v688
        %v693 = vsel %vm689, 0.0, %v686
        %v694 = vld [vmem:[#allocation3 + $0xd0] sm:$0xff]
        %v695 = vld [vmem:[#allocation3 + $0xd8] sm:$0xff]
        %v696 = vmul.f32 %v693, %v694
        %v697 = vmul.f32 %v690, %v695
        %698 = vst [vmem:[#allocation2 + $0xd0] sm:$0xff] %v696
        %699 = vst [vmem:[#allocation2 + $0xd8] sm:$0xff] %v697
        %700 = vrot.lane.b32.xlu0 %v467, 2
        %v701 = vpop.permute.xlu0 %700
        %702 = vrot.lane.b32.xlu0 %v487, 2
        %v703 = vpop.permute.xlu0 %702
        %vm704 = vcmask 15360
        %v705 = vsel %vm704, %v701, %v703
        %v708 = vsel %vm704, 0.0, %v701
        %v709 = vld [vmem:[#allocation3 + $0xe0] sm:$0xff]
        %v710 = vld [vmem:[#allocation3 + $0xe8] sm:$0xff]
        %v711 = vmul.f32 %v708, %v709
        %v712 = vmul.f32 %v705, %v710
        %713 = vst [vmem:[#allocation2 + $0xe0] sm:$0xff] %v711
        %714 = vst [vmem:[#allocation2 + $0xe8] sm:$0xff] %v712
        %715 = vrot.lane.b32.xlu0 %v467, 1
        %v716 = vpop.permute.xlu0 %715
        %717 = vrot.lane.b32.xlu0 %v487, 1
        %v718 = vpop.permute.xlu0 %717
        %vm719 = vcmask 7168
        %v720 = vsel %vm719, %v716, %v718
        %v723 = vsel %vm719, 0.0, %v716
        %v724 = vld [vmem:[#allocation3 + $0xf0] sm:$0xff]
        %v725 = vld [vmem:[#allocation3 + $0xf8] sm:$0xff]
        %v726 = vmul.f32 %v723, %v724
        %v727 = vmul.f32 %v720, %v725
        %728 = vst [vmem:[#allocation2 + $0xf0] sm:$0xff] %v726
        %729 = vst [vmem:[#allocation2 + $0xf8] sm:$0xff] %v727
        %v730 = vld [vmem:[#allocation3 + $0x100] sm:$0xff]
        %v731 = vld [vmem:[#allocation3 + $0x108] sm:$0xff]
        %v732 = vmul.f32 %v467, %v730
        %v733 = vmul.f32 %v487, %v731
        %734 = vst [vmem:[#allocation2 + $0x100] sm:$0xff] %v732
        %735 = vst [vmem:[#allocation2 + $0x108] sm:$0xff] %v733
        %736 = vrot.lane.b32.xlu0 %v467, 127
        %v737 = vpop.permute.xlu0 %736
        %738 = vrot.lane.b32.xlu0 %v487, 127
        %v739 = vpop.permute.xlu0 %738
        %vm740 = vcmask 1039360
        %v741 = vsel %vm740, %v737, %v739
        %v744 = vsel %vm740, %v739, 0.0
        %v745 = vld [vmem:[#allocation3 + $0x110] sm:$0xff]
        %v746 = vld [vmem:[#allocation3 + $0x118] sm:$0xff]
        %v747 = vmul.f32 %v741, %v745
        %v748 = vmul.f32 %v744, %v746
        %749 = vst [vmem:[#allocation2 + $0x110] sm:$0xff] %v747
        %750 = vst [vmem:[#allocation2 + $0x118] sm:$0xff] %v748
        %751 = vrot.lane.b32.xlu0 %v467, 126
        %v752 = vpop.permute.xlu0 %751
        %753 = vrot.lane.b32.xlu0 %v487, 126
        %v754 = vpop.permute.xlu0 %753
        %vm755 = vcmask 1031168
        %v756 = vsel %vm755, %v752, %v754
        %v759 = vsel %vm755, %v754, 0.0
        %v760 = vld [vmem:[#allocation3 + $0x120] sm:$0xff]
        %v761 = vld [vmem:[#allocation3 + $0x128] sm:$0xff]
        %v762 = vmul.f32 %v756, %v760
        %v763 = vmul.f32 %v759, %v761
        %764 = vst [vmem:[#allocation2 + $0x120] sm:$0xff] %v762
        %765 = vst [vmem:[#allocation2 + $0x128] sm:$0xff] %v763
        %766 = vrot.lane.b32.xlu0 %v467, 125
        %v767 = vpop.permute.xlu0 %766
        %768 = vrot.lane.b32.xlu0 %v487, 125
        %v769 = vpop.permute.xlu0 %768
        %vm770 = vcmask 1022976
        %v771 = vsel %vm770, %v767, %v769
        %v774 = vsel %vm770, %v769, 0.0
        %v775 = vld [vmem:[#allocation3 + $0x130] sm:$0xff]
        %v776 = vld [vmem:[#allocation3 + $0x138] sm:$0xff]
        %v777 = vmul.f32 %v771, %v775
        %v778 = vmul.f32 %v774, %v776
        %779 = vst [vmem:[#allocation2 + $0x130] sm:$0xff] %v777
        %780 = vst [vmem:[#allocation2 + $0x138] sm:$0xff] %v778
        %781 = vrot.lane.b32.xlu0 %v467, 124
        %v782 = vpop.permute.xlu0 %781
        %783 = vrot.lane.b32.xlu0 %v487, 124
        %v784 = vpop.permute.xlu0 %783
        %vm785 = vcmask 1014784
        %v786 = vsel %vm785, %v782, %v784
        %v789 = vsel %vm785, %v784, 0.0
        %v790 = vld [vmem:[#allocation3 + $0x140] sm:$0xff]
        %v791 = vld [vmem:[#allocation3 + $0x148] sm:$0xff]
        %v792 = vmul.f32 %v786, %v790
        %v793 = vmul.f32 %v789, %v791
        %794 = vst [vmem:[#allocation2 + $0x140] sm:$0xff] %v792
        %795 = vst [vmem:[#allocation2 + $0x148] sm:$0xff] %v793
        %796 = vrot.lane.b32.xlu0 %v467, 123
        %v797 = vpop.permute.xlu0 %796
        %798 = vrot.lane.b32.xlu0 %v487, 123
        %v799 = vpop.permute.xlu0 %798
        %vm800 = vcmask 1006592
        %v801 = vsel %vm800, %v797, %v799
        %v804 = vsel %vm800, %v799, 0.0
        %v805 = vld [vmem:[#allocation3 + $0x150] sm:$0xff]
        %v806 = vld [vmem:[#allocation3 + $0x158] sm:$0xff]
        %v807 = vmul.f32 %v801, %v805
        %v808 = vmul.f32 %v804, %v806
        %809 = vst [vmem:[#allocation2 + $0x150] sm:$0xff] %v807
        %810 = vst [vmem:[#allocation2 + $0x158] sm:$0xff] %v808
        %811 = vrot.lane.b32.xlu0 %v467, 122
        %v812 = vpop.permute.xlu0 %811
        %813 = vrot.lane.b32.xlu0 %v487, 122
        %v814 = vpop.permute.xlu0 %813
        %vm815 = vcmask 998400
        %v816 = vsel %vm815, %v812, %v814
        %v819 = vsel %vm815, %v814, 0.0
        %v820 = vld [vmem:[#allocation3 + $0x160] sm:$0xff]
        %v821 = vld [vmem:[#allocation3 + $0x168] sm:$0xff]
        %v822 = vmul.f32 %v816, %v820
        %v823 = vmul.f32 %v819, %v821
        %824 = vst [vmem:[#allocation2 + $0x160] sm:$0xff] %v822
        %825 = vst [vmem:[#allocation2 + $0x168] sm:$0xff] %v823
        %826 = vrot.lane.b32.xlu0 %v467, 121
        %v827 = vpop.permute.xlu0 %826
        %828 = vrot.lane.b32.xlu0 %v487, 121
        %v829 = vpop.permute.xlu0 %828
        %vm830 = vcmask 990208
        %v831 = vsel %vm830, %v827, %v829
        %v834 = vsel %vm830, %v829, 0.0
        %v835 = vld [vmem:[#allocation3 + $0x170] sm:$0xff]
        %v836 = vld [vmem:[#allocation3 + $0x178] sm:$0xff]
        %v837 = vmul.f32 %v831, %v835
        %v838 = vmul.f32 %v834, %v836
        %839 = vst [vmem:[#allocation2 + $0x170] sm:$0xff] %v837
        %840 = vst [vmem:[#allocation2 + $0x178] sm:$0xff] %v838
        %841 = vrot.lane.b32.xlu0 %v467, 120
        %v842 = vpop.permute.xlu0 %841
        %843 = vrot.lane.b32.xlu0 %v487, 120
        %v844 = vpop.permute.xlu0 %843
        %vm845 = vcmask 982016
        %v846 = vsel %vm845, %v842, %v844
        %v849 = vsel %vm845, %v844, 0.0
        %v850 = vld [vmem:[#allocation3 + $0x180] sm:$0xff]
        %v851 = vld [vmem:[#allocation3 + $0x188] sm:$0xff]
        %v852 = vmul.f32 %v846, %v850
        %v853 = vmul.f32 %v849, %v851
        %854 = vst [vmem:[#allocation2 + $0x180] sm:$0xff] %v852
        %855 = vst [vmem:[#allocation2 + $0x188] sm:$0xff] %v853
        %856 = vrot.lane.b32.xlu0 %v467, 119
        %v857 = vpop.permute.xlu0 %856
        %858 = vrot.lane.b32.xlu0 %v487, 119
        %v859 = vpop.permute.xlu0 %858
        %vm860 = vcmask 973824
        %v861 = vsel %vm860, %v857, %v859
        %v864 = vsel %vm860, %v859, 0.0
        %v865 = vld [vmem:[#allocation3 + $0x190] sm:$0xff]
        %v866 = vld [vmem:[#allocation3 + $0x198] sm:$0xff]
        %v867 = vmul.f32 %v861, %v865
        %v868 = vmul.f32 %v864, %v866
        %869 = vst [vmem:[#allocation2 + $0x190] sm:$0xff] %v867
        %870 = vst [vmem:[#allocation2 + $0x198] sm:$0xff] %v868
        %871 = vrot.lane.b32.xlu0 %v467, 118
        %v872 = vpop.permute.xlu0 %871
        %873 = vrot.lane.b32.xlu0 %v487, 118
        %v874 = vpop.permute.xlu0 %873
        %vm875 = vcmask 965632
        %v876 = vsel %vm875, %v872, %v874
        %v879 = vsel %vm875, %v874, 0.0
        %v880 = vld [vmem:[#allocation3 + $0x1a0] sm:$0xff]
        %v881 = vld [vmem:[#allocation3 + $0x1a8] sm:$0xff]
        %v882 = vmul.f32 %v876, %v880
        %v883 = vmul.f32 %v879, %v881
        %884 = vst [vmem:[#allocation2 + $0x1a0] sm:$0xff] %v882
        %885 = vst [vmem:[#allocation2 + $0x1a8] sm:$0xff] %v883
        %886 = vrot.lane.b32.xlu0 %v467, 117
        %v887 = vpop.permute.xlu0 %886
        %888 = vrot.lane.b32.xlu0 %v487, 117
        %v889 = vpop.permute.xlu0 %888
        %vm890 = vcmask 957440
        %v891 = vsel %vm890, %v887, %v889
        %v894 = vsel %vm890, %v889, 0.0
        %v895 = vld [vmem:[#allocation3 + $0x1b0] sm:$0xff]
        %v896 = vld [vmem:[#allocation3 + $0x1b8] sm:$0xff]
        %v897 = vmul.f32 %v891, %v895
        %v898 = vmul.f32 %v894, %v896
        %899 = vst [vmem:[#allocation2 + $0x1b0] sm:$0xff] %v897
        %900 = vst [vmem:[#allocation2 + $0x1b8] sm:$0xff] %v898
        %901 = vrot.lane.b32.xlu0 %v467, 116
        %v902 = vpop.permute.xlu0 %901
        %903 = vrot.lane.b32.xlu0 %v487, 116
        %v904 = vpop.permute.xlu0 %903
        %vm905 = vcmask 949248
        %v906 = vsel %vm905, %v902, %v904
        %v909 = vsel %vm905, %v904, 0.0
        %v910 = vld [vmem:[#allocation3 + $0x1c0] sm:$0xff]
        %v911 = vld [vmem:[#allocation3 + $0x1c8] sm:$0xff]
        %v912 = vmul.f32 %v906, %v910
        %v913 = vmul.f32 %v909, %v911
        %914 = vst [vmem:[#allocation2 + $0x1c0] sm:$0xff] %v912
        %915 = vst [vmem:[#allocation2 + $0x1c8] sm:$0xff] %v913
        %916 = vrot.lane.b32.xlu0 %v467, 115
        %v917 = vpop.permute.xlu0 %916
        %918 = vrot.lane.b32.xlu0 %v487, 115
        %v919 = vpop.permute.xlu0 %918
        %vm920 = vcmask 941056
        %v921 = vsel %vm920, %v917, %v919
        %v924 = vsel %vm920, %v919, 0.0
        %v925 = vld [vmem:[#allocation3 + $0x1d0] sm:$0xff]
        %v926 = vld [vmem:[#allocation3 + $0x1d8] sm:$0xff]
        %v927 = vmul.f32 %v921, %v925
        %v928 = vmul.f32 %v924, %v926
        %929 = vst [vmem:[#allocation2 + $0x1d0] sm:$0xff] %v927
        %930 = vst [vmem:[#allocation2 + $0x1d8] sm:$0xff] %v928
        %931 = vrot.lane.b32.xlu0 %v467, 114
        %v932 = vpop.permute.xlu0 %931
        %933 = vrot.lane.b32.xlu0 %v487, 114
        %v934 = vpop.permute.xlu0 %933
        %vm935 = vcmask 932864
        %v936 = vsel %vm935, %v932, %v934
        %v939 = vsel %vm935, %v934, 0.0
        %v940 = vld [vmem:[#allocation3 + $0x1e0] sm:$0xff]
        %v941 = vld [vmem:[#allocation3 + $0x1e8] sm:$0xff]
        %v942 = vmul.f32 %v936, %v940
        %v943 = vmul.f32 %v939, %v941
        %944 = vst [vmem:[#allocation2 + $0x1e0] sm:$0xff] %v942
        %945 = vst [vmem:[#allocation2 + $0x1e8] sm:$0xff] %v943
        %946 = vrot.lane.b32.xlu0 %v467, 113
        %v947 = vpop.permute.xlu0 %946
        %948 = vrot.lane.b32.xlu0 %v487, 113
        %v949 = vpop.permute.xlu0 %948
        %vm950 = vcmask 924672
        %v951 = vsel %vm950, %v947, %v949
        %v954 = vsel %vm950, %v949, 0.0
        %v955 = vld [vmem:[#allocation3 + $0x1f0] sm:$0xff]
        %v956 = vld [vmem:[#allocation3 + $0x1f8] sm:$0xff]
        %v957 = vmul.f32 %v951, %v955
        %v958 = vmul.f32 %v954, %v956
        %959 = vst [vmem:[#allocation2 + $0x1f0] sm:$0xff] %v957
        %960 = vst [vmem:[#allocation2 + $0x1f8] sm:$0xff] %v958
        %961 = vrot.lane.b32.xlu0 %v467, 112
        %v962 = vpop.permute.xlu0 %961
        %963 = vrot.lane.b32.xlu0 %v487, 112
        %v964 = vpop.permute.xlu0 %963
        %vm965 = vcmask 916480
        %v966 = vsel %vm965, %v962, %v964
        %v969 = vsel %vm965, %v964, 0.0
        %v970 = vld [vmem:[#allocation3 + $0x200] sm:$0xff]
        %v971 = vld [vmem:[#allocation3 + $0x208] sm:$0xff]
        %v972 = vmul.f32 %v966, %v970
        %v973 = vmul.f32 %v969, %v971
        %974 = vst [vmem:[#allocation2 + $0x200] sm:$0xff] %v972
        %975 = vst [vmem:[#allocation2 + $0x208] sm:$0xff] %v973
        %v976 = vld [vmem:[#allocation2 + $0xf0] sm:$0xff]
        %v977 = vld [vmem:[#allocation2 + $0xf8] sm:$0xff]
        %v978 = vld [vmem:[#allocation2 + $0x100] sm:$0xff]
        %v979 = vld [vmem:[#allocation2 + $0x108] sm:$0xff]
        %v980 = vld [vmem:[#allocation2 + $0x110] sm:$0xff]
        %v981 = vld [vmem:[#allocation2 + $0x118] sm:$0xff]
        %v982 = vld [vmem:[%s2] sm:$0xff]
        %v983 = vld [vmem:[%s2 + $0x8] sm:$0xff]
        %v984 = vld [vmem:[%s2 + $0x10] sm:$0xff]
        %v985 = vld [vmem:[%s2 + $0x18] sm:$0x7]
        %vm986 = vcmask 195584
        %v988 = vsel %vm986, %v982, 0
        %v991 = vsel %vm986, %v983, 0
        %v994 = vsel %vm986, %v984, 0
        %v997 = vsel %vm986, %v985, 0
        %999 = vmatpush.msra.mxu0 0.0
        %1000 = vmatpush.msra.mxu0 0.0
        %1001 = vmatpush.msra.mxu0 0.0
        %1002 = vmatpush.msra.mxu0 0.0
        %1003 = vmatpush.msra.mxu0 0.0
        %1004 = vmatpush.msra.mxu0 0.0
        %1005 = vmatpush.msra.mxu0 0.0
        %1006 = vmatpush.msra.mxu0 0.0
        %1007 = vmatpush.msra.mxu0 0.0
        %1008 = vmatpush.msra.mxu0 0.0
        %1009 = vmatpush.msra.mxu0 0.0
        %1010 = vmatpush.msra.mxu0 0.0
        %1011 = vmatpush.msra.mxu0 0.0
        %1012 = vmatpush.msra.mxu0 %v980
        %1013 = vmatpush.msra.mxu0 %v978
        %1014 = vmatpush.msra.mxu0 %v976
        %1015 = vmatmul.f32.gmra.mxu0 %v988
        %v1016 = vpop.f32.mrf.mxu0
        %v1017 = vadd.f32 0.0, %v1016
        %1018 = vmatmul.f32.gmra.mxu0 %v991
        %v1019 = vpop.f32.mrf.mxu0
        %v1020 = vadd.f32 0.0, %v1019
        %1021 = vmatmul.f32.gmra.mxu0 %v994
        %v1022 = vpop.f32.mrf.mxu0
        %v1023 = vadd.f32 0.0, %v1022
        %1024 = vmatmul.f32.gmra.mxu0 %v997
        %v1025 = vpop.f32.mrf.mxu0
        %v1026 = vadd.f32 0.0, %v1025
        %1027 = vdwg.mxu0
        %1028 = vmatpush.msra.mxu0 0.0
        %1029 = vmatpush.msra.mxu0 0.0
        %1030 = vmatpush.msra.mxu0 0.0
        %1031 = vmatpush.msra.mxu0 0.0
        %1032 = vmatpush.msra.mxu0 0.0
        %1033 = vmatpush.msra.mxu0 0.0
        %1034 = vmatpush.msra.mxu0 0.0
        %1035 = vmatpush.msra.mxu0 0.0
        %1036 = vmatpush.msra.mxu0 0.0
        %1037 = vmatpush.msra.mxu0 0.0
        %1038 = vmatpush.msra.mxu0 0.0
        %1039 = vmatpush.msra.mxu0 0.0
        %1040 = vmatpush.msra.mxu0 0.0
        %1041 = vmatpush.msra.mxu0 %v981
        %1042 = vmatpush.msra.mxu0 %v979
        %1043 = vmatpush.msra.mxu0 %v977
        %1044 = vmatmul.f32.gmra.mxu0 %v988
        %v1045 = vpop.f32.mrf.mxu0
        %v1046 = vadd.f32 0.0, %v1045
        %1047 = vmatmul.f32.gmra.mxu0 %v991
        %v1048 = vpop.f32.mrf.mxu0
        %v1049 = vadd.f32 0.0, %v1048
        %1050 = vmatmul.f32.gmra.mxu0 %v994
        %v1051 = vpop.f32.mrf.mxu0
        %v1052 = vadd.f32 0.0, %v1051
        %1053 = vmatmul.f32.gmra.mxu0 %v997
        %v1054 = vpop.f32.mrf.mxu0
        %v1055 = vadd.f32 0.0, %v1054
        %1056 = vdwg.mxu0
        %1061 = vrot.lane.b32.xlu0 %v1017, 16
        %v1062 = vpop.permute.xlu0 %1061
        %1063 = vrot.lane.b32.xlu0 %v1046, 16
        %v1064 = vpop.permute.xlu0 %1063
        %1065 = vrot.lane.b32.xlu0 %v1020, 16
        %v1066 = vpop.permute.xlu0 %1065
        %1067 = vrot.lane.b32.xlu0 %v1049, 16
        %v1068 = vpop.permute.xlu0 %1067
        %v1069 = vsel %vm495, %v1062, %v1064
        %v1070 = vsel %vm495, %v1066, %v1068
        %v1075 = vsel %vm495, 0.0, %v1062
        %v1076 = vsel %vm495, 0.0, %v1066
        %v1077 = vadd.f32 %v1075, 0.0
        %v1078 = vadd.f32 %v1069, 0.0
        %v1079 = vadd.f32 %v1076, 0.0
        %v1080 = vadd.f32 %v1070, 0.0
        %vm1083 = vcmask 1046528
        %v1084 = vrot.slane %v1020, 1
        %v1085 = vrot.slane %v1023, 1
        %v1086 = vsel %vm1083, %v1084, %v1085
        %v1087 = vrot.slane %v1049, 1
        %v1088 = vrot.slane %v1052, 1
        %v1089 = vsel %vm1083, %v1087, %v1088
        %v1094 = vadd.f32 %v1077, %v1086
        %v1095 = vadd.f32 %v1078, %v1089
        %v1096 = vadd.f32 %v1079, %v1085
        %v1097 = vadd.f32 %v1080, %v1088
        %1100 = vrot.lane.b32.xlu0 %v1023, 112
        %v1101 = vpop.permute.xlu0 %1100
        %1102 = vrot.lane.b32.xlu0 %v1052, 112
        %v1103 = vpop.permute.xlu0 %1102
        %1104 = vrot.lane.b32.xlu0 %v1026, 112
        %v1105 = vpop.permute.xlu0 %1104
        %1106 = vrot.lane.b32.xlu0 %v1055, 112
        %v1107 = vpop.permute.xlu0 %1106
        %v1108 = vsel %vm965, %v1101, %v1103
        %v1109 = vsel %vm965, %v1105, %v1107
        %v1112 = vsel %vm965, %v1103, 0.0
        %v1113 = vsel %vm965, %v1107, 0.0
        %vm1116 = vcmask 1045504
        %v1117 = vrot.slane %v1108, 2
        %v1118 = vrot.slane %v1109, 2
        %v1119 = vsel %vm1116, %v1117, %v1118
        %v1120 = vrot.slane %v1112, 2
        %v1121 = vrot.slane %v1113, 2
        %v1122 = vsel %vm1116, %v1120, %v1121
        %v1127 = vadd.f32 %v1094, %v1119
        %v1128 = vadd.f32 %v1095, %v1122
        %v1129 = vadd.f32 %v1096, %v1118
        %v1130 = vadd.f32 %v1097, %v1121
        %1131 = vst [vmem:[%s437] sm:$0xff] %v1127
        %1132 = vst [vmem:[%s437 + $0x8] sm:$0xff] %v1128
        %1133 = vst [vmem:[%s437 + $0x10] sm:$0x1] %v1129
        %1134 = vst [vmem:[%s437 + $0x18] sm:$0x1] %v1130
        %v1135 = vld [vmem:[#allocation2 + $0xe0] sm:$0xff]
        %v1136 = vld [vmem:[#allocation2 + $0xe8] sm:$0xff]
        %v1137 = vld [vmem:[#allocation2 + $0xf0] sm:$0xff]
        %v1138 = vld [vmem:[#allocation2 + $0xf8] sm:$0xff]
        %v1139 = vld [vmem:[#allocation2 + $0x100] sm:$0xff]
        %v1140 = vld [vmem:[#allocation2 + $0x108] sm:$0xff]
        %v1141 = vld [vmem:[#allocation2 + $0x110] sm:$0xff]
        %v1142 = vld [vmem:[#allocation2 + $0x118] sm:$0xff]
        %v1143 = vld [vmem:[#allocation2 + $0x120] sm:$0xff]
        %v1144 = vld [vmem:[#allocation2 + $0x128] sm:$0xff]
        %v1145 = vld [vmem:[%s3] sm:$0xff]
        %v1146 = vld [vmem:[%s3 + $0x8] sm:$0xff]
        %v1147 = vld [vmem:[%s3 + $0x10] sm:$0xff]
        %v1148 = vld [vmem:[%s3 + $0x18] sm:$0xff]
        %v1149 = vld [vmem:[%s3 + $0x20] sm:$0x7]
        %vm1150 = vcmask 326656
        %v1152 = vsel %vm1150, %v1145, 0
        %v1155 = vsel %vm1150, %v1146, 0
        %v1158 = vsel %vm1150, %v1147, 0
        %v1161 = vsel %vm1150, %v1148, 0
        %v1164 = vsel %vm1150, %v1149, 0
        %1166 = vmatpush.msra.mxu0 0.0
        %1167 = vmatpush.msra.mxu0 0.0
        %1168 = vmatpush.msra.mxu0 0.0
        %1169 = vmatpush.msra.mxu0 0.0
        %1170 = vmatpush.msra.mxu0 0.0
        %1171 = vmatpush.msra.mxu0 0.0
        %1172 = vmatpush.msra.mxu0 0.0
        %1173 = vmatpush.msra.mxu0 0.0
        %1174 = vmatpush.msra.mxu0 0.0
        %1175 = vmatpush.msra.mxu0 0.0
        %1176 = vmatpush.msra.mxu0 0.0
        %1177 = vmatpush.msra.mxu0 %v1143
        %1178 = vmatpush.msra.mxu0 %v1141
        %1179 = vmatpush.msra.mxu0 %v1139
        %1180 = vmatpush.msra.mxu0 %v1137
        %1181 = vmatpush.msra.mxu0 %v1135
        %1182 = vmatmul.f32.gmra.mxu0 %v1152
        %v1183 = vpop.f32.mrf.mxu0
        %v1184 = vadd.f32 0.0, %v1183
        %1185 = vmatmul.f32.gmra.mxu0 %v1155
        %v1186 = vpop.f32.mrf.mxu0
        %v1187 = vadd.f32 0.0, %v1186
        %1188 = vmatmul.f32.gmra.mxu0 %v1158
        %v1189 = vpop.f32.mrf.mxu0
        %v1190 = vadd.f32 0.0, %v1189
        %1191 = vmatmul.f32.gmra.mxu0 %v1161
        %v1192 = vpop.f32.mrf.mxu0
        %v1193 = vadd.f32 0.0, %v1192
        %1194 = vmatmul.f32.gmra.mxu0 %v1164
        %v1195 = vpop.f32.mrf.mxu0
        %v1196 = vadd.f32 0.0, %v1195
        %1197 = vdwg.mxu0
        %1198 = vmatpush.msra.mxu0 0.0
        %1199 = vmatpush.msra.mxu0 0.0
        %1200 = vmatpush.msra.mxu0 0.0
        %1201 = vmatpush.msra.mxu0 0.0
        %1202 = vmatpush.msra.mxu0 0.0
        %1203 = vmatpush.msra.mxu0 0.0
        %1204 = vmatpush.msra.mxu0 0.0
        %1205 = vmatpush.msra.mxu0 0.0
        %1206 = vmatpush.msra.mxu0 0.0
        %1207 = vmatpush.msra.mxu0 0.0
        %1208 = vmatpush.msra.mxu0 0.0
        %1209 = vmatpush.msra.mxu0 %v1144
        %1210 = vmatpush.msra.mxu0 %v1142
        %1211 = vmatpush.msra.mxu0 %v1140
        %1212 = vmatpush.msra.mxu0 %v1138
        %1213 = vmatpush.msra.mxu0 %v1136
        %1214 = vmatmul.f32.gmra.mxu0 %v1152
        %v1215 = vpop.f32.mrf.mxu0
        %v1216 = vadd.f32 0.0, %v1215
        %1217 = vmatmul.f32.gmra.mxu0 %v1155
        %v1218 = vpop.f32.mrf.mxu0
        %v1219 = vadd.f32 0.0, %v1218
        %1220 = vmatmul.f32.gmra.mxu0 %v1158
        %v1221 = vpop.f32.mrf.mxu0
        %v1222 = vadd.f32 0.0, %v1221
        %1223 = vmatmul.f32.gmra.mxu0 %v1161
        %v1224 = vpop.f32.mrf.mxu0
        %v1225 = vadd.f32 0.0, %v1224
        %1226 = vmatmul.f32.gmra.mxu0 %v1164
        %v1227 = vpop.f32.mrf.mxu0
        %v1228 = vadd.f32 0.0, %v1227
        %1229 = vdwg.mxu0
        %1232 = vrot.lane.b32.xlu0 %v1184, 32
        %v1233 = vpop.permute.xlu0 %1232
        %1234 = vrot.lane.b32.xlu0 %v1216, 32
        %v1235 = vpop.permute.xlu0 %1234
        %vm1236 = vcmask 261120
        %v1237 = vsel %vm1236, %v1233, %v1235
        %v1240 = vsel %vm1236, 0.0, %v1233
        %v1241 = vadd.f32 %v1240, 0.0
        %v1242 = vadd.f32 %v1237, 0.0
        %vm1245 = vcmask 1040384
        %v1246 = vrot.slane %v1184, 7
        %v1247 = vrot.slane %v1187, 7
        %v1248 = vsel %vm1245, %v1246, %v1247
        %v1249 = vrot.slane %v1216, 7
        %v1250 = vrot.slane %v1219, 7
        %v1251 = vsel %vm1245, %v1249, %v1250
        %1252 = vrot.lane.b32.xlu0 %v1248, 16
        %v1253 = vpop.permute.xlu0 %1252
        %1254 = vrot.lane.b32.xlu0 %v1251, 16
        %v1255 = vpop.permute.xlu0 %1254
        %v1256 = vsel %vm495, %v1253, %v1255
        %v1259 = vsel %vm495, 0.0, %v1253
        %v1260 = vadd.f32 %v1241, %v1259
        %v1261 = vadd.f32 %v1242, %v1256
        %vm1264 = vcmask 1041408
        %v1265 = vrot.slane %v1187, 6
        %v1266 = vrot.slane %v1190, 6
        %v1267 = vsel %vm1264, %v1265, %v1266
        %v1268 = vrot.slane %v1219, 6
        %v1269 = vrot.slane %v1222, 6
        %v1270 = vsel %vm1264, %v1268, %v1269
        %v1273 = vadd.f32 %v1260, %v1267
        %v1274 = vadd.f32 %v1261, %v1270
        %1277 = vrot.lane.b32.xlu0 %v1190, 112
        %v1278 = vpop.permute.xlu0 %1277
        %1279 = vrot.lane.b32.xlu0 %v1222, 112
        %v1280 = vpop.permute.xlu0 %1279
        %1281 = vrot.lane.b32.xlu0 %v1193, 112
        %v1282 = vpop.permute.xlu0 %1281
        %1283 = vrot.lane.b32.xlu0 %v1225, 112
        %v1284 = vpop.permute.xlu0 %1283
        %v1285 = vsel %vm965, %v1278, %v1280
        %v1286 = vsel %vm965, %v1282, %v1284
        %v1289 = vsel %vm965, %v1280, 0.0
        %v1290 = vsel %vm965, %v1284, 0.0
        %vm1293 = vcmask 1042432
        %v1294 = vrot.slane %v1285, 5
        %v1295 = vrot.slane %v1286, 5
        %v1296 = vsel %vm1293, %v1294, %v1295
        %v1297 = vrot.slane %v1289, 5
        %v1298 = vrot.slane %v1290, 5
        %v1299 = vsel %vm1293, %v1297, %v1298
        %v1302 = vadd.f32 %v1273, %v1296
        %v1303 = vadd.f32 %v1274, %v1299
        %1306 = vrot.lane.b32.xlu0 %v1193, 96
        %v1307 = vpop.permute.xlu0 %1306
        %1308 = vrot.lane.b32.xlu0 %v1225, 96
        %v1309 = vpop.permute.xlu0 %1308
        %1310 = vrot.lane.b32.xlu0 %v1196, 96
        %v1311 = vpop.permute.xlu0 %1310
        %1312 = vrot.lane.b32.xlu0 %v1228, 96
        %v1313 = vpop.permute.xlu0 %1312
        %vm1314 = vcmask 785408
        %v1315 = vsel %vm1314, %v1307, %v1309
        %v1316 = vsel %vm1314, %v1311, %v1313
        %v1319 = vsel %vm1314, %v1309, 0.0
        %v1320 = vsel %vm1314, %v1313, 0.0
        %vm1323 = vcmask 1043456
        %v1324 = vrot.slane %v1315, 4
        %v1325 = vrot.slane %v1316, 4
        %v1326 = vsel %vm1323, %v1324, %v1325
        %v1327 = vrot.slane %v1319, 4
        %v1328 = vrot.slane %v1320, 4
        %v1329 = vsel %vm1323, %v1327, %v1328
        %v1332 = vadd.f32 %v1302, %v1326
        %v1333 = vadd.f32 %v1303, %v1329
        %v1336 = vrot.slane %v1332, 7
        %v1337 = vrot.slane %v1333, 7
        %1340 = vst [vmem:[%s437 + $0x10] sm:$0xfe] %v1336
        %1341 = vst [vmem:[%s437 + $0x18] sm:$0xfe] %v1337
        %v1342 = vld [vmem:[#allocation2 + $0xc0] sm:$0xff]
        %v1343 = vld [vmem:[#allocation2 + $0xc8] sm:$0xff]
        %v1344 = vld [vmem:[#allocation2 + $0xd0] sm:$0xff]
        %v1345 = vld [vmem:[#allocation2 + $0xd8] sm:$0xff]
        %v1346 = vld [vmem:[#allocation2 + $0xe0] sm:$0xff]
        %v1347 = vld [vmem:[#allocation2 + $0xe8] sm:$0xff]
        %v1348 = vld [vmem:[#allocation2 + $0xf0] sm:$0xff]
        %v1349 = vld [vmem:[#allocation2 + $0xf8] sm:$0xff]
        %v1350 = vld [vmem:[#allocation2 + $0x100] sm:$0xff]
        %v1351 = vld [vmem:[#allocation2 + $0x108] sm:$0xff]
        %v1352 = vld [vmem:[#allocation2 + $0x110] sm:$0xff]
        %v1353 = vld [vmem:[#allocation2 + $0x118] sm:$0xff]
        %v1354 = vld [vmem:[#allocation2 + $0x120] sm:$0xff]
        %v1355 = vld [vmem:[#allocation2 + $0x128] sm:$0xff]
        %v1356 = vld [vmem:[#allocation2 + $0x130] sm:$0xff]
        %v1357 = vld [vmem:[#allocation2 + $0x138] sm:$0xff]
        %v1358 = vld [vmem:[#allocation2 + $0x140] sm:$0xff]
        %v1359 = vld [vmem:[#allocation2 + $0x148] sm:$0xff]
        %v1360 = vld [vmem:[%s4] sm:$0xff]
        %v1361 = vld [vmem:[%s4 + $0x8] sm:$0xff]
        %v1362 = vld [vmem:[%s4 + $0x10] sm:$0xff]
        %v1363 = vld [vmem:[%s4 + $0x18] sm:$0xff]
        %v1364 = vld [vmem:[%s4 + $0x20] sm:$0xff]
        %v1365 = vld [vmem:[%s4 + $0x28] sm:$0x1f]
        %vm1366 = vcmask 588800
        %v1368 = vsel %vm1366, %v1360, 0
        %v1371 = vsel %vm1366, %v1361, 0
        %v1374 = vsel %vm1366, %v1362, 0
        %v1377 = vsel %vm1366, %v1363, 0
        %v1380 = vsel %vm1366, %v1364, 0
        %v1383 = vsel %vm1366, %v1365, 0
        %1385 = vmatpush.msra.mxu0 0.0
        %1386 = vmatpush.msra.mxu0 0.0
        %1387 = vmatpush.msra.mxu0 0.0
        %1388 = vmatpush.msra.mxu0 0.0
        %1389 = vmatpush.msra.mxu0 0.0
        %1390 = vmatpush.msra.mxu0 0.0
        %1391 = vmatpush.msra.mxu0 0.0
        %1392 = vmatpush.msra.mxu0 %v1358
        %1393 = vmatpush.msra.mxu0 %v1356
        %1394 = vmatpush.msra.mxu0 %v1354
        %1395 = vmatpush.msra.mxu0 %v1352
        %1396 = vmatpush.msra.mxu0 %v1350
        %1397 = vmatpush.msra.mxu0 %v1348
        %1398 = vmatpush.msra.mxu0 %v1346
        %1399 = vmatpush.msra.mxu0 %v1344
        %1400 = vmatpush.msra.mxu0 %v1342
        %1401 = vmatmul.f32.gmra.mxu0 %v1368
        %v1402 = vpop.f32.mrf.mxu0
        %v1403 = vadd.f32 0.0, %v1402
        %1404 = vmatmul.f32.gmra.mxu0 %v1371
        %v1405 = vpop.f32.mrf.mxu0
        %v1406 = vadd.f32 0.0, %v1405
        %1407 = vmatmul.f32.gmra.mxu0 %v1374
        %v1408 = vpop.f32.mrf.mxu0
        %v1409 = vadd.f32 0.0, %v1408
        %1410 = vmatmul.f32.gmra.mxu0 %v1377
        %v1411 = vpop.f32.mrf.mxu0
        %v1412 = vadd.f32 0.0, %v1411
        %1413 = vmatmul.f32.gmra.mxu0 %v1380
        %v1414 = vpop.f32.mrf.mxu0
        %v1415 = vadd.f32 0.0, %v1414
        %1416 = vmatmul.f32.gmra.mxu0 %v1383
        %v1417 = vpop.f32.mrf.mxu0
        %v1418 = vadd.f32 0.0, %v1417
        %1419 = vdwg.mxu0
        %1420 = vmatpush.msra.mxu0 0.0
        %1421 = vmatpush.msra.mxu0 0.0
        %1422 = vmatpush.msra.mxu0 0.0
        %1423 = vmatpush.msra.mxu0 0.0
        %1424 = vmatpush.msra.mxu0 0.0
        %1425 = vmatpush.msra.mxu0 0.0
        %1426 = vmatpush.msra.mxu0 0.0
        %1427 = vmatpush.msra.mxu0 %v1359
        %1428 = vmatpush.msra.mxu0 %v1357
        %1429 = vmatpush.msra.mxu0 %v1355
        %1430 = vmatpush.msra.mxu0 %v1353
        %1431 = vmatpush.msra.mxu0 %v1351
        %1432 = vmatpush.msra.mxu0 %v1349
        %1433 = vmatpush.msra.mxu0 %v1347
        %1434 = vmatpush.msra.mxu0 %v1345
        %1435 = vmatpush.msra.mxu0 %v1343
        %1436 = vmatmul.f32.gmra.mxu0 %v1368
        %v1437 = vpop.f32.mrf.mxu0
        %v1438 = vadd.f32 0.0, %v1437
        %1439 = vmatmul.f32.gmra.mxu0 %v1371
        %v1440 = vpop.f32.mrf.mxu0
        %v1441 = vadd.f32 0.0, %v1440
        %1442 = vmatmul.f32.gmra.mxu0 %v1374
        %v1443 = vpop.f32.mrf.mxu0
        %v1444 = vadd.f32 0.0, %v1443
        %1445 = vmatmul.f32.gmra.mxu0 %v1377
        %v1446 = vpop.f32.mrf.mxu0
        %v1447 = vadd.f32 0.0, %v1446
        %1448 = vmatmul.f32.gmra.mxu0 %v1380
        %v1449 = vpop.f32.mrf.mxu0
        %v1450 = vadd.f32 0.0, %v1449
        %1451 = vmatmul.f32.gmra.mxu0 %v1383
        %v1452 = vpop.f32.mrf.mxu0
        %v1453 = vadd.f32 0.0, %v1452
        %1454 = vdwg.mxu0
        %1457 = vrot.lane.b32.xlu0 %v1403, 64
        %v1458 = vpop.permute.xlu0 %1457
        %1459 = vrot.lane.b32.xlu0 %v1438, 64
        %v1460 = vpop.permute.xlu0 %1459
        %vm1461 = vcmask 523264
        %v1462 = vsel %vm1461, %v1458, %v1460
        %v1465 = vsel %vm1461, 0.0, %v1458
        %v1466 = vadd.f32 %v1465, 0.0
        %v1467 = vadd.f32 %v1462, 0.0
        %v1470 = vrot.slane %v1403, 5
        %v1471 = vrot.slane %v1406, 5
        %v1472 = vsel %vm1293, %v1470, %v1471
        %v1473 = vrot.slane %v1438, 5
        %v1474 = vrot.slane %v1441, 5
        %v1475 = vsel %vm1293, %v1473, %v1474
        %1476 = vrot.lane.b32.xlu0 %v1472, 48
        %v1477 = vpop.permute.xlu0 %1476
        %1478 = vrot.lane.b32.xlu0 %v1475, 48
        %v1479 = vpop.permute.xlu0 %1478
        %vm1480 = vcmask 392192
        %v1481 = vsel %vm1480, %v1477, %v1479
        %v1484 = vsel %vm1480, 0.0, %v1477
        %v1485 = vadd.f32 %v1466, %v1484
        %v1486 = vadd.f32 %v1467, %v1481
        %v1487 = vrot.slane %v1406, 2
        %v1488 = vrot.slane %v1441, 2
        %1489 = vrot.lane.b32.xlu0 %v1487, 32
        %v1490 = vpop.permute.xlu0 %1489
        %1491 = vrot.lane.b32.xlu0 %v1488, 32
        %v1492 = vpop.permute.xlu0 %1491
        %v1493 = vsel %vm1236, %v1490, %v1492
        %v1496 = vsel %vm1236, 0.0, %v1490
        %v1497 = vadd.f32 %v1485, %v1496
        %v1498 = vadd.f32 %v1486, %v1493
        %v1501 = vrot.slane %v1406, 7
        %v1502 = vrot.slane %v1409, 7
        %v1503 = vsel %vm1245, %v1501, %v1502
        %v1504 = vrot.slane %v1441, 7
        %v1505 = vrot.slane %v1444, 7
        %v1506 = vsel %vm1245, %v1504, %v1505
        %1507 = vrot.lane.b32.xlu0 %v1503, 16
        %v1508 = vpop.permute.xlu0 %1507
        %1509 = vrot.lane.b32.xlu0 %v1506, 16
        %v1510 = vpop.permute.xlu0 %1509
        %v1511 = vsel %vm495, %v1508, %v1510
        %v1514 = vsel %vm495, 0.0, %v1508
        %v1515 = vadd.f32 %v1497, %v1514
        %v1516 = vadd.f32 %v1498, %v1511
        %v1519 = vrot.slane %v1409, 4
        %v1520 = vrot.slane %v1412, 4
        %v1521 = vsel %vm1323, %v1519, %v1520
        %v1522 = vrot.slane %v1444, 4
        %v1523 = vrot.slane %v1447, 4
        %v1524 = vsel %vm1323, %v1522, %v1523
        %v1527 = vadd.f32 %v1515, %v1521
        %v1528 = vadd.f32 %v1516, %v1524
        %1529 = vrot.lane.b32.xlu0 %v1412, 112
        %v1530 = vpop.permute.xlu0 %1529
        %1531 = vrot.lane.b32.xlu0 %v1447, 112
        %v1532 = vpop.permute.xlu0 %1531
        %v1533 = vsel %vm965, %v1530, %v1532
        %v1535 = vsel %vm965, %v1532, 0.0
        %v1537 = vrot.slane %v1533, 1
        %v1538 = vrot.slane %v1535, 1
        %v1541 = vadd.f32 %v1527, %v1537
        %v1542 = vadd.f32 %v1528, %v1538
        %1545 = vrot.lane.b32.xlu0 %v1412, 96
        %v1546 = vpop.permute.xlu0 %1545
        %1547 = vrot.lane.b32.xlu0 %v1447, 96
        %v1548 = vpop.permute.xlu0 %1547
        %1549 = vrot.lane.b32.xlu0 %v1415, 96
        %v1550 = vpop.permute.xlu0 %1549
        %1551 = vrot.lane.b32.xlu0 %v1450, 96
        %v1552 = vpop.permute.xlu0 %1551
        %v1553 = vsel %vm1314, %v1546, %v1548
        %v1554 = vsel %vm1314, %v1550, %v1552
        %v1557 = vsel %vm1314, %v1548, 0.0
        %v1558 = vsel %vm1314, %v1552, 0.0
        %v1561 = vrot.slane %v1553, 6
        %v1562 = vrot.slane %v1554, 6
        %v1563 = vsel %vm1264, %v1561, %v1562
        %v1564 = vrot.slane %v1557, 6
        %v1565 = vrot.slane %v1558, 6
        %v1566 = vsel %vm1264, %v1564, %v1565
        %v1569 = vadd.f32 %v1541, %v1563
        %v1570 = vadd.f32 %v1542, %v1566
        %1571 = vrot.lane.b32.xlu0 %v1415, 80
        %v1572 = vpop.permute.xlu0 %1571
        %1573 = vrot.lane.b32.xlu0 %v1450, 80
        %v1574 = vpop.permute.xlu0 %1573
        %vm1575 = vcmask 654336
        %v1576 = vsel %vm1575, %v1572, %v1574
        %v1578 = vsel %vm1575, %v1574, 0.0
        %v1580 = vrot.slane %v1576, 3
        %v1581 = vrot.slane %v1578, 3
        %v1584 = vadd.f32 %v1569, %v1580
        %v1585 = vadd.f32 %v1570, %v1581
        %1588 = vrot.lane.b32.xlu0 %v1418, 64
        %v1589 = vpop.permute.xlu0 %1588
        %1590 = vrot.lane.b32.xlu0 %v1453, 64
        %v1591 = vpop.permute.xlu0 %1590
        %v1592 = vsel %vm1461, %v1589, %v1591
        %v1595 = vsel %vm1461, %v1591, 0.0
        %v1596 = vadd.f32 %v1584, %v1592
        %v1597 = vadd.f32 %v1585, %v1595
        %1598 = vst [vmem:[%s437 + $0x20] sm:$0x1f] %v1596
        %1599 = vst [vmem:[%s437 + $0x28] sm:$0x1f] %v1597
        %v1600 = vld [vmem:[#allocation2 + $0x80] sm:$0xff]
        %v1601 = vld [vmem:[#allocation2 + $0x88] sm:$0xff]
        %v1602 = vld [vmem:[#allocation2 + $0x90] sm:$0xff]
        %v1603 = vld [vmem:[#allocation2 + $0x98] sm:$0xff]
        %v1604 = vld [vmem:[#allocation2 + $0xa0] sm:$0xff]
        %v1605 = vld [vmem:[#allocation2 + $0xa8] sm:$0xff]
        %v1606 = vld [vmem:[#allocation2 + $0xb0] sm:$0xff]
        %v1607 = vld [vmem:[#allocation2 + $0xb8] sm:$0xff]
        %v1608 = vld [vmem:[#allocation2 + $0xc0] sm:$0xff]
        %v1609 = vld [vmem:[#allocation2 + $0xc8] sm:$0xff]
        %v1610 = vld [vmem:[#allocation2 + $0xd0] sm:$0xff]
        %v1611 = vld [vmem:[#allocation2 + $0xd8] sm:$0xff]
        %v1612 = vld [vmem:[#allocation2 + $0xe0] sm:$0xff]
        %v1613 = vld [vmem:[#allocation2 + $0xe8] sm:$0xff]
        %v1614 = vld [vmem:[#allocation2 + $0xf0] sm:$0xff]
        %v1615 = vld [vmem:[#allocation2 + $0xf8] sm:$0xff]
        %v1616 = vld [vmem:[#allocation2 + $0x100] sm:$0xff]
        %v1617 = vld [vmem:[#allocation2 + $0x108] sm:$0xff]
        %v1618 = vld [vmem:[#allocation2 + $0x110] sm:$0xff]
        %v1619 = vld [vmem:[#allocation2 + $0x118] sm:$0xff]
        %v1620 = vld [vmem:[#allocation2 + $0x120] sm:$0xff]
        %v1621 = vld [vmem:[#allocation2 + $0x128] sm:$0xff]
        %v1622 = vld [vmem:[#allocation2 + $0x130] sm:$0xff]
        %v1623 = vld [vmem:[#allocation2 + $0x138] sm:$0xff]
        %v1624 = vld [vmem:[#allocation2 + $0x140] sm:$0xff]
        %v1625 = vld [vmem:[#allocation2 + $0x148] sm:$0xff]
        %v1626 = vld [vmem:[#allocation2 + $0x150] sm:$0xff]
        %v1627 = vld [vmem:[#allocation2 + $0x158] sm:$0xff]
        %v1628 = vld [vmem:[#allocation2 + $0x160] sm:$0xff]
        %v1629 = vld [vmem:[#allocation2 + $0x168] sm:$0xff]
        %v1630 = vld [vmem:[#allocation2 + $0x170] sm:$0xff]
        %v1631 = vld [vmem:[#allocation2 + $0x178] sm:$0xff]
        %v1632 = vld [vmem:[#allocation2 + $0x180] sm:$0xff]
        %v1633 = vld [vmem:[#allocation2 + $0x188] sm:$0xff]
        %v1634 = vld [vmem:[%s5] sm:$0xff]
        %v1635 = vld [vmem:[%s5 + $0x8] sm:$0xff]
        %v1636 = vld [vmem:[%s5 + $0x10] sm:$0xff]
        %v1637 = vld [vmem:[%s5 + $0x18] sm:$0xff]
        %v1638 = vld [vmem:[%s5 + $0x20] sm:$0xff]
        %v1639 = vld [vmem:[%s5 + $0x28] sm:$0xff]
        %v1640 = vld [vmem:[%s5 + $0x30] sm:$0xff]
        %v1641 = vld [vmem:[%s5 + $0x38] sm:$0xff]
        %v1642 = vld [vmem:[%s5 + $0x40] sm:$0xff]
        %v1643 = vld [vmem:[%s5 + $0x48] sm:$0xff]
        %v1644 = vld [vmem:[%s5 + $0x50] sm:$0xff]
        %v1645 = vld [vmem:[%s5 + $0x58] sm:$0xff]
        %v1646 = vld [vmem:[%s5 + $0x60] sm:$0x7]
        %v1647 = vld [vmem:[%s5 + $0x68] sm:$0x7]
        %v1649 = vsel %vm445, %v1635, 0
        %v1652 = vsel %vm445, %v1637, 0
        %v1655 = vsel %vm445, %v1639, 0
        %v1658 = vsel %vm445, %v1641, 0
        %v1661 = vsel %vm445, %v1643, 0
        %v1664 = vsel %vm445, %v1645, 0
        %v1667 = vsel %vm445, %v1647, 0
        %1669 = vmatpush.msra.mxu0 %v1630
        %1670 = vmatpush.msra.mxu0 %v1628
        %1671 = vmatpush.msra.mxu0 %v1626
        %1672 = vmatpush.msra.mxu0 %v1624
        %1673 = vmatpush.msra.mxu0 %v1622
        %1674 = vmatpush.msra.mxu0 %v1620
        %1675 = vmatpush.msra.mxu0 %v1618
        %1676 = vmatpush.msra.mxu0 %v1616
        %1677 = vmatpush.msra.mxu0 %v1614
        %1678 = vmatpush.msra.mxu0 %v1612
        %1679 = vmatpush.msra.mxu0 %v1610
        %1680 = vmatpush.msra.mxu0 %v1608
        %1681 = vmatpush.msra.mxu0 %v1606
        %1682 = vmatpush.msra.mxu0 %v1604
        %1683 = vmatpush.msra.mxu0 %v1602
        %1684 = vmatpush.msra.mxu0 %v1600
        %1685 = vmatmul.f32.gmra.mxu0 %v1634
        %v1686 = vpop.f32.mrf.mxu0
        %v1687 = vadd.f32 0.0, %v1686
        %1688 = vmatmul.f32.gmra.mxu0 %v1636
        %v1689 = vpop.f32.mrf.mxu0
        %v1690 = vadd.f32 0.0, %v1689
        %1691 = vmatmul.f32.gmra.mxu0 %v1638
        %v1692 = vpop.f32.mrf.mxu0
        %v1693 = vadd.f32 0.0, %v1692
        %1694 = vmatmul.f32.gmra.mxu0 %v1640
        %v1695 = vpop.f32.mrf.mxu0
        %v1696 = vadd.f32 0.0, %v1695
        %1697 = vmatmul.f32.gmra.mxu0 %v1642
        %v1698 = vpop.f32.mrf.mxu0
        %v1699 = vadd.f32 0.0, %v1698
        %1700 = vmatmul.f32.gmra.mxu0 %v1644
        %v1701 = vpop.f32.mrf.mxu0
        %v1702 = vadd.f32 0.0, %v1701
        %1703 = vmatmul.f32.gmra.mxu0 %v1646
        %v1704 = vpop.f32.mrf.mxu0
        %1705 = vdwg.mxu0
        %1706 = vmatpush.msra.mxu0 0.0
        %1707 = vmatpush.msra.mxu0 0.0
        %1708 = vmatpush.msra.mxu0 0.0
        %1709 = vmatpush.msra.mxu0 0.0
        %1710 = vmatpush.msra.mxu0 0.0
        %1711 = vmatpush.msra.mxu0 0.0
        %1712 = vmatpush.msra.mxu0 0.0
        %1713 = vmatpush.msra.mxu0 0.0
        %1714 = vmatpush.msra.mxu0 0.0
        %1715 = vmatpush.msra.mxu0 0.0
        %1716 = vmatpush.msra.mxu0 0.0
        %1717 = vmatpush.msra.mxu0 0.0
        %1718 = vmatpush.msra.mxu0 0.0
        %1719 = vmatpush.msra.mxu0 0.0
        %1720 = vmatpush.msra.mxu0 0.0
        %1721 = vmatpush.msra.mxu0 %v1632
        %1722 = vmatmul.f32.gmra.mxu0 %v1649
        %v1723 = vpop.f32.mrf.mxu0
        %v1724 = vadd.f32 %v1687, %v1723
        %1725 = vmatmul.f32.gmra.mxu0 %v1652
        %v1726 = vpop.f32.mrf.mxu0
        %v1727 = vadd.f32 %v1690, %v1726
        %1728 = vmatmul.f32.gmra.mxu0 %v1655
        %v1729 = vpop.f32.mrf.mxu0
        %v1730 = vadd.f32 %v1693, %v1729
        %1731 = vmatmul.f32.gmra.mxu0 %v1658
        %v1732 = vpop.f32.mrf.mxu0
        %v1733 = vadd.f32 %v1696, %v1732
        %1734 = vmatmul.f32.gmra.mxu0 %v1661
        %v1735 = vpop.f32.mrf.mxu0
        %v1736 = vadd.f32 %v1699, %v1735
        %1737 = vmatmul.f32.gmra.mxu0 %v1664
        %v1738 = vpop.f32.mrf.mxu0
        %v1739 = vadd.f32 %v1702, %v1738
        %1740 = vmatmul.f32.gmra.mxu0 %v1667
        %v1741 = vpop.f32.mrf.mxu0
        %1742 = vdwg.mxu0
        %1743 = vmatpush.msra.mxu0 %v1631
        %1744 = vmatpush.msra.mxu0 %v1629
        %1745 = vmatpush.msra.mxu0 %v1627
        %1746 = vmatpush.msra.mxu0 %v1625
        %1747 = vmatpush.msra.mxu0 %v1623
        %1748 = vmatpush.msra.mxu0 %v1621
        %1749 = vmatpush.msra.mxu0 %v1619
        %1750 = vmatpush.msra.mxu0 %v1617
        %1751 = vmatpush.msra.mxu0 %v1615
        %1752 = vmatpush.msra.mxu0 %v1613
        %1753 = vmatpush.msra.mxu0 %v1611
        %1754 = vmatpush.msra.mxu0 %v1609
        %1755 = vmatpush.msra.mxu0 %v1607
        %1756 = vmatpush.msra.mxu0 %v1605
        %1757 = vmatpush.msra.mxu0 %v1603
        %1758 = vmatpush.msra.mxu0 %v1601
        %1759 = vmatmul.f32.gmra.mxu0 %v1634
        %v1760 = vpop.f32.mrf.mxu0
        %v1761 = vadd.f32 0.0, %v1760
        %1762 = vmatmul.f32.gmra.mxu0 %v1636
        %v1763 = vpop.f32.mrf.mxu0
        %v1764 = vadd.f32 0.0, %v1763
        %1765 = vmatmul.f32.gmra.mxu0 %v1638
        %v1766 = vpop.f32.mrf.mxu0
        %v1767 = vadd.f32 0.0, %v1766
        %1768 = vmatmul.f32.gmra.mxu0 %v1640
        %v1769 = vpop.f32.mrf.mxu0
        %v1770 = vadd.f32 0.0, %v1769
        %1771 = vmatmul.f32.gmra.mxu0 %v1642
        %v1772 = vpop.f32.mrf.mxu0
        %v1773 = vadd.f32 0.0, %v1772
        %1774 = vmatmul.f32.gmra.mxu0 %v1644
        %v1775 = vpop.f32.mrf.mxu0
        %v1776 = vadd.f32 0.0, %v1775
        %1777 = vmatmul.f32.gmra.mxu0 %v1646
        %v1778 = vpop.f32.mrf.mxu0
        %v1779 = vadd.f32 0.0, %v1778
        %1780 = vdwg.mxu0
        %1781 = vmatpush.msra.mxu0 0.0
        %1782 = vmatpush.msra.mxu0 0.0
        %1783 = vmatpush.msra.mxu0 0.0
        %1784 = vmatpush.msra.mxu0 0.0
        %1785 = vmatpush.msra.mxu0 0.0
        %1786 = vmatpush.msra.mxu0 0.0
        %1787 = vmatpush.msra.mxu0 0.0
        %1788 = vmatpush.msra.mxu0 0.0
        %1789 = vmatpush.msra.mxu0 0.0
        %1790 = vmatpush.msra.mxu0 0.0
        %1791 = vmatpush.msra.mxu0 0.0
        %1792 = vmatpush.msra.mxu0 0.0
        %1793 = vmatpush.msra.mxu0 0.0
        %1794 = vmatpush.msra.mxu0 0.0
        %1795 = vmatpush.msra.mxu0 0.0
        %1796 = vmatpush.msra.mxu0 %v1633
        %1797 = vmatmul.f32.gmra.mxu0 %v1649
        %v1798 = vpop.f32.mrf.mxu0
        %v1799 = vadd.f32 %v1761, %v1798
        %1800 = vmatmul.f32.gmra.mxu0 %v1652
        %v1801 = vpop.f32.mrf.mxu0
        %v1802 = vadd.f32 %v1764, %v1801
        %1803 = vmatmul.f32.gmra.mxu0 %v1655
        %v1804 = vpop.f32.mrf.mxu0
        %v1805 = vadd.f32 %v1767, %v1804
        %1806 = vmatmul.f32.gmra.mxu0 %v1658
        %v1807 = vpop.f32.mrf.mxu0
        %v1808 = vadd.f32 %v1770, %v1807
        %1809 = vmatmul.f32.gmra.mxu0 %v1661
        %v1810 = vpop.f32.mrf.mxu0
        %v1811 = vadd.f32 %v1773, %v1810
        %1812 = vmatmul.f32.gmra.mxu0 %v1664
        %v1813 = vpop.f32.mrf.mxu0
        %v1814 = vadd.f32 %v1776, %v1813
        %1815 = vmatmul.f32.gmra.mxu0 %v1667
        %v1816 = vpop.f32.mrf.mxu0
        %v1817 = vadd.f32 %v1779, %v1816
        %1818 = vdwg.mxu0
        %v1819 = vadd.f32 %v1724, 0.0
        %v1822 = vrot.slane %v1724, 3
        %v1823 = vrot.slane %v1799, 3
        %1824 = vrot.lane.b32.xlu0 %v1822, 112
        %v1825 = vpop.permute.xlu0 %1824
        %1826 = vrot.lane.b32.xlu0 %v1823, 112
        %v1827 = vpop.permute.xlu0 %1826
        %v1828 = vsel %vm965, %v1825, %v1827
        %v1831 = vsel %vm965, 0.0, %v1825
        %v1832 = vadd.f32 %v1831, 0.0
        %v1833 = vadd.f32 %v1819, %v1828
        %v1836 = vrot.slane %v1724, 6
        %v1837 = vrot.slane %v1727, 6
        %v1838 = vsel %vm1264, %v1836, %v1837
        %v1839 = vrot.slane %v1799, 6
        %v1840 = vrot.slane %v1802, 6
        %v1841 = vsel %vm1264, %v1839, %v1840
        %1842 = vrot.lane.b32.xlu0 %v1838, 96
        %v1843 = vpop.permute.xlu0 %1842
        %1844 = vrot.lane.b32.xlu0 %v1841, 96
        %v1845 = vpop.permute.xlu0 %1844
        %v1846 = vsel %vm1314, %v1843, %v1845
        %v1849 = vsel %vm1314, 0.0, %v1843
        %v1850 = vadd.f32 %v1832, %v1849
        %v1851 = vadd.f32 %v1833, %v1846
        %v1852 = vrot.slane %v1727, 1
        %v1853 = vrot.slane %v1802, 1
        %1854 = vrot.lane.b32.xlu0 %v1852, 80
        %v1855 = vpop.permute.xlu0 %1854
        %1856 = vrot.lane.b32.xlu0 %v1853, 80
        %v1857 = vpop.permute.xlu0 %1856
        %v1858 = vsel %vm1575, %v1855, %v1857
        %v1861 = vsel %vm1575, 0.0, %v1855
        %v1862 = vadd.f32 %v1850, %v1861
        %v1863 = vadd.f32 %v1851, %v1858
        %v1864 = vrot.slane %v1727, 4
        %v1865 = vrot.slane %v1802, 4
        %1866 = vrot.lane.b32.xlu0 %v1864, 64
        %v1867 = vpop.permute.xlu0 %1866
        %1868 = vrot.lane.b32.xlu0 %v1865, 64
        %v1869 = vpop.permute.xlu0 %1868
        %v1870 = vsel %vm1461, %v1867, %v1869
        %v1873 = vsel %vm1461, 0.0, %v1867
        %v1874 = vadd.f32 %v1862, %v1873
        %v1875 = vadd.f32 %v1863, %v1870
        %v1878 = vrot.slane %v1727, 7
        %v1879 = vrot.slane %v1730, 7
        %v1880 = vsel %vm1245, %v1878, %v1879
        %v1881 = vrot.slane %v1802, 7
        %v1882 = vrot.slane %v1805, 7
        %v1883 = vsel %vm1245, %v1881, %v1882
        %1884 = vrot.lane.b32.xlu0 %v1880, 48
        %v1885 = vpop.permute.xlu0 %1884
        %1886 = vrot.lane.b32.xlu0 %v1883, 48
        %v1887 = vpop.permute.xlu0 %1886
        %v1888 = vsel %vm1480, %v1885, %v1887
        %v1891 = vsel %vm1480, 0.0, %v1885
        %v1892 = vadd.f32 %v1874, %v1891
        %v1893 = vadd.f32 %v1875, %v1888
        %v1894 = vrot.slane %v1730, 2
        %v1895 = vrot.slane %v1805, 2
        %1896 = vrot.lane.b32.xlu0 %v1894, 32
        %v1897 = vpop.permute.xlu0 %1896
        %1898 = vrot.lane.b32.xlu0 %v1895, 32
        %v1899 = vpop.permute.xlu0 %1898
        %v1900 = vsel %vm1236, %v1897, %v1899
        %v1903 = vsel %vm1236, 0.0, %v1897
        %v1904 = vadd.f32 %v1892, %v1903
        %v1905 = vadd.f32 %v1893, %v1900
        %v1906 = vrot.slane %v1730, 5
        %v1907 = vrot.slane %v1805, 5
        %1908 = vrot.lane.b32.xlu0 %v1906, 16
        %v1909 = vpop.permute.xlu0 %1908
        %1910 = vrot.lane.b32.xlu0 %v1907, 16
        %v1911 = vpop.permute.xlu0 %1910
        %v1912 = vsel %vm495, %v1909, %v1911
        %v1915 = vsel %vm495, 0.0, %v1909
        %v1916 = vadd.f32 %v1904, %v1915
        %v1917 = vadd.f32 %v1905, %v1912
        %v1918 = vadd.f32 %v1916, %v1733
        %v1919 = vadd.f32 %v1917, %v1808
        %1922 = vrot.lane.b32.xlu0 %v1733, 112
        %v1923 = vpop.permute.xlu0 %1922
        %1924 = vrot.lane.b32.xlu0 %v1808, 112
        %v1925 = vpop.permute.xlu0 %1924
        %v1926 = vsel %vm965, %v1923, %v1925
        %v1928 = vsel %vm965, %v1925, 0.0
        %v1930 = vrot.slane %v1926, 3
        %v1931 = vrot.slane %v1928, 3
        %v1934 = vadd.f32 %v1918, %v1930
        %v1935 = vadd.f32 %v1919, %v1931
        %1938 = vrot.lane.b32.xlu0 %v1733, 96
        %v1939 = vpop.permute.xlu0 %1938
        %1940 = vrot.lane.b32.xlu0 %v1808, 96
        %v1941 = vpop.permute.xlu0 %1940
        %1942 = vrot.lane.b32.xlu0 %v1736, 96
        %v1943 = vpop.permute.xlu0 %1942
        %1944 = vrot.lane.b32.xlu0 %v1811, 96
        %v1945 = vpop.permute.xlu0 %1944
        %v1946 = vsel %vm1314, %v1939, %v1941
        %v1947 = vsel %vm1314, %v1943, %v1945
        %v1950 = vsel %vm1314, %v1941, 0.0
        %v1951 = vsel %vm1314, %v1945, 0.0
        %v1954 = vrot.slane %v1946, 6
        %v1955 = vrot.slane %v1947, 6
        %v1956 = vsel %vm1264, %v1954, %v1955
        %v1957 = vrot.slane %v1950, 6
        %v1958 = vrot.slane %v1951, 6
        %v1959 = vsel %vm1264, %v1957, %v1958
        %v1962 = vadd.f32 %v1934, %v1956
        %v1963 = vadd.f32 %v1935, %v1959
        %1964 = vrot.lane.b32.xlu0 %v1736, 80
        %v1965 = vpop.permute.xlu0 %1964
        %1966 = vrot.lane.b32.xlu0 %v1811, 80
        %v1967 = vpop.permute.xlu0 %1966
        %v1968 = vsel %vm1575, %v1965, %v1967
        %v1970 = vsel %vm1575, %v1967, 0.0
        %v1972 = vrot.slane %v1968, 1
        %v1973 = vrot.slane %v1970, 1
        %v1976 = vadd.f32 %v1962, %v1972
        %v1977 = vadd.f32 %v1963, %v1973
        %1978 = vrot.lane.b32.xlu0 %v1736, 64
        %v1979 = vpop.permute.xlu0 %1978
        %1980 = vrot.lane.b32.xlu0 %v1811, 64
        %v1981 = vpop.permute.xlu0 %1980
        %v1982 = vsel %vm1461, %v1979, %v1981
        %v1984 = vsel %vm1461, %v1981, 0.0
        %v1986 = vrot.slane %v1982, 4
        %v1987 = vrot.slane %v1984, 4
        %v1990 = vadd.f32 %v1976, %v1986
        %v1991 = vadd.f32 %v1977, %v1987
        %1994 = vrot.lane.b32.xlu0 %v1736, 48
        %v1995 = vpop.permute.xlu0 %1994
        %1996 = vrot.lane.b32.xlu0 %v1811, 48
        %v1997 = vpop.permute.xlu0 %1996
        %1998 = vrot.lane.b32.xlu0 %v1739, 48
        %v1999 = vpop.permute.xlu0 %1998
        %2000 = vrot.lane.b32.xlu0 %v1814, 48
        %v2001 = vpop.permute.xlu0 %2000
        %v2002 = vsel %vm1480, %v1995, %v1997
        %v2003 = vsel %vm1480, %v1999, %v2001
        %v2006 = vsel %vm1480, %v1997, 0.0
        %v2007 = vsel %vm1480, %v2001, 0.0
        %v2010 = vrot.slane %v2002, 7
        %v2011 = vrot.slane %v2003, 7
        %v2012 = vsel %vm1245, %v2010, %v2011
        %v2013 = vrot.slane %v2006, 7
        %v2014 = vrot.slane %v2007, 7
        %v2015 = vsel %vm1245, %v2013, %v2014
        %v2018 = vadd.f32 %v1990, %v2012
        %v2019 = vadd.f32 %v1991, %v2015
        %2020 = vrot.lane.b32.xlu0 %v1739, 32
        %v2021 = vpop.permute.xlu0 %2020
        %2022 = vrot.lane.b32.xlu0 %v1814, 32
        %v2023 = vpop.permute.xlu0 %2022
        %v2024 = vsel %vm1236, %v2021, %v2023
        %v2026 = vsel %vm1236, %v2023, 0.0
        %v2028 = vrot.slane %v2024, 2
        %v2029 = vrot.slane %v2026, 2
        %v2032 = vadd.f32 %v2018, %v2028
        %v2033 = vadd.f32 %v2019, %v2029
        %2034 = vrot.lane.b32.xlu0 %v1739, 16
        %v2035 = vpop.permute.xlu0 %2034
        %2036 = vrot.lane.b32.xlu0 %v1814, 16
        %v2037 = vpop.permute.xlu0 %2036
        %v2038 = vsel %vm495, %v2035, %v2037
        %v2040 = vsel %vm495, %v2037, 0.0
        %v2042 = vrot.slane %v2038, 5
        %v2043 = vrot.slane %v2040, 5
        %v2046 = vadd.f32 %v2032, %v2042
        %v2047 = vadd.f32 %v2033, %v2043
        %v2048 = vadd.f32 %v2046, %v1817
        %v2049 = vadd.f32 %v2047, 0.0
        %v2052 = vrot.slane %v2048, 3
        %v2053 = vrot.slane %v2049, 3
        %2056 = vst [vmem:[%s437 + $0x20] sm:$0xe0] %v2052
        %2057 = vst [vmem:[%s437 + $0x28] sm:$0xe0] %v2053
        %v2058 = vld [vmem:[#allocation2] sm:$0xff]
        %v2059 = vld [vmem:[#allocation2 + $0x8] sm:$0xff]
        %v2060 = vld [vmem:[#allocation2 + $0x10] sm:$0xff]
        %v2061 = vld [vmem:[#allocation2 + $0x18] sm:$0xff]
        %v2062 = vld [vmem:[#allocation2 + $0x20] sm:$0xff]
        %v2063 = vld [vmem:[#allocation2 + $0x28] sm:$0xff]
        %v2064 = vld [vmem:[#allocation2 + $0x30] sm:$0xff]
        %v2065 = vld [vmem:[#allocation2 + $0x38] sm:$0xff]
        %v2066 = vld [vmem:[#allocation2 + $0x40] sm:$0xff]
        %v2067 = vld [vmem:[#allocation2 + $0x48] sm:$0xff]
        %v2068 = vld [vmem:[#allocation2 + $0x50] sm:$0xff]
        %v2069 = vld [vmem:[#allocation2 + $0x58] sm:$0xff]
        %v2070 = vld [vmem:[#allocation2 + $0x60] sm:$0xff]
        %v2071 = vld [vmem:[#allocation2 + $0x68] sm:$0xff]
        %v2072 = vld [vmem:[#allocation2 + $0x70] sm:$0xff]
        %v2073 = vld [vmem:[#allocation2 + $0x78] sm:$0xff]
        %v2074 = vld [vmem:[#allocation2 + $0x80] sm:$0xff]
        %v2075 = vld [vmem:[#allocation2 + $0x88] sm:$0xff]
        %v2076 = vld [vmem:[#allocation2 + $0x90] sm:$0xff]
        %v2077 = vld [vmem:[#allocation2 + $0x98] sm:$0xff]
        %v2078 = vld [vmem:[#allocation2 + $0xa0] sm:$0xff]
        %v2079 = vld [vmem:[#allocation2 + $0xa8] sm:$0xff]
        %v2080 = vld [vmem:[#allocation2 + $0xb0] sm:$0xff]
        %v2081 = vld [vmem:[#allocation2 + $0xb8] sm:$0xff]
        %v2082 = vld [vmem:[#allocation2 + $0xc0] sm:$0xff]
        %v2083 = vld [vmem:[#allocation2 + $0xc8] sm:$0xff]
        %v2084 = vld [vmem:[#allocation2 + $0xd0] sm:$0xff]
        %v2085 = vld [vmem:[#allocation2 + $0xd8] sm:$0xff]
        %v2086 = vld [vmem:[#allocation2 + $0xe0] sm:$0xff]
        %v2087 = vld [vmem:[#allocation2 + $0xe8] sm:$0xff]
        %v2088 = vld [vmem:[#allocation2 + $0xf0] sm:$0xff]
        %v2089 = vld [vmem:[#allocation2 + $0xf8] sm:$0xff]
        %v2090 = vld [vmem:[#allocation2 + $0x100] sm:$0xff]
        %v2091 = vld [vmem:[#allocation2 + $0x108] sm:$0xff]
        %v2092 = vld [vmem:[#allocation2 + $0x110] sm:$0xff]
        %v2093 = vld [vmem:[#allocation2 + $0x118] sm:$0xff]
        %v2094 = vld [vmem:[#allocation2 + $0x120] sm:$0xff]
        %v2095 = vld [vmem:[#allocation2 + $0x128] sm:$0xff]
        %v2096 = vld [vmem:[#allocation2 + $0x130] sm:$0xff]
        %v2097 = vld [vmem:[#allocation2 + $0x138] sm:$0xff]
        %v2098 = vld [vmem:[#allocation2 + $0x140] sm:$0xff]
        %v2099 = vld [vmem:[#allocation2 + $0x148] sm:$0xff]
        %v2100 = vld [vmem:[#allocation2 + $0x150] sm:$0xff]
        %v2101 = vld [vmem:[#allocation2 + $0x158] sm:$0xff]
        %v2102 = vld [vmem:[#allocation2 + $0x160] sm:$0xff]
        %v2103 = vld [vmem:[#allocation2 + $0x168] sm:$0xff]
        %v2104 = vld [vmem:[#allocation2 + $0x170] sm:$0xff]
        %v2105 = vld [vmem:[#allocation2 + $0x178] sm:$0xff]
        %v2106 = vld [vmem:[#allocation2 + $0x180] sm:$0xff]
        %v2107 = vld [vmem:[#allocation2 + $0x188] sm:$0xff]
        %v2108 = vld [vmem:[#allocation2 + $0x190] sm:$0xff]
        %v2109 = vld [vmem:[#allocation2 + $0x198] sm:$0xff]
        %v2110 = vld [vmem:[#allocation2 + $0x1a0] sm:$0xff]
        %v2111 = vld [vmem:[#allocation2 + $0x1a8] sm:$0xff]
        %v2112 = vld [vmem:[#allocation2 + $0x1b0] sm:$0xff]
        %v2113 = vld [vmem:[#allocation2 + $0x1b8] sm:$0xff]
        %v2114 = vld [vmem:[#allocation2 + $0x1c0] sm:$0xff]
        %v2115 = vld [vmem:[#allocation2 + $0x1c8] sm:$0xff]
        %v2116 = vld [vmem:[#allocation2 + $0x1d0] sm:$0xff]
        %v2117 = vld [vmem:[#allocation2 + $0x1d8] sm:$0xff]
        %v2118 = vld [vmem:[#allocation2 + $0x1e0] sm:$0xff]
        %v2119 = vld [vmem:[#allocation2 + $0x1e8] sm:$0xff]
        %v2120 = vld [vmem:[#allocation2 + $0x1f0] sm:$0xff]
        %v2121 = vld [vmem:[#allocation2 + $0x1f8] sm:$0xff]
        %v2122 = vld [vmem:[#allocation2 + $0x200] sm:$0xff]
        %v2123 = vld [vmem:[#allocation2 + $0x208] sm:$0xff]
        %v2124 = vld [vmem:[%s6] sm:$0xff]
        %v2125 = vld [vmem:[%s6 + $0x8] sm:$0xff]
        %v2126 = vld [vmem:[%s6 + $0x10] sm:$0xff]
        %v2127 = vld [vmem:[%s6 + $0x18] sm:$0xff]
        %v2128 = vld [vmem:[%s6 + $0x20] sm:$0xff]
        %v2129 = vld [vmem:[%s6 + $0x28] sm:$0xff]
        %v2130 = vld [vmem:[%s6 + $0x30] sm:$0xff]
        %v2131 = vld [vmem:[%s6 + $0x38] sm:$0xff]
        %v2132 = vld [vmem:[%s6 + $0x40] sm:$0xff]
        %v2133 = vld [vmem:[%s6 + $0x48] sm:$0xff]
        %v2134 = vld [vmem:[%s6 + $0x50] sm:$0xff]
        %v2135 = vld [vmem:[%s6 + $0x58] sm:$0xff]
        %v2136 = vld [vmem:[%s6 + $0x60] sm:$0x1]
        %v2137 = vld [vmem:[%s6 + $0x68] sm:$0x1]
        %v2138 = vld [vmem:[%s6 + $0x70] sm:$0x1]
        %v2140 = vsel %vm445, %v2126, 0
        %v2143 = vsel %vm445, %v2129, 0
        %v2146 = vsel %vm445, %v2132, 0
        %v2149 = vsel %vm445, %v2135, 0
        %v2152 = vsel %vm445, %v2138, 0
        %2154 = vmatpush.msra.mxu0 %v2088
        %2155 = vmatpush.msra.mxu0 %v2086
        %2156 = vmatpush.msra.mxu0 %v2084
        %2157 = vmatpush.msra.mxu0 %v2082
        %2158 = vmatpush.msra.mxu0 %v2080
        %2159 = vmatpush.msra.mxu0 %v2078
        %2160 = vmatpush.msra.mxu0 %v2076
        %2161 = vmatpush.msra.mxu0 %v2074
        %2162 = vmatpush.msra.mxu0 %v2072
        %2163 = vmatpush.msra.mxu0 %v2070
        %2164 = vmatpush.msra.mxu0 %v2068
        %2165 = vmatpush.msra.mxu0 %v2066
        %2166 = vmatpush.msra.mxu0 %v2064
        %2167 = vmatpush.msra.mxu0 %v2062
        %2168 = vmatpush.msra.mxu0 %v2060
        %2169 = vmatpush.msra.mxu0 %v2058
        %2170 = vmatmul.f32.gmra.mxu0 %v2124
        %v2171 = vpop.f32.mrf.mxu0
        %v2172 = vadd.f32 0.0, %v2171
        %2173 = vmatmul.f32.gmra.mxu0 %v2127
        %v2174 = vpop.f32.mrf.mxu0
        %v2175 = vadd.f32 0.0, %v2174
        %2176 = vmatmul.f32.gmra.mxu0 %v2130
        %v2177 = vpop.f32.mrf.mxu0
        %v2178 = vadd.f32 0.0, %v2177
        %2179 = vmatmul.f32.gmra.mxu0 %v2133
        %v2180 = vpop.f32.mrf.mxu0
        %2181 = vmatmul.f32.gmra.mxu0 %v2136
        %v2182 = vpop.f32.mrf.mxu0
        %2183 = vdwg.mxu0
        %2184 = vmatpush.msra.mxu0 %v2120
        %2185 = vmatpush.msra.mxu0 %v2118
        %2186 = vmatpush.msra.mxu0 %v2116
        %2187 = vmatpush.msra.mxu0 %v2114
        %2188 = vmatpush.msra.mxu0 %v2112
        %2189 = vmatpush.msra.mxu0 %v2110
        %2190 = vmatpush.msra.mxu0 %v2108
        %2191 = vmatpush.msra.mxu0 %v2106
        %2192 = vmatpush.msra.mxu0 %v2104
        %2193 = vmatpush.msra.mxu0 %v2102
        %2194 = vmatpush.msra.mxu0 %v2100
        %2195 = vmatpush.msra.mxu0 %v2098
        %2196 = vmatpush.msra.mxu0 %v2096
        %2197 = vmatpush.msra.mxu0 %v2094
        %2198 = vmatpush.msra.mxu0 %v2092
        %2199 = vmatpush.msra.mxu0 %v2090
        %2200 = vmatmul.f32.gmra.mxu0 %v2125
        %v2201 = vpop.f32.mrf.mxu0
        %v2202 = vadd.f32 %v2172, %v2201
        %2203 = vmatmul.f32.gmra.mxu0 %v2128
        %v2204 = vpop.f32.mrf.mxu0
        %v2205 = vadd.f32 %v2175, %v2204
        %2206 = vmatmul.f32.gmra.mxu0 %v2131
        %v2207 = vpop.f32.mrf.mxu0
        %v2208 = vadd.f32 %v2178, %v2207
        %2209 = vmatmul.f32.gmra.mxu0 %v2134
        %v2210 = vpop.f32.mrf.mxu0
        %2211 = vmatmul.f32.gmra.mxu0 %v2137
        %v2212 = vpop.f32.mrf.mxu0
        %2213 = vdwg.mxu0
        %2214 = vmatpush.msra.mxu0 0.0
        %2215 = vmatpush.msra.mxu0 0.0
        %2216 = vmatpush.msra.mxu0 0.0
        %2217 = vmatpush.msra.mxu0 0.0
        %2218 = vmatpush.msra.mxu0 0.0
        %2219 = vmatpush.msra.mxu0 0.0
        %2220 = vmatpush.msra.mxu0 0.0
        %2221 = vmatpush.msra.mxu0 0.0
        %2222 = vmatpush.msra.mxu0 0.0
        %2223 = vmatpush.msra.mxu0 0.0
        %2224 = vmatpush.msra.mxu0 0.0
        %2225 = vmatpush.msra.mxu0 0.0
        %2226 = vmatpush.msra.mxu0 0.0
        %2227 = vmatpush.msra.mxu0 0.0
        %2228 = vmatpush.msra.mxu0 0.0
        %2229 = vmatpush.msra.mxu0 %v2122
        %2230 = vmatmul.f32.gmra.mxu0 %v2140
        %v2231 = vpop.f32.mrf.mxu0
        %v2232 = vadd.f32 %v2202, %v2231
        %2233 = vmatmul.f32.gmra.mxu0 %v2143
        %v2234 = vpop.f32.mrf.mxu0
        %v2235 = vadd.f32 %v2205, %v2234
        %2236 = vmatmul.f32.gmra.mxu0 %v2146
        %v2237 = vpop.f32.mrf.mxu0
        %v2238 = vadd.f32 %v2208, %v2237
        %2239 = vmatmul.f32.gmra.mxu0 %v2149
        %v2240 = vpop.f32.mrf.mxu0
        %2241 = vmatmul.f32.gmra.mxu0 %v2152
        %v2242 = vpop.f32.mrf.mxu0
        %2243 = vdwg.mxu0
        %2244 = vmatpush.msra.mxu0 %v2089
        %2245 = vmatpush.msra.mxu0 %v2087
        %2246 = vmatpush.msra.mxu0 %v2085
        %2247 = vmatpush.msra.mxu0 %v2083
        %2248 = vmatpush.msra.mxu0 %v2081
        %2249 = vmatpush.msra.mxu0 %v2079
        %2250 = vmatpush.msra.mxu0 %v2077
        %2251 = vmatpush.msra.mxu0 %v2075
        %2252 = vmatpush.msra.mxu0 %v2073
        %2253 = vmatpush.msra.mxu0 %v2071
        %2254 = vmatpush.msra.mxu0 %v2069
        %2255 = vmatpush.msra.mxu0 %v2067
        %2256 = vmatpush.msra.mxu0 %v2065
        %2257 = vmatpush.msra.mxu0 %v2063
        %2258 = vmatpush.msra.mxu0 %v2061
        %2259 = vmatpush.msra.mxu0 %v2059
        %2260 = vmatmul.f32.gmra.mxu0 %v2124
        %v2261 = vpop.f32.mrf.mxu0
        %2262 = vmatmul.f32.gmra.mxu0 %v2127
        %v2263 = vpop.f32.mrf.mxu0
        %v2264 = vadd.f32 0.0, %v2263
        %2265 = vmatmul.f32.gmra.mxu0 %v2130
        %v2266 = vpop.f32.mrf.mxu0
        %v2267 = vadd.f32 0.0, %v2266
        %2268 = vmatmul.f32.gmra.mxu0 %v2133
        %v2269 = vpop.f32.mrf.mxu0
        %v2270 = vadd.f32 0.0, %v2269
        %2271 = vmatmul.f32.gmra.mxu0 %v2136
        %v2272 = vpop.f32.mrf.mxu0
        %2273 = vdwg.mxu0
        %2274 = vmatpush.msra.mxu0 %v2121
        %2275 = vmatpush.msra.mxu0 %v2119
        %2276 = vmatpush.msra.mxu0 %v2117
        %2277 = vmatpush.msra.mxu0 %v2115
        %2278 = vmatpush.msra.mxu0 %v2113
        %2279 = vmatpush.msra.mxu0 %v2111
        %2280 = vmatpush.msra.mxu0 %v2109
        %2281 = vmatpush.msra.mxu0 %v2107
        %2282 = vmatpush.msra.mxu0 %v2105
        %2283 = vmatpush.msra.mxu0 %v2103
        %2284 = vmatpush.msra.mxu0 %v2101
        %2285 = vmatpush.msra.mxu0 %v2099
        %2286 = vmatpush.msra.mxu0 %v2097
        %2287 = vmatpush.msra.mxu0 %v2095
        %2288 = vmatpush.msra.mxu0 %v2093
        %2289 = vmatpush.msra.mxu0 %v2091
        %2290 = vmatmul.f32.gmra.mxu0 %v2125
        %v2291 = vpop.f32.mrf.mxu0
        %2292 = vmatmul.f32.gmra.mxu0 %v2128
        %v2293 = vpop.f32.mrf.mxu0
        %v2294 = vadd.f32 %v2264, %v2293
        %2295 = vmatmul.f32.gmra.mxu0 %v2131
        %v2296 = vpop.f32.mrf.mxu0
        %v2297 = vadd.f32 %v2267, %v2296
        %2298 = vmatmul.f32.gmra.mxu0 %v2134
        %v2299 = vpop.f32.mrf.mxu0
        %v2300 = vadd.f32 %v2270, %v2299
        %2301 = vmatmul.f32.gmra.mxu0 %v2137
        %v2302 = vpop.f32.mrf.mxu0
        %2303 = vdwg.mxu0
        %2304 = vmatpush.msra.mxu0 0.0
        %2305 = vmatpush.msra.mxu0 0.0
        %2306 = vmatpush.msra.mxu0 0.0
        %2307 = vmatpush.msra.mxu0 0.0
        %2308 = vmatpush.msra.mxu0 0.0
        %2309 = vmatpush.msra.mxu0 0.0
        %2310 = vmatpush.msra.mxu0 0.0
        %2311 = vmatpush.msra.mxu0 0.0
        %2312 = vmatpush.msra.mxu0 0.0
        %2313 = vmatpush.msra.mxu0 0.0
        %2314 = vmatpush.msra.mxu0 0.0
        %2315 = vmatpush.msra.mxu0 0.0
        %2316 = vmatpush.msra.mxu0 0.0
        %2317 = vmatpush.msra.mxu0 0.0
        %2318 = vmatpush.msra.mxu0 0.0
        %2319 = vmatpush.msra.mxu0 %v2123
        %2320 = vmatmul.f32.gmra.mxu0 %v2140
        %v2321 = vpop.f32.mrf.mxu0
        %2322 = vmatmul.f32.gmra.mxu0 %v2143
        %v2323 = vpop.f32.mrf.mxu0
        %v2324 = vadd.f32 %v2294, %v2323
        %2325 = vmatmul.f32.gmra.mxu0 %v2146
        %v2326 = vpop.f32.mrf.mxu0
        %v2327 = vadd.f32 %v2297, %v2326
        %2328 = vmatmul.f32.gmra.mxu0 %v2149
        %v2329 = vpop.f32.mrf.mxu0
        %v2330 = vadd.f32 %v2300, %v2329
        %2331 = vmatmul.f32.gmra.mxu0 %v2152
        %v2332 = vpop.f32.mrf.mxu0
        %2333 = vdwg.mxu0
        %v2335 = vrot.slane %v2232, 1
        %2336 = vrot.lane.b32.xlu0 %v2335, 112
        %v2337 = vpop.permute.xlu0 %2336
        %v2339 = vsel %vm965, 0.0, %v2337
        %v2340 = vadd.f32 %v2339, 0.0
        %v2341 = vrot.slane %v2232, 2
        %2342 = vrot.lane.b32.xlu0 %v2341, 96
        %v2343 = vpop.permute.xlu0 %2342
        %v2345 = vsel %vm1314, 0.0, %v2343
        %v2346 = vadd.f32 %v2340, %v2345
        %v2347 = vrot.slane %v2232, 3
        %2348 = vrot.lane.b32.xlu0 %v2347, 80
        %v2349 = vpop.permute.xlu0 %2348
        %v2351 = vsel %vm1575, 0.0, %v2349
        %v2352 = vadd.f32 %v2346, %v2351
        %v2353 = vrot.slane %v2232, 4
        %2354 = vrot.lane.b32.xlu0 %v2353, 64
        %v2355 = vpop.permute.xlu0 %2354
        %v2357 = vsel %vm1461, 0.0, %v2355
        %v2358 = vadd.f32 %v2352, %v2357
        %v2359 = vrot.slane %v2232, 5
        %2360 = vrot.lane.b32.xlu0 %v2359, 48
        %v2361 = vpop.permute.xlu0 %2360
        %v2363 = vsel %vm1480, 0.0, %v2361
        %v2364 = vadd.f32 %v2358, %v2363
        %v2365 = vrot.slane %v2232, 6
        %2366 = vrot.lane.b32.xlu0 %v2365, 32
        %v2367 = vpop.permute.xlu0 %2366
        %v2369 = vsel %vm1236, 0.0, %v2367
        %v2370 = vadd.f32 %v2364, %v2369
        %v2371 = vrot.slane %v2232, 7
        %2372 = vrot.lane.b32.xlu0 %v2371, 16
        %v2373 = vpop.permute.xlu0 %2372
        %v2375 = vsel %vm495, 0.0, %v2373
        %v2376 = vadd.f32 %v2370, %v2375
        %v2377 = vadd.f32 %v2376, %v2235
        %v2380 = vrot.slane %v2235, 1
        %v2381 = vrot.slane %v2324, 1
        %2382 = vrot.lane.b32.xlu0 %v2380, 112
        %v2383 = vpop.permute.xlu0 %2382
        %2384 = vrot.lane.b32.xlu0 %v2381, 112
        %v2385 = vpop.permute.xlu0 %2384
        %v2386 = vsel %vm965, %v2383, %v2385
        %v2389 = vsel %vm965, 0.0, %v2383
        %v2390 = vadd.f32 %v2389, 0.0
        %v2391 = vadd.f32 %v2377, %v2386
        %v2392 = vrot.slane %v2235, 2
        %v2393 = vrot.slane %v2324, 2
        %2394 = vrot.lane.b32.xlu0 %v2392, 96
        %v2395 = vpop.permute.xlu0 %2394
        %2396 = vrot.lane.b32.xlu0 %v2393, 96
        %v2397 = vpop.permute.xlu0 %2396
        %v2398 = vsel %vm1314, %v2395, %v2397
        %v2401 = vsel %vm1314, 0.0, %v2395
        %v2402 = vadd.f32 %v2390, %v2401
        %v2403 = vadd.f32 %v2391, %v2398
        %v2404 = vrot.slane %v2235, 3
        %v2405 = vrot.slane %v2324, 3
        %2406 = vrot.lane.b32.xlu0 %v2404, 80
        %v2407 = vpop.permute.xlu0 %2406
        %2408 = vrot.lane.b32.xlu0 %v2405, 80
        %v2409 = vpop.permute.xlu0 %2408
        %v2410 = vsel %vm1575, %v2407, %v2409
        %v2413 = vsel %vm1575, 0.0, %v2407
        %v2414 = vadd.f32 %v2402, %v2413
        %v2415 = vadd.f32 %v2403, %v2410
        %v2416 = vrot.slane %v2235, 4
        %v2417 = vrot.slane %v2324, 4
        %2418 = vrot.lane.b32.xlu0 %v2416, 64
        %v2419 = vpop.permute.xlu0 %2418
        %2420 = vrot.lane.b32.xlu0 %v2417, 64
        %v2421 = vpop.permute.xlu0 %2420
        %v2422 = vsel %vm1461, %v2419, %v2421
        %v2425 = vsel %vm1461, 0.0, %v2419
        %v2426 = vadd.f32 %v2414, %v2425
        %v2427 = vadd.f32 %v2415, %v2422
        %v2428 = vrot.slane %v2235, 5
        %v2429 = vrot.slane %v2324, 5
        %2430 = vrot.lane.b32.xlu0 %v2428, 48
        %v2431 = vpop.permute.xlu0 %2430
        %2432 = vrot.lane.b32.xlu0 %v2429, 48
        %v2433 = vpop.permute.xlu0 %2432
        %v2434 = vsel %vm1480, %v2431, %v2433
        %v2437 = vsel %vm1480, 0.0, %v2431
        %v2438 = vadd.f32 %v2426, %v2437
        %v2439 = vadd.f32 %v2427, %v2434
        %v2440 = vrot.slane %v2235, 6
        %v2441 = vrot.slane %v2324, 6
        %2442 = vrot.lane.b32.xlu0 %v2440, 32
        %v2443 = vpop.permute.xlu0 %2442
        %2444 = vrot.lane.b32.xlu0 %v2441, 32
        %v2445 = vpop.permute.xlu0 %2444
        %v2446 = vsel %vm1236, %v2443, %v2445
        %v2449 = vsel %vm1236, 0.0, %v2443
        %v2450 = vadd.f32 %v2438, %v2449
        %v2451 = vadd.f32 %v2439, %v2446
        %v2452 = vrot.slane %v2235, 7
        %v2453 = vrot.slane %v2324, 7
        %2454 = vrot.lane.b32.xlu0 %v2452, 16
        %v2455 = vpop.permute.xlu0 %2454
        %2456 = vrot.lane.b32.xlu0 %v2453, 16
        %v2457 = vpop.permute.xlu0 %2456
        %v2458 = vsel %vm495, %v2455, %v2457
        %v2461 = vsel %vm495, 0.0, %v2455
        %v2462 = vadd.f32 %v2450, %v2461
        %v2463 = vadd.f32 %v2451, %v2458
        %v2464 = vadd.f32 %v2462, %v2238
        %v2465 = vadd.f32 %v2463, %v2327
        %2468 = vrot.lane.b32.xlu0 %v2238, 112
        %v2469 = vpop.permute.xlu0 %2468
        %2470 = vrot.lane.b32.xlu0 %v2327, 112
        %v2471 = vpop.permute.xlu0 %2470
        %v2472 = vsel %vm965, %v2469, %v2471
        %v2474 = vsel %vm965, %v2471, 0.0
        %v2476 = vrot.slane %v2472, 1
        %v2477 = vrot.slane %v2474, 1
        %v2480 = vadd.f32 %v2464, %v2476
        %v2481 = vadd.f32 %v2465, %v2477
        %2482 = vrot.lane.b32.xlu0 %v2238, 96
        %v2483 = vpop.permute.xlu0 %2482
        %2484 = vrot.lane.b32.xlu0 %v2327, 96
        %v2485 = vpop.permute.xlu0 %2484
        %v2486 = vsel %vm1314, %v2483, %v2485
        %v2488 = vsel %vm1314, %v2485, 0.0
        %v2490 = vrot.slane %v2486, 2
        %v2491 = vrot.slane %v2488, 2
        %v2494 = vadd.f32 %v2480, %v2490
        %v2495 = vadd.f32 %v2481, %v2491
        %2496 = vrot.lane.b32.xlu0 %v2238, 80
        %v2497 = vpop.permute.xlu0 %2496
        %2498 = vrot.lane.b32.xlu0 %v2327, 80
        %v2499 = vpop.permute.xlu0 %2498
        %v2500 = vsel %vm1575, %v2497, %v2499
        %v2502 = vsel %vm1575, %v2499, 0.0
        %v2504 = vrot.slane %v2500, 3
        %v2505 = vrot.slane %v2502, 3
        %v2508 = vadd.f32 %v2494, %v2504
        %v2509 = vadd.f32 %v2495, %v2505
        %2510 = vrot.lane.b32.xlu0 %v2238, 64
        %v2511 = vpop.permute.xlu0 %2510
        %2512 = vrot.lane.b32.xlu0 %v2327, 64
        %v2513 = vpop.permute.xlu0 %2512
        %v2514 = vsel %vm1461, %v2511, %v2513
        %v2516 = vsel %vm1461, %v2513, 0.0
        %v2518 = vrot.slane %v2514, 4
        %v2519 = vrot.slane %v2516, 4
        %v2522 = vadd.f32 %v2508, %v2518
        %v2523 = vadd.f32 %v2509, %v2519
        %2524 = vrot.lane.b32.xlu0 %v2238, 48
        %v2525 = vpop.permute.xlu0 %2524
        %2526 = vrot.lane.b32.xlu0 %v2327, 48
        %v2527 = vpop.permute.xlu0 %2526
        %v2528 = vsel %vm1480, %v2525, %v2527
        %v2530 = vsel %vm1480, %v2527, 0.0
        %v2532 = vrot.slane %v2528, 5
        %v2533 = vrot.slane %v2530, 5
        %v2536 = vadd.f32 %v2522, %v2532
        %v2537 = vadd.f32 %v2523, %v2533
        %2538 = vrot.lane.b32.xlu0 %v2238, 32
        %v2539 = vpop.permute.xlu0 %2538
        %2540 = vrot.lane.b32.xlu0 %v2327, 32
        %v2541 = vpop.permute.xlu0 %2540
        %v2542 = vsel %vm1236, %v2539, %v2541
        %v2544 = vsel %vm1236, %v2541, 0.0
        %v2546 = vrot.slane %v2542, 6
        %v2547 = vrot.slane %v2544, 6
        %v2550 = vadd.f32 %v2536, %v2546
        %v2551 = vadd.f32 %v2537, %v2547
        %2552 = vrot.lane.b32.xlu0 %v2238, 16
        %v2553 = vpop.permute.xlu0 %2552
        %2554 = vrot.lane.b32.xlu0 %v2327, 16
        %v2555 = vpop.permute.xlu0 %2554
        %v2556 = vsel %vm495, %v2553, %v2555
        %v2558 = vsel %vm495, %v2555, 0.0
        %v2560 = vrot.slane %v2556, 7
        %v2561 = vrot.slane %v2558, 7
        %v2564 = vadd.f32 %v2550, %v2560
        %v2565 = vadd.f32 %v2551, %v2561
        %v2566 = vadd.f32 %v2564, %v2330
        %v2567 = vadd.f32 %v2565, 0.0
        %2569 = vrot.lane.b32.xlu0 %v2330, 112
        %v2570 = vpop.permute.xlu0 %2569
        %v2572 = vsel %vm965, %v2570, 0.0
        %v2575 = vrot.slane %v2572, 1
        %v2576 = vrot.slane 0.0, 1
        %v2579 = vadd.f32 %v2566, %v2575
        %v2580 = vadd.f32 %v2567, %v2576
        %2581 = vrot.lane.b32.xlu0 %v2330, 96
        %v2582 = vpop.permute.xlu0 %2581
        %v2584 = vsel %vm1314, %v2582, 0.0
        %v2586 = vrot.slane %v2584, 2
        %v2587 = vrot.slane 0.0, 2
        %v2590 = vadd.f32 %v2579, %v2586
        %v2591 = vadd.f32 %v2580, %v2587
        %2592 = vrot.lane.b32.xlu0 %v2330, 80
        %v2593 = vpop.permute.xlu0 %2592
        %v2595 = vsel %vm1575, %v2593, 0.0
        %v2597 = vrot.slane %v2595, 3
        %v2598 = vrot.slane 0.0, 3
        %v2601 = vadd.f32 %v2590, %v2597
        %v2602 = vadd.f32 %v2591, %v2598
        %2603 = vrot.lane.b32.xlu0 %v2330, 64
        %v2604 = vpop.permute.xlu0 %2603
        %v2606 = vsel %vm1461, %v2604, 0.0
        %v2608 = vrot.slane %v2606, 4
        %v2609 = vrot.slane 0.0, 4
        %v2612 = vadd.f32 %v2601, %v2608
        %v2613 = vadd.f32 %v2602, %v2609
        %2614 = vrot.lane.b32.xlu0 %v2330, 48
        %v2615 = vpop.permute.xlu0 %2614
        %v2617 = vsel %vm1480, %v2615, 0.0
        %v2619 = vrot.slane %v2617, 5
        %v2620 = vrot.slane 0.0, 5
        %v2623 = vadd.f32 %v2612, %v2619
        %v2624 = vadd.f32 %v2613, %v2620
        %2625 = vrot.lane.b32.xlu0 %v2330, 32
        %v2626 = vpop.permute.xlu0 %2625
        %v2628 = vsel %vm1236, %v2626, 0.0
        %v2630 = vrot.slane %v2628, 6
        %v2631 = vrot.slane 0.0, 6
        %v2634 = vadd.f32 %v2623, %v2630
        %v2635 = vadd.f32 %v2624, %v2631
        %2636 = vrot.lane.b32.xlu0 %v2330, 16
        %v2637 = vpop.permute.xlu0 %2636
        %v2639 = vsel %vm495, %v2637, 0.0
        %v2641 = vrot.slane %v2639, 7
        %v2642 = vrot.slane 0.0, 7
        %v2645 = vadd.f32 %v2634, %v2641
        %v2646 = vadd.f32 %v2635, %v2642
        %v2649 = vrot.slane %v2646, 7
        %v2650 = vsel %vm1245, %v2645, %v2649
        %v2652 = vlaneseq
        %vm2653 = vcmp.ge.s32.totalorder %v2652, 0
        %vm2654 = vcmp.lt.s32.totalorder %v2652, 256
        %vm2655 = vmand %vm2653, %vm2654
        %s2656 = scalar_lea.vmem %s437, 48
        %2657 = vst.msk [vmem:[%s2656] ss:$8 sm:$0x3] %vm2655, %v2650
        %2658 = vst.msk [vmem:[%s2656] ss:$8 sm:$0x0] %vm2655, %v2650
        %p2659 = scmp.eq.s32.totalorder %s25, 0
        // Predicated region
        $region69: #{adaptive_receptive_field.2} parent=63 // pred_check
          %p2660 = pneg %p2659
        $region70: #{adaptive_receptive_field.2} parent=63 // pred_check_branch
          %2662 = sbr.rel (%p2660) target = $region72
        $region71: #{adaptive_receptive_field.2} parent=63 // pred_region
          %v2663 = vld [vmem:[%s7] sm:$0x1f]
          %2665 = vrot.lane.b32.xlu0 %v2663, 119
          %v2666 = vpop.permute.xlu0 %2665
          %v2667 = vsel %vm629, %v2666, 0
          %v2669 = vsel %vm1083, %v1332, 0
          %v2671 = vsel %vm1083, %v1333, 0
          %2673 = vmatpush.msra.mxu0 0.0
          %2674 = vmatpush.msra.mxu0 0.0
          %2675 = vmatpush.msra.mxu0 0.0
          %2676 = vmatpush.msra.mxu0 0.0
          %2677 = vmatpush.msra.mxu0 0.0
          %2678 = vmatpush.msra.mxu0 0.0
          %2679 = vmatpush.msra.mxu0 0.0
          %2680 = vmatpush.msra.mxu0 0.0
          %2681 = vmatpush.msra.mxu0 0.0
          %2682 = vmatpush.msra.mxu0 0.0
          %2683 = vmatpush.msra.mxu0 0.0
          %2684 = vmatpush.msra.mxu0 0.0
          %2685 = vmatpush.msra.mxu0 0.0
          %2686 = vmatpush.msra.mxu0 0.0
          %2687 = vmatpush.msra.mxu0 0.0
          %2688 = vmatpush.msra.mxu0 %v2669
          %2689 = vmatmul.f32.gmra.mxu0 %v2667
          %v2690 = vpop.f32.mrf.mxu0
          %v2691 = vadd.f32 0.0, %v2690
          %2692 = vdwg.mxu0
          %2693 = vmatpush.msra.mxu0 0.0
          %2694 = vmatpush.msra.mxu0 0.0
          %2695 = vmatpush.msra.mxu0 0.0
          %2696 = vmatpush.msra.mxu0 0.0
          %2697 = vmatpush.msra.mxu0 0.0
          %2698 = vmatpush.msra.mxu0 0.0
          %2699 = vmatpush.msra.mxu0 0.0
          %2700 = vmatpush.msra.mxu0 0.0
          %2701 = vmatpush.msra.mxu0 0.0
          %2702 = vmatpush.msra.mxu0 0.0
          %2703 = vmatpush.msra.mxu0 0.0
          %2704 = vmatpush.msra.mxu0 0.0
          %2705 = vmatpush.msra.mxu0 0.0
          %2706 = vmatpush.msra.mxu0 0.0
          %2707 = vmatpush.msra.mxu0 0.0
          %2708 = vmatpush.msra.mxu0 %v2671
          %2709 = vmatmul.f32.gmra.mxu0 %v2667
          %v2710 = vpop.f32.mrf.mxu0
          %v2711 = vadd.f32 0.0, %v2710
          %2712 = vdwg.mxu0
          %v2713 = vsel %vm600, %v2663, 0
          %v2716 = vsel %vm1245, %v1129, 0
          %v2719 = vsel %vm1245, %v1130, 0
          %2721 = vmatpush.msra.mxu0 0.0
          %2722 = vmatpush.msra.mxu0 0.0
          %2723 = vmatpush.msra.mxu0 0.0
          %2724 = vmatpush.msra.mxu0 0.0
          %2725 = vmatpush.msra.mxu0 0.0
          %2726 = vmatpush.msra.mxu0 0.0
          %2727 = vmatpush.msra.mxu0 0.0
          %2728 = vmatpush.msra.mxu0 0.0
          %2729 = vmatpush.msra.mxu0 0.0
          %2730 = vmatpush.msra.mxu0 0.0
          %2731 = vmatpush.msra.mxu0 0.0
          %2732 = vmatpush.msra.mxu0 0.0
          %2733 = vmatpush.msra.mxu0 0.0
          %2734 = vmatpush.msra.mxu0 0.0
          %2735 = vmatpush.msra.mxu0 %v2716
          %2736 = vmatpush.msra.mxu0 %v1127
          %2737 = vmatmul.f32.gmra.mxu0 %v2713
          %v2738 = vpop.f32.mrf.mxu0
          %v2739 = vadd.f32 %v2691, %v2738
          %2740 = vdwg.mxu0
          %2741 = vmatpush.msra.mxu0 0.0
          %2742 = vmatpush.msra.mxu0 0.0
          %2743 = vmatpush.msra.mxu0 0.0
          %2744 = vmatpush.msra.mxu0 0.0
          %2745 = vmatpush.msra.mxu0 0.0
          %2746 = vmatpush.msra.mxu0 0.0
          %2747 = vmatpush.msra.mxu0 0.0
          %2748 = vmatpush.msra.mxu0 0.0
          %2749 = vmatpush.msra.mxu0 0.0
          %2750 = vmatpush.msra.mxu0 0.0
          %2751 = vmatpush.msra.mxu0 0.0
          %2752 = vmatpush.msra.mxu0 0.0
          %2753 = vmatpush.msra.mxu0 0.0
          %2754 = vmatpush.msra.mxu0 0.0
          %2755 = vmatpush.msra.mxu0 %v2719
          %2756 = vmatpush.msra.mxu0 %v1128
          %2757 = vmatmul.f32.gmra.mxu0 %v2713
          %v2758 = vpop.f32.mrf.mxu0
          %v2759 = vadd.f32 %v2711, %v2758
          %2760 = vdwg.mxu0
          %2761 = vrot.lane.b32.xlu0 %v2663, 112
          %v2762 = vpop.permute.xlu0 %2761
          %v2763 = vsel %vm659, %v2762, 0
          %vm2765 = vcmask 1044480
          %v2767 = vsel %vm2765, %v1596, 0
          %v2770 = vsel %vm2765, %v1597, 0
          %2772 = vmatpush.msra.mxu0 0.0
          %2773 = vmatpush.msra.mxu0 0.0
          %2774 = vmatpush.msra.mxu0 0.0
          %2775 = vmatpush.msra.mxu0 0.0
          %2776 = vmatpush.msra.mxu0 0.0
          %2777 = vmatpush.msra.mxu0 0.0
          %2778 = vmatpush.msra.mxu0 0.0
          %2779 = vmatpush.msra.mxu0 0.0
          %2780 = vmatpush.msra.mxu0 0.0
          %2781 = vmatpush.msra.mxu0 0.0
          %2782 = vmatpush.msra.mxu0 0.0
          %2783 = vmatpush.msra.mxu0 0.0
          %2784 = vmatpush.msra.mxu0 0.0
          %2785 = vmatpush.msra.mxu0 0.0
          %2786 = vmatpush.msra.mxu0 0.0
          %2787 = vmatpush.msra.mxu0 %v2767
          %2788 = vmatmul.f32.gmra.mxu0 %v2763
          %v2789 = vpop.f32.mrf.mxu0
          %v2790 = vadd.f32 0.0, %v2789
          %2791 = vdwg.mxu0
          %2792 = vmatpush.msra.mxu0 0.0
          %2793 = vmatpush.msra.mxu0 0.0
          %2794 = vmatpush.msra.mxu0 0.0
          %2795 = vmatpush.msra.mxu0 0.0
          %2796 = vmatpush.msra.mxu0 0.0
          %2797 = vmatpush.msra.mxu0 0.0
          %2798 = vmatpush.msra.mxu0 0.0
          %2799 = vmatpush.msra.mxu0 0.0
          %2800 = vmatpush.msra.mxu0 0.0
          %2801 = vmatpush.msra.mxu0 0.0
          %2802 = vmatpush.msra.mxu0 0.0
          %2803 = vmatpush.msra.mxu0 0.0
          %2804 = vmatpush.msra.mxu0 0.0
          %2805 = vmatpush.msra.mxu0 0.0
          %2806 = vmatpush.msra.mxu0 0.0
          %2807 = vmatpush.msra.mxu0 %v2770
          %2808 = vmatmul.f32.gmra.mxu0 %v2763
          %v2809 = vpop.f32.mrf.mxu0
          %v2810 = vadd.f32 0.0, %v2809
          %2811 = vdwg.mxu0
          %v2812 = vadd.f32 %v2739, %v2790
          %v2813 = vadd.f32 %v2759, %v2810
          %2814 = vrot.lane.b32.xlu0 %v2663, 107
          %v2815 = vpop.permute.xlu0 %2814
          %v2816 = vsel %vm689, %v2815, 0
          %v2818 = vsel %vm1293, %v2048, 0
          %v2820 = vsel %vm1293, %v2049, 0
          %2822 = vmatpush.msra.mxu0 0.0
          %2823 = vmatpush.msra.mxu0 0.0
          %2824 = vmatpush.msra.mxu0 0.0
          %2825 = vmatpush.msra.mxu0 0.0
          %2826 = vmatpush.msra.mxu0 0.0
          %2827 = vmatpush.msra.mxu0 0.0
          %2828 = vmatpush.msra.mxu0 0.0
          %2829 = vmatpush.msra.mxu0 0.0
          %2830 = vmatpush.msra.mxu0 0.0
          %2831 = vmatpush.msra.mxu0 0.0
          %2832 = vmatpush.msra.mxu0 0.0
          %2833 = vmatpush.msra.mxu0 0.0
          %2834 = vmatpush.msra.mxu0 0.0
          %2835 = vmatpush.msra.mxu0 0.0
          %2836 = vmatpush.msra.mxu0 0.0
          %2837 = vmatpush.msra.mxu0 %v2818
          %2838 = vmatmul.f32.gmra.mxu0 %v2816
          %v2839 = vpop.f32.mrf.mxu0
          %v2840 = vadd.f32 0.0, %v2839
          %2841 = vdwg.mxu0
          %2842 = vmatpush.msra.mxu0 0.0
          %2843 = vmatpush.msra.mxu0 0.0
          %2844 = vmatpush.msra.mxu0 0.0
          %2845 = vmatpush.msra.mxu0 0.0
          %2846 = vmatpush.msra.mxu0 0.0
          %2847 = vmatpush.msra.mxu0 0.0
          %2848 = vmatpush.msra.mxu0 0.0
          %2849 = vmatpush.msra.mxu0 0.0
          %2850 = vmatpush.msra.mxu0 0.0
          %2851 = vmatpush.msra.mxu0 0.0
          %2852 = vmatpush.msra.mxu0 0.0
          %2853 = vmatpush.msra.mxu0 0.0
          %2854 = vmatpush.msra.mxu0 0.0
          %2855 = vmatpush.msra.mxu0 0.0
          %2856 = vmatpush.msra.mxu0 0.0
          %2857 = vmatpush.msra.mxu0 %v2820
          %2858 = vmatmul.f32.gmra.mxu0 %v2816
          %v2859 = vpop.f32.mrf.mxu0
          %v2860 = vadd.f32 0.0, %v2859
          %2861 = vdwg.mxu0
          %v2862 = vadd.f32 %v2812, %v2840
          %v2863 = vadd.f32 %v2813, %v2860
          %2864 = vrot.lane.b32.xlu0 %v2663, 104
          %v2865 = vpop.permute.xlu0 %2864
          %v2866 = vsel %vm719, %v2865, 0
          %v2868 = vsel %vm1245, %v2645, 0
          %v2870 = vsel %vm1245, %v2646, 0
          %2872 = vmatpush.msra.mxu0 0.0
          %2873 = vmatpush.msra.mxu0 0.0
          %2874 = vmatpush.msra.mxu0 0.0
          %2875 = vmatpush.msra.mxu0 0.0
          %2876 = vmatpush.msra.mxu0 0.0
          %2877 = vmatpush.msra.mxu0 0.0
          %2878 = vmatpush.msra.mxu0 0.0
          %2879 = vmatpush.msra.mxu0 0.0
          %2880 = vmatpush.msra.mxu0 0.0
          %2881 = vmatpush.msra.mxu0 0.0
          %2882 = vmatpush.msra.mxu0 0.0
          %2883 = vmatpush.msra.mxu0 0.0
          %2884 = vmatpush.msra.mxu0 0.0
          %2885 = vmatpush.msra.mxu0 0.0
          %2886 = vmatpush.msra.mxu0 0.0
          %2887 = vmatpush.msra.mxu0 %v2868
          %2888 = vmatmul.f32.gmra.mxu0 %v2866
          %v2889 = vpop.f32.mrf.mxu0
          %v2890 = vadd.f32 0.0, %v2889
          %2891 = vdwg.mxu0
          %2892 = vmatpush.msra.mxu0 0.0
          %2893 = vmatpush.msra.mxu0 0.0
          %2894 = vmatpush.msra.mxu0 0.0
          %2895 = vmatpush.msra.mxu0 0.0
          %2896 = vmatpush.msra.mxu0 0.0
          %2897 = vmatpush.msra.mxu0 0.0
          %2898 = vmatpush.msra.mxu0 0.0
          %2899 = vmatpush.msra.mxu0 0.0
          %2900 = vmatpush.msra.mxu0 0.0
          %2901 = vmatpush.msra.mxu0 0.0
          %2902 = vmatpush.msra.mxu0 0.0
          %2903 = vmatpush.msra.mxu0 0.0
          %2904 = vmatpush.msra.mxu0 0.0
          %2905 = vmatpush.msra.mxu0 0.0
          %2906 = vmatpush.msra.mxu0 0.0
          %2907 = vmatpush.msra.mxu0 %v2870
          %2908 = vmatmul.f32.gmra.mxu0 %v2866
          %v2909 = vpop.f32.mrf.mxu0
          %v2910 = vadd.f32 0.0, %v2909
          %2911 = vdwg.mxu0
          %v2912 = vadd.f32 %v2862, %v2890
          %v2913 = vadd.f32 %v2863, %v2910
          %v2914 = vsel %vm2765, %v2912, 0.0
          %v2915 = vsel %vm2765, %v2913, 0.0
          %v2916 = vadd.f32 %v2914, %v2915
          %2917 = vadd.xlane.f32.xlu0 %v2916
          %v2918 = vpop.xlane.xlu0 %2917
          %v2919 = vrcp.pop 256.0
          %v2920 = vmul.f32 256.0, %v2919
          %v2921 = vsub.f32 1.0, %v2920
          %v2922 = vmul.f32 %v2919, %v2921
          %v2923 = vadd.f32 %v2919, %v2922
          %vm2924 = vweird.f32 %v2919
          %v2925 = vsel %vm2924, %v2919, %v2923
          %v2926 = vmul.f32 %v2918, %v2925
          %v2927 = vsel %vm2765, %v2912, -inf
          %v2928 = vsel %vm2765, %v2913, -inf
          %v2929 = vmax.f32 %v2927, %v2928
          %2930 = vmax.xlane.f32.xlu0 %v2929
          %v2931 = vpop.xlane.xlu0 %2930
          %v2932 = vld [vmem:[%s8] sm:$0x3]
          %v2934 = vsel %vm659, %v2932, 0
          %v2937 = vsel %vm2765, %v2926, 0
          %2939 = vmatpush.msra.mxu0 0.0
          %2940 = vmatpush.msra.mxu0 0.0
          %2941 = vmatpush.msra.mxu0 0.0
          %2942 = vmatpush.msra.mxu0 0.0
          %2943 = vmatpush.msra.mxu0 0.0
          %2944 = vmatpush.msra.mxu0 0.0
          %2945 = vmatpush.msra.mxu0 0.0
          %2946 = vmatpush.msra.mxu0 0.0
          %2947 = vmatpush.msra.mxu0 0.0
          %2948 = vmatpush.msra.mxu0 0.0
          %2949 = vmatpush.msra.mxu0 0.0
          %2950 = vmatpush.msra.mxu0 0.0
          %2951 = vmatpush.msra.mxu0 0.0
          %2952 = vmatpush.msra.mxu0 0.0
          %2953 = vmatpush.msra.mxu0 0.0
          %2954 = vmatpush.msra.mxu0 %v2937
          %2955 = vmatmul.f32.gmra.mxu0 %v2934
          %v2956 = vpop.f32.mrf.mxu0
          %v2957 = vadd.f32 0.0, %v2956
          %2958 = vdwg.mxu0
          %v2959 = vmax.f32 %v2957, 0.0
          %v2960 = vld [vmem:[%s9] sm:$0x1f]
          %v2962 = vsel %vm2765, %v2931, 0
          %2964 = vmatpush.msra.mxu0 0.0
          %2965 = vmatpush.msra.mxu0 0.0
          %2966 = vmatpush.msra.mxu0 0.0
          %2967 = vmatpush.msra.mxu0 0.0
          %2968 = vmatpush.msra.mxu0 0.0
          %2969 = vmatpush.msra.mxu0 0.0
          %2970 = vmatpush.msra.mxu0 0.0
          %2971 = vmatpush.msra.mxu0 0.0
          %2972 = vmatpush.msra.mxu0 0.0
          %2973 = vmatpush.msra.mxu0 0.0
          %2974 = vmatpush.msra.mxu0 0.0
          %2975 = vmatpush.msra.mxu0 0.0
          %2976 = vmatpush.msra.mxu0 0.0
          %2977 = vmatpush.msra.mxu0 0.0
          %2978 = vmatpush.msra.mxu0 0.0
          %2979 = vmatpush.msra.mxu0 %v2962
          %2980 = vmatmul.f32.gmra.mxu0 %v2934
          %v2981 = vpop.f32.mrf.mxu0
          %v2982 = vadd.f32 0.0, %v2981
          %2983 = vdwg.mxu0
          %v2984 = vmax.f32 %v2982, 0.0
          %v2986 = vsel %vm704, %v2960, 0
          %v2989 = vsel %vm1264, %v2984, 0
          %2991 = vmatpush.msra.mxu0 0.0
          %2992 = vmatpush.msra.mxu0 0.0
          %2993 = vmatpush.msra.mxu0 0.0
          %2994 = vmatpush.msra.mxu0 0.0
          %2995 = vmatpush.msra.mxu0 0.0
          %2996 = vmatpush.msra.mxu0 0.0
          %2997 = vmatpush.msra.mxu0 0.0
          %2998 = vmatpush.msra.mxu0 0.0
          %2999 = vmatpush.msra.mxu0 0.0
          %3000 = vmatpush.msra.mxu0 0.0
          %3001 = vmatpush.msra.mxu0 0.0
          %3002 = vmatpush.msra.mxu0 0.0
          %3003 = vmatpush.msra.mxu0 0.0
          %3004 = vmatpush.msra.mxu0 0.0
          %3005 = vmatpush.msra.mxu0 0.0
          %3006 = vmatpush.msra.mxu0 %v2989
          %3007 = vmatmul.f32.gmra.mxu0 %v2986
          %v3008 = vpop.f32.mrf.mxu0
          %v3009 = vadd.f32 0.0, %v3008
          %3010 = vdwg.mxu0
          %v3012 = vsel %vm1264, %v2959, 0
          %3014 = vmatpush.msra.mxu0 0.0
          %3015 = vmatpush.msra.mxu0 0.0
          %3016 = vmatpush.msra.mxu0 0.0
          %3017 = vmatpush.msra.mxu0 0.0
          %3018 = vmatpush.msra.mxu0 0.0
          %3019 = vmatpush.msra.mxu0 0.0
          %3020 = vmatpush.msra.mxu0 0.0
          %3021 = vmatpush.msra.mxu0 0.0
          %3022 = vmatpush.msra.mxu0 0.0
          %3023 = vmatpush.msra.mxu0 0.0
          %3024 = vmatpush.msra.mxu0 0.0
          %3025 = vmatpush.msra.mxu0 0.0
          %3026 = vmatpush.msra.mxu0 0.0
          %3027 = vmatpush.msra.mxu0 0.0
          %3028 = vmatpush.msra.mxu0 0.0
          %3029 = vmatpush.msra.mxu0 %v3012
          %3030 = vmatmul.f32.gmra.mxu0 %v2986
          %v3031 = vpop.f32.mrf.mxu0
          %v3032 = vadd.f32 %v3009, %v3031
          %3033 = vdwg.mxu0
          %v3034 = vxor.u32 %v3032, 2147483648
          %v3035 = vmul.f32 %v3034, 1.442695
          %v3036 = vpow.pop %v3035
          %v3037 = vadd.f32 %v3036, 1.0
          %v3038 = vrcp.pop %v3037
          %v3039 = vmul.f32 %v3037, %v3038
          %v3040 = vsub.f32 1.0, %v3039
          %v3041 = vmul.f32 %v3038, %v3040
          %v3042 = vadd.f32 %v3038, %v3041
          %vm3043 = vweird.f32 %v3037
          %vm3044 = vweird.f32 %v3038
          %vm3045 = vmor %vm3043, %vm3044
          %v3046 = vsel %vm3045, %v3038, %v3042
          %v3047 = vand.u32 2147483647, %v3037
          %vm3048 = vcmp.eq.f32.partialorder %v3047, 8.507059e+37
          %v3049 = vand.u32 %v3037, 2147483648
          %v3050 = vor.u32 1.1754944e-38, %v3049
          %v3051 = vsel %vm3048, %v3050, %v3046
          %v3052 = vmul.f32 1.0, %v3051
          %vm3053 = vcmask 4096
          %3054 = vst.msk [vmem:[%s441] sm:$0x1f] %vm3053, %v3052
        $region72: #{adaptive_receptive_field.2} parent=63 // pred_fallthru
          _
        %p3055 = scmp.lt.s32.totalorder %s25, 1
        %s3056 = scalar_select %p3055, %s25, 1
        %s3057 = smul.addr %s3056, 8
        %s3058 = smul.addr %s3057, 8
        %s3059 = scalar_lea.vmem %s11, %s3058
        %p3060 = scmp.lt.s32.totalorder %s25, 1
        %s3061 = scalar_select %p3060, %s25, 1
        %s3062 = smul.addr %s3061, 8
        %s3063 = scalar_lea.vmem %s12, %s3062
        // Predicated region
        $region73: #{adaptive_receptive_field.2} parent=63 // pred_check
          %p3064 = pneg %p279
        $region74: #{adaptive_receptive_field.2} parent=63 // pred_check_branch
          %3066 = sbr.rel (%p3064) target = $region76
        $region75: #{adaptive_receptive_field.2} parent=63 // pred_region
          _
        $region76: #{adaptive_receptive_field.2} parent=63 // pred_fallthru
          _
        // Predicated region
        $region77: #{adaptive_receptive_field.2} parent=63 // pred_check
          %p3067 = pneg %p305
        $region78: #{adaptive_receptive_field.2} parent=63 // pred_check_branch
          %3069 = sbr.rel (%p3067) target = $region80
        $region79: #{adaptive_receptive_field.2} parent=63 // pred_region
          _
        $region80: #{adaptive_receptive_field.2} parent=63 // pred_fallthru
          _
      $region64: #{adaptive_receptive_field.2} parent=5 // pred_fallthru
        _
      %p3070 = scmp.le.s32.totalorder 2, %s20
      // Predicated region
      $region81: #{adaptive_receptive_field.2} parent=5 // pred_check
        %p3071 = pneg %p3070
      $region82: #{adaptive_receptive_field.2} parent=5 // pred_check_branch
        %3073 = sbr.rel (%p3071) target = $region84
      $region83: #{adaptive_receptive_field.2} parent=5 // pred_region
        %s3074 = ssub.s32 %s20, 2
        // Predicated region
        $region85: #{adaptive_receptive_field.2} parent=83 // pred_check
          %p3075 = pneg %p285
        $region86: #{adaptive_receptive_field.2} parent=83 // pred_check_branch
          %3077 = sbr.rel (%p3075) target = $region88
        $region87: #{adaptive_receptive_field.2} parent=83 // pred_region
          %p3078 = scmp.lt.s32.totalorder %s26, 1
          %s3079 = scalar_select %p3078, %s26, 1
          %s3080 = smul.addr %s3079, 8
          %s3081 = smul.addr %s3080, 8
          %s3082 = scalar_lea.vmem %s11, %s3081
        $region88: #{adaptive_receptive_field.2} parent=83 // pred_fallthru
          _
        // Predicated region
        $region89: #{adaptive_receptive_field.2} parent=83 // pred_check
          %p3083 = pneg %p311
        $region90: #{adaptive_receptive_field.2} parent=83 // pred_check_branch
          %3085 = sbr.rel (%p3083) target = $region92
        $region91: #{adaptive_receptive_field.2} parent=83 // pred_region
          %p3086 = scmp.lt.s32.totalorder %s26, 1
          %s3087 = scalar_select %p3086, %s26, 1
          %s3088 = smul.addr %s3087, 8
          %s3089 = scalar_lea.vmem %s12, %s3088
        $region92: #{adaptive_receptive_field.2} parent=83 // pred_fallthru
          _
      $region84: #{adaptive_receptive_field.2} parent=5 // pred_fallthru
        _
    $region6: #{adaptive_receptive_field.2} parent=1 // loop_footer
      %s24 = sadd.s32 1, %s20
    $region7: #{adaptive_receptive_field.2} parent=1 // loop_footer_branch
      %19 = sbr.rel target = $region3
    $region8: #{adaptive_receptive_field.2} parent=1 // loop_exit
      _
    %3090 = vsyncpa [#allocation4], 1
    %s3091 = scalar_lea.sflag [#allocation4], 1
    %3092 = vsyncpa %s3091, 1

</llo_original>
